<compile_context>
chip_gen: v7x
topology: tpu7x:2x2x1
jax: 0.10.0
libtpu: 0.0.40
codegen_flags: <defaults>
</compile_context>

<pallas_src>
import functools

import jax
import jax.numpy as jnp
from jax import lax
from jax.experimental import pallas as pl
from jax.experimental.pallas import tpu as pltpu

EPS = 1e-5  # nn.InstanceNorm2d default eps (affine=False, no running stats)


def _latent_policy_kernel(x_ref, w1_ref, wcat_ref, wmu_ref, bmu_ref, mu_ref,
                          *, H, W):
    HW = H * W
    x = x_ref[...]                                     # (C_in, HW), lane-dense

    # ---- halo masks generated in-kernel (no mask operand / DMA) ------------
    # Flattened spatial position p = row*W + col lives on the lane axis.
    pos = lax.broadcasted_iota(jnp.int32, (1, HW), 1)
    if (W & (W - 1)) == 0:                             # power-of-two width
        col = jnp.bitwise_and(pos, W - 1)
    else:                                              # generic fallback
        col = pos - (pos // W) * W
    ok_top = pos >= W                  # tap oy == -1 valid (row > 0)
    ok_bot = pos < (HW - W)            # tap oy == +1 valid (row < H-1)
    ok_left = col != 0                 # tap ox == -1 valid (col > 0)
    ok_right = col != (W - 1)          # tap ox == +1 valid (col < W-1)

    # Static tap table: (tap index k = dy*3+dx, lane-roll shift, mask|None).
    # rolled[p] = a[p + off] with off = oy*W + ox  (same convention as the
    # validated previous kernel); masks zero the zero-padding halo.
    taps = []
    for dy in range(3):
        for dx in range(3):
            oy, ox = dy - 1, dx - 1
            k = dy * 3 + dx
            if oy == 0 and ox == 0:
                taps.append((k, 0, None))
                continue
            conds = []
            if oy == -1:
                conds.append(ok_top)
            if oy == 1:
                conds.append(ok_bot)
            if ox == -1:
                conds.append(ok_left)
            if ox == 1:
                conds.append(ok_right)
            valid = conds[0]
            for c in conds[1:]:
                valid = valid & c
            mask = jnp.where(valid, 1.0, 0.0)          # (1, HW) f32, hoisted
            shift = (-(oy * W + ox)) % HW
            taps.append((k, shift, mask))

    def conv3x3(a, w_of_tap):
        """Per-tap MXU accumulation: sum_k W_k(Cout,Cin) @ shifted_k(Cin,HW)."""
        acc = None
        for k, shift, mask in taps:
            patch = a if mask is None else pltpu.roll(a, shift, 1) * mask
            part = jnp.dot(w_of_tap(k), patch,
                           preferred_element_type=jnp.float32)
            acc = part if acc is None else acc + part
        return acc
        # No bias: every 3x3 conv here is followed by affine=False
        # InstanceNorm, which cancels per-channel constants exactly.

    inv_hw = jnp.float32(1.0 / HW)

    def inorm(y):
        # Two independent lane reductions; var = E[y^2] - mean^2.
        s1 = jnp.sum(y, axis=1, keepdims=True)
        s2 = jnp.sum(y * y, axis=1, keepdims=True)
        mean = s1 * inv_hw
        var = s2 * inv_hw - mean * mean
        return (y - mean) * lax.rsqrt(var + EPS)

    # ---- trunk: conv1 -> IN -> ReLU -> conv2 -> IN -> ReLU ----
    h = jnp.maximum(inorm(conv3x3(x, lambda k: w1_ref[k])), 0.0)
    h = jnp.maximum(inorm(conv3x3(h, lambda k: wcat_ref[0, k])), 0.0)

    # ---- ResBlock ----
    r = jnp.maximum(inorm(conv3x3(h, lambda k: wcat_ref[1, k])), 0.0)
    r = inorm(conv3x3(r, lambda k: wcat_ref[2, k]))
    h = jnp.maximum(r + h, 0.0)

    # ---- 1x1 mu head; (1 - sigmoid(gate)) already folded into wmu/bmu ----
    mu_ref[...] = (jnp.dot(wmu_ref[...], h, preferred_element_type=jnp.float32)
                   + bmu_ref[...]).astype(mu_ref.dtype)


def _w3x3_per_tap(w):
    """PyTorch OIHW (Cout, Cin, 3, 3) -> (9, Cout, Cin), tap k = dy*3 + dx."""
    co, ci, kh, kw = w.shape
    return jnp.transpose(w, (2, 3, 0, 1)).reshape(kh * kw, co, ci)


def latent_policy_pallas(z_t, z_tp1, params):
    """z_t, z_tp1: (N, C_lat, H, W) NCHW.  Returns (mu, std) like the module."""
    N, C_lat, H, W = z_t.shape
    HW = H * W
    C_in = 2 * C_lat
    C = params["w1"].shape[0]

    # NCHW -> (N, C, H*W): contiguous reshape (no transpose), lane-dense spatial.
    x = jnp.concatenate([z_t, z_tp1], axis=1).reshape(N, C_in, HW)
    x = x.astype(jnp.float32)

    # Per-tap weight layout; b1/b2/rb1/rb2 intentionally unused (cancelled by IN).
    w1p = _w3x3_per_tap(params["w1"]).astype(jnp.float32)        # (9, C, C_in)
    wcat = jnp.stack([_w3x3_per_tap(params["w2"]),
                      _w3x3_per_tap(params["rw1"]),
                      _w3x3_per_tap(params["rw2"])],
                     axis=0).astype(jnp.float32)                 # (3, 9, C, C)

    # Fold (1 - sigmoid(gate)) into the mu head (exact).
    gate_scale = (1.0 - jax.nn.sigmoid(
        params["gate_param"].astype(jnp.float32))).reshape(())
    wmu = (gate_scale * params["wmu"].reshape(C_lat, C)).astype(jnp.float32)
    bmu = (gate_scale * params["bmu"].reshape(C_lat, 1)).astype(jnp.float32)

    def full_spec(shape):
        return pl.BlockSpec(shape, lambda n: (0,) * len(shape))

    flops = 2 * N * HW * (9 * C_in * C + 3 * 9 * C * C + C * C_lat)
    transcendentals = 4 * N * C          # one rsqrt per channel per instance norm
    bytes_accessed = int(4 * (x.size + w1p.size + wcat.size + wmu.size
                              + bmu.size + N * C_lat * HW))

    kern = functools.partial(_latent_policy_kernel, H=H, W=W)
    mu_flat = pl.pallas_call(
        kern,
        out_shape=jax.ShapeDtypeStruct((N, C_lat, HW), jnp.float32),
        grid_spec=pltpu.PrefetchScalarGridSpec(
            num_scalar_prefetch=0,
            grid=(N,),
            in_specs=[
                pl.BlockSpec((pl.Squeezed(), C_in, HW), lambda n: (n, 0, 0)),
                full_spec((9, C, C_in)),       # conv1 weights, per-tap
                full_spec((3, 9, C, C)),       # conv2 / res.conv1 / res.conv2
                full_spec((C_lat, C)),         # gate-scaled mu weights
                full_spec((C_lat, 1)),         # gate-scaled mu bias
            ],
            out_specs=pl.BlockSpec((pl.Squeezed(), C_lat, HW),
                                   lambda n: (n, 0, 0)),
        ),
        # At production C / H*W, set vmem_limit_bytes explicitly and cast
        # matmul operands to bf16 (f32 kept here for the 1e-4/1e-6 check).
        compiler_params=pltpu.CompilerParams(
            dimension_semantics=("parallel",)),
        cost_estimate=pl.CostEstimate(flops=flops,
                                      transcendentals=transcendentals,
                                      bytes_accessed=bytes_accessed),
    )(x, w1p, wcat, wmu, bmu)

    mu = mu_flat.reshape(N, C_lat, H, W)
    std = jnp.broadcast_to(params["std"].astype(mu.dtype), mu.shape)
    return mu, std


# ---------------- pure-JAX reference (PyTorch semantics, NCHW) ----------------
def _ref_forward(z_t, z_tp1, p):
    x = jnp.concatenate([z_t, z_tp1], axis=1)

    def conv3(x, w, b):
        y = lax.conv_general_dilated(
            x, w, window_strides=(1, 1), padding=((1, 1), (1, 1)),
            dimension_numbers=("NCHW", "OIHW", "NCHW"))
        return y + b[None, :, None, None]

    def inorm(y):
        m = jnp.mean(y, axis=(2, 3), keepdims=True)
        v = jnp.mean((y - m) ** 2, axis=(2, 3), keepdims=True)
        return (y - m) * lax.rsqrt(v + EPS)

    h = jnp.maximum(inorm(conv3(x, p["w1"], p["b1"])), 0.0)
    h = jnp.maximum(inorm(conv3(h, p["w2"], p["b2"])), 0.0)
    r = jnp.maximum(inorm(conv3(h, p["rw1"], p["rb1"])), 0.0)
    r = inorm(conv3(r, p["rw2"], p["rb2"]))
    h = jnp.maximum(r + h, 0.0)
    raw_mu = lax.conv_general_dilated(
        h, p["wmu"], window_strides=(1, 1), padding="VALID",
        dimension_numbers=("NCHW", "OIHW", "NCHW")) + p["bmu"][None, :, None, None]
    gate = jax.nn.sigmoid(p["gate_param"])
    mu = (1.0 - gate) * raw_mu
    std = jnp.broadcast_to(p["std"], mu.shape)
    return mu, std


if __name__ == "__main__":
    N, C_lat, H, W = 2, 4, 16, 16
    base_ch = 16
    in_ch = 2 * C_lat

    key = jax.random.PRNGKey(0)
    ks = jax.random.split(key, 12)
    z_t = jax.random.normal(ks[0], (N, C_lat, H, W), dtype=jnp.float32)
    z_tp1 = jax.random.normal(ks[1], (N, C_lat, H, W), dtype=jnp.float32)

    def rnd(k, shape, scale=0.1):
        return scale * jax.random.normal(k, shape, dtype=jnp.float32)

    params = {
        "w1": rnd(ks[2], (base_ch, in_ch, 3, 3)),
        "b1": rnd(ks[3], (base_ch,)),
        "w2": rnd(ks[4], (base_ch, base_ch, 3, 3)),
        "b2": rnd(ks[5], (base_ch,)),
        "rw1": rnd(ks[6], (base_ch, base_ch, 3, 3)),
        "rb1": rnd(ks[7], (base_ch,)),
        "rw2": rnd(ks[8], (base_ch, base_ch, 3, 3)),
        "rb2": rnd(ks[9], (base_ch,)),
        "wmu": rnd(ks[10], (C_lat, base_ch, 1, 1), scale=0.01),
        "bmu": jnp.zeros((C_lat,), jnp.float32),
        "gate_param": jnp.full((1,), 5.0, jnp.float32),
        "std": jnp.full((1,), 0.1, jnp.float32),
    }

    mu, std = latent_policy_pallas(z_t, z_tp1, params)
    mu = jax.block_until_ready(mu)
    std = jax.block_until_ready(std)

    mu_ref, std_ref = _ref_forward(z_t, z_tp1, params)
    assert mu.shape == mu_ref.shape and mu.dtype == mu_ref.dtype
    assert std.shape == std_ref.shape
    assert jnp.allclose(mu, mu_ref, rtol=1e-4, atol=1e-6), "mu mismatch vs reference"
    assert jnp.allclose(std, std_ref, rtol=1e-6, atol=1e-7), "std mismatch vs reference"

    # TODO(synk): LatentPolicy.sample (Normal rsample / log_prob) is host-side
    # stochastic post-processing and is intentionally not implemented in-kernel.
    print("KERNEL_OK")
</pallas_src>

<mosaic_0001>
module attributes {stable_mosaic.version = 11 : i64} {
  func.func @_latent_policy_kernel(%arg0: i32, %arg1: memref<1x8x256xf32, #tpu.memory_space<vmem>>, %arg2: memref<9x16x8xf32, #tpu.memory_space<vmem>>, %arg3: memref<3x9x16x16xf32, #tpu.memory_space<vmem>>, %arg4: memref<4x16xf32, #tpu.memory_space<vmem>>, %arg5: memref<4x1xf32, #tpu.memory_space<vmem>>, %arg6: memref<1x4x256xf32, #tpu.memory_space<vmem>>) attributes {dimension_semantics = [#tpu.dimension_semantics<parallel>], iteration_bounds = array<i64: 2>, scalar_prefetch = 0 : i64, scratch_operands = 0 : i64, tpu.core_type = #tpu.core_type<tc>, window_params = [{transform_indices = @transform_0, window_bounds = array<i64: 1, 8, 256>}, {pipeline_mode = #tpu.pipeline_mode<synchronous>, transform_indices = @transform_1, window_bounds = array<i64: 9, 16, 8>}, {pipeline_mode = #tpu.pipeline_mode<synchronous>, transform_indices = @transform_2, window_bounds = array<i64: 3, 9, 16, 16>}, {pipeline_mode = #tpu.pipeline_mode<synchronous>, transform_indices = @transform_3, window_bounds = array<i64: 4, 16>}, {pipeline_mode = #tpu.pipeline_mode<synchronous>, transform_indices = @transform_4, window_bounds = array<i64: 4, 1>}, {transform_indices = @transform_5, window_bounds = array<i64: 1, 4, 256>}]} {
    %c0 = arith.constant 0 : index
    %c0_0 = arith.constant 0 : index
    %c0_1 = arith.constant 0 : index
    %0 = vector.load %arg1[%c0, %c0_0, %c0_1] : memref<1x8x256xf32, #tpu.memory_space<vmem>>, vector<1x8x256xf32>
    %1 = vector.shape_cast %0 : vector<1x8x256xf32> to vector<8x256xf32>
    %2 = tpu.iota {dimensions = array<i32: 1>} : vector<1x256xi32>
    %c15_i32 = arith.constant 15 : i32
    %3 = vector.broadcast %c15_i32 : i32 to vector<1x256xi32>
    %4 = arith.andi %2, %3 : vector<1x256xi32>
    %c16_i32 = arith.constant 16 : i32
    %5 = vector.broadcast %c16_i32 : i32 to vector<1x256xi32>
    %6 = arith.cmpi sge, %2, %5 : vector<1x256xi32>
    %c240_i32 = arith.constant 240 : i32
    %7 = vector.broadcast %c240_i32 : i32 to vector<1x256xi32>
    %8 = arith.cmpi slt, %2, %7 : vector<1x256xi32>
    %c0_i32 = arith.constant 0 : i32
    %9 = vector.broadcast %c0_i32 : i32 to vector<1x256xi32>
    %10 = arith.cmpi ne, %4, %9 : vector<1x256xi32>
    %c15_i32_2 = arith.constant 15 : i32
    %11 = vector.broadcast %c15_i32_2 : i32 to vector<1x256xi32>
    %12 = arith.cmpi ne, %4, %11 : vector<1x256xi32>
    %13 = arith.andi %6, %10 : vector<1x256xi1>
    %cst = arith.constant 1.000000e+00 : f32
    %cst_3 = arith.constant 0.000000e+00 : f32
    %14 = vector.broadcast %cst : f32 to vector<1x256xf32>
    %15 = vector.broadcast %cst_3 : f32 to vector<1x256xf32>
    %16 = arith.select %13, %14, %15 : vector<1x256xi1>, vector<1x256xf32>
    %cst_4 = arith.constant 1.000000e+00 : f32
    %cst_5 = arith.constant 0.000000e+00 : f32
    %17 = vector.broadcast %cst_4 : f32 to vector<1x256xf32>
    %18 = vector.broadcast %cst_5 : f32 to vector<1x256xf32>
    %19 = arith.select %6, %17, %18 : vector<1x256xi1>, vector<1x256xf32>
    %20 = arith.andi %6, %12 : vector<1x256xi1>
    %cst_6 = arith.constant 1.000000e+00 : f32
    %cst_7 = arith.constant 0.000000e+00 : f32
    %21 = vector.broadcast %cst_6 : f32 to vector<1x256xf32>
    %22 = vector.broadcast %cst_7 : f32 to vector<1x256xf32>
    %23 = arith.select %20, %21, %22 : vector<1x256xi1>, vector<1x256xf32>
    %cst_8 = arith.constant 1.000000e+00 : f32
    %cst_9 = arith.constant 0.000000e+00 : f32
    %24 = vector.broadcast %cst_8 : f32 to vector<1x256xf32>
    %25 = vector.broadcast %cst_9 : f32 to vector<1x256xf32>
    %26 = arith.select %10, %24, %25 : vector<1x256xi1>, vector<1x256xf32>
    %cst_10 = arith.constant 1.000000e+00 : f32
    %cst_11 = arith.constant 0.000000e+00 : f32
    %27 = vector.broadcast %cst_10 : f32 to vector<1x256xf32>
    %28 = vector.broadcast %cst_11 : f32 to vector<1x256xf32>
    %29 = arith.select %12, %27, %28 : vector<1x256xi1>, vector<1x256xf32>
    %30 = arith.andi %8, %10 : vector<1x256xi1>
    %cst_12 = arith.constant 1.000000e+00 : f32
    %cst_13 = arith.constant 0.000000e+00 : f32
    %31 = vector.broadcast %cst_12 : f32 to vector<1x256xf32>
    %32 = vector.broadcast %cst_13 : f32 to vector<1x256xf32>
    %33 = arith.select %30, %31, %32 : vector<1x256xi1>, vector<1x256xf32>
    %cst_14 = arith.constant 1.000000e+00 : f32
    %cst_15 = arith.constant 0.000000e+00 : f32
    %34 = vector.broadcast %cst_14 : f32 to vector<1x256xf32>
    %35 = vector.broadcast %cst_15 : f32 to vector<1x256xf32>
    %36 = arith.select %8, %34, %35 : vector<1x256xi1>, vector<1x256xf32>
    %37 = arith.andi %8, %12 : vector<1x256xi1>
    %cst_16 = arith.constant 1.000000e+00 : f32
    %cst_17 = arith.constant 0.000000e+00 : f32
    %38 = vector.broadcast %cst_16 : f32 to vector<1x256xf32>
    %39 = vector.broadcast %cst_17 : f32 to vector<1x256xf32>
    %40 = arith.select %37, %38, %39 : vector<1x256xi1>, vector<1x256xf32>
    %c17_i32 = arith.constant 17 : i32
    %41 = tpu.dynamic_rotate %1 by %c17_i32 dim 1 : vector<8x256xf32>, i32 -> vector<8x256xf32>
    %42 = vector.broadcast %16 : vector<1x256xf32> to vector<8x256xf32>
    %43 = arith.mulf %41, %42 : vector<8x256xf32>
    %c0_18 = arith.constant 0 : index
    %c0_19 = arith.constant 0 : index
    %c0_20 = arith.constant 0 : index
    %44 = vector.load %arg2[%c0_18, %c0_19, %c0_20] : memref<9x16x8xf32, #tpu.memory_space<vmem>>, vector<1x16x8xf32>
    %45 = vector.shape_cast %44 : vector<1x16x8xf32> to vector<16x8xf32>
    %cst_21 = arith.constant dense<0.000000e+00> : vector<16x256xf32>
    %46 = tpu.matmul %45, %43, %cst_21 {dimension_numbers = #tpu.dot_dimension_numbers<[1], [0], [0], [1], [0, 0, 1, 1], [], []>} : vector<16x8xf32>, vector<8x256xf32>, vector<16x256xf32> -> vector<16x256xf32>
    %c16_i32_22 = arith.constant 16 : i32
    %47 = tpu.dynamic_rotate %1 by %c16_i32_22 dim 1 : vector<8x256xf32>, i32 -> vector<8x256xf32>
    %48 = vector.broadcast %19 : vector<1x256xf32> to vector<8x256xf32>
    %49 = arith.mulf %47, %48 : vector<8x256xf32>
    %c1 = arith.constant 1 : index
    %c0_23 = arith.constant 0 : index
    %c0_24 = arith.constant 0 : index
    %50 = vector.load %arg2[%c1, %c0_23, %c0_24] : memref<9x16x8xf32, #tpu.memory_space<vmem>>, vector<1x16x8xf32>
    %51 = vector.shape_cast %50 : vector<1x16x8xf32> to vector<16x8xf32>
    %cst_25 = arith.constant dense<0.000000e+00> : vector<16x256xf32>
    %52 = tpu.matmul %51, %49, %cst_25 {dimension_numbers = #tpu.dot_dimension_numbers<[1], [0], [0], [1], [0, 0, 1, 1], [], []>} : vector<16x8xf32>, vector<8x256xf32>, vector<16x256xf32> -> vector<16x256xf32>
    %53 = arith.addf %46, %52 : vector<16x256xf32>
    %c15_i32_26 = arith.constant 15 : i32
    %54 = tpu.dynamic_rotate %1 by %c15_i32_26 dim 1 : vector<8x256xf32>, i32 -> vector<8x256xf32>
    %55 = vector.broadcast %23 : vector<1x256xf32> to vector<8x256xf32>
    %56 = arith.mulf %54, %55 : vector<8x256xf32>
    %c2 = arith.constant 2 : index
    %c0_27 = arith.constant 0 : index
    %c0_28 = arith.constant 0 : index
    %57 = vector.load %arg2[%c2, %c0_27, %c0_28] : memref<9x16x8xf32, #tpu.memory_space<vmem>>, vector<1x16x8xf32>
    %58 = vector.shape_cast %57 : vector<1x16x8xf32> to vector<16x8xf32>
    %cst_29 = arith.constant dense<0.000000e+00> : vector<16x256xf32>
    %59 = tpu.matmul %58, %56, %cst_29 {dimension_numbers = #tpu.dot_dimension_numbers<[1], [0], [0], [1], [0, 0, 1, 1], [], []>} : vector<16x8xf32>, vector<8x256xf32>, vector<16x256xf32> -> vector<16x256xf32>
    %60 = arith.addf %53, %59 : vector<16x256xf32>
    %c1_i32 = arith.constant 1 : i32
    %61 = tpu.dynamic_rotate %1 by %c1_i32 dim 1 : vector<8x256xf32>, i32 -> vector<8x256xf32>
    %62 = vector.broadcast %26 : vector<1x256xf32> to vector<8x256xf32>
    %63 = arith.mulf %61, %62 : vector<8x256xf32>
    %c3 = arith.constant 3 : index
    %c0_30 = arith.constant 0 : index
    %c0_31 = arith.constant 0 : index
    %64 = vector.load %arg2[%c3, %c0_30, %c0_31] : memref<9x16x8xf32, #tpu.memory_space<vmem>>, vector<1x16x8xf32>
    %65 = vector.shape_cast %64 : vector<1x16x8xf32> to vector<16x8xf32>
    %cst_32 = arith.constant dense<0.000000e+00> : vector<16x256xf32>
    %66 = tpu.matmul %65, %63, %cst_32 {dimension_numbers = #tpu.dot_dimension_numbers<[1], [0], [0], [1], [0, 0, 1, 1], [], []>} : vector<16x8xf32>, vector<8x256xf32>, vector<16x256xf32> -> vector<16x256xf32>
    %67 = arith.addf %60, %66 : vector<16x256xf32>
    %c4 = arith.constant 4 : index
    %c0_33 = arith.constant 0 : index
    %c0_34 = arith.constant 0 : index
    %68 = vector.load %arg2[%c4, %c0_33, %c0_34] : memref<9x16x8xf32, #tpu.memory_space<vmem>>, vector<1x16x8xf32>
    %69 = vector.shape_cast %68 : vector<1x16x8xf32> to vector<16x8xf32>
    %cst_35 = arith.constant dense<0.000000e+00> : vector<16x256xf32>
    %70 = tpu.matmul %69, %1, %cst_35 {dimension_numbers = #tpu.dot_dimension_numbers<[1], [0], [0], [1], [0, 0, 1, 1], [], []>} : vector<16x8xf32>, vector<8x256xf32>, vector<16x256xf32> -> vector<16x256xf32>
    %71 = arith.addf %67, %70 : vector<16x256xf32>
    %c255_i32 = arith.constant 255 : i32
    %72 = tpu.dynamic_rotate %1 by %c255_i32 dim 1 : vector<8x256xf32>, i32 -> vector<8x256xf32>
    %73 = vector.broadcast %29 : vector<1x256xf32> to vector<8x256xf32>
    %74 = arith.mulf %72, %73 : vector<8x256xf32>
    %c5 = arith.constant 5 : index
    %c0_36 = arith.constant 0 : index
    %c0_37 = arith.constant 0 : index
    %75 = vector.load %arg2[%c5, %c0_36, %c0_37] : memref<9x16x8xf32, #tpu.memory_space<vmem>>, vector<1x16x8xf32>
    %76 = vector.shape_cast %75 : vector<1x16x8xf32> to vector<16x8xf32>
    %cst_38 = arith.constant dense<0.000000e+00> : vector<16x256xf32>
    %77 = tpu.matmul %76, %74, %cst_38 {dimension_numbers = #tpu.dot_dimension_numbers<[1], [0], [0], [1], [0, 0, 1, 1], [], []>} : vector<16x8xf32>, vector<8x256xf32>, vector<16x256xf32> -> vector<16x256xf32>
    %78 = arith.addf %71, %77 : vector<16x256xf32>
    %c241_i32 = arith.constant 241 : i32
    %79 = tpu.dynamic_rotate %1 by %c241_i32 dim 1 : vector<8x256xf32>, i32 -> vector<8x256xf32>
    %80 = vector.broadcast %33 : vector<1x256xf32> to vector<8x256xf32>
    %81 = arith.mulf %79, %80 : vector<8x256xf32>
    %c6 = arith.constant 6 : index
    %c0_39 = arith.constant 0 : index
    %c0_40 = arith.constant 0 : index
    %82 = vector.load %arg2[%c6, %c0_39, %c0_40] : memref<9x16x8xf32, #tpu.memory_space<vmem>>, vector<1x16x8xf32>
    %83 = vector.shape_cast %82 : vector<1x16x8xf32> to vector<16x8xf32>
    %cst_41 = arith.constant dense<0.000000e+00> : vector<16x256xf32>
    %84 = tpu.matmul %83, %81, %cst_41 {dimension_numbers = #tpu.dot_dimension_numbers<[1], [0], [0], [1], [0, 0, 1, 1], [], []>} : vector<16x8xf32>, vector<8x256xf32>, vector<16x256xf32> -> vector<16x256xf32>
    %85 = arith.addf %78, %84 : vector<16x256xf32>
    %c240_i32_42 = arith.constant 240 : i32
    %86 = tpu.dynamic_rotate %1 by %c240_i32_42 dim 1 : vector<8x256xf32>, i32 -> vector<8x256xf32>
    %87 = vector.broadcast %36 : vector<1x256xf32> to vector<8x256xf32>
    %88 = arith.mulf %86, %87 : vector<8x256xf32>
    %c7 = arith.constant 7 : index
    %c0_43 = arith.constant 0 : index
    %c0_44 = arith.constant 0 : index
    %89 = vector.load %arg2[%c7, %c0_43, %c0_44] : memref<9x16x8xf32, #tpu.memory_space<vmem>>, vector<1x16x8xf32>
    %90 = vector.shape_cast %89 : vector<1x16x8xf32> to vector<16x8xf32>
    %cst_45 = arith.constant dense<0.000000e+00> : vector<16x256xf32>
    %91 = tpu.matmul %90, %88, %cst_45 {dimension_numbers = #tpu.dot_dimension_numbers<[1], [0], [0], [1], [0, 0, 1, 1], [], []>} : vector<16x8xf32>, vector<8x256xf32>, vector<16x256xf32> -> vector<16x256xf32>
    %92 = arith.addf %85, %91 : vector<16x256xf32>
    %c239_i32 = arith.constant 239 : i32
    %93 = tpu.dynamic_rotate %1 by %c239_i32 dim 1 : vector<8x256xf32>, i32 -> vector<8x256xf32>
    %94 = vector.broadcast %40 : vector<1x256xf32> to vector<8x256xf32>
    %95 = arith.mulf %93, %94 : vector<8x256xf32>
    %c8 = arith.constant 8 : index
    %c0_46 = arith.constant 0 : index
    %c0_47 = arith.constant 0 : index
    %96 = vector.load %arg2[%c8, %c0_46, %c0_47] : memref<9x16x8xf32, #tpu.memory_space<vmem>>, vector<1x16x8xf32>
    %97 = vector.shape_cast %96 : vector<1x16x8xf32> to vector<16x8xf32>
    %cst_48 = arith.constant dense<0.000000e+00> : vector<16x256xf32>
    %98 = tpu.matmul %97, %95, %cst_48 {dimension_numbers = #tpu.dot_dimension_numbers<[1], [0], [0], [1], [0, 0, 1, 1], [], []>} : vector<16x8xf32>, vector<8x256xf32>, vector<16x256xf32> -> vector<16x256xf32>
    %99 = arith.addf %92, %98 : vector<16x256xf32>
    %cst_49 = arith.constant dense<0.000000e+00> : vector<16xf32>
    %100 = vector.multi_reduction <add>, %99, %cst_49 [1] : vector<16x256xf32> to vector<16xf32>
    %101 = vector.shape_cast %100 : vector<16xf32> to vector<16x1xf32>
    %102 = arith.mulf %99, %99 : vector<16x256xf32>
    %cst_50 = arith.constant dense<0.000000e+00> : vector<16xf32>
    %103 = vector.multi_reduction <add>, %102, %cst_50 [1] : vector<16x256xf32> to vector<16xf32>
    %104 = vector.shape_cast %103 : vector<16xf32> to vector<16x1xf32>
    %cst_51 = arith.constant 3.906250e-03 : f32
    %105 = vector.broadcast %cst_51 : f32 to vector<16x1xf32>
    %106 = arith.mulf %101, %105 : vector<16x1xf32>
    %cst_52 = arith.constant 3.906250e-03 : f32
    %107 = vector.broadcast %cst_52 : f32 to vector<16x1xf32>
    %108 = arith.mulf %104, %107 : vector<16x1xf32>
    %109 = arith.mulf %106, %106 : vector<16x1xf32>
    %110 = arith.subf %108, %109 : vector<16x1xf32>
    %111 = vector.broadcast %106 : vector<16x1xf32> to vector<16x256xf32>
    %112 = arith.subf %99, %111 : vector<16x256xf32>
    %cst_53 = arith.constant 9.99999974E-6 : f32
    %113 = vector.broadcast %cst_53 : f32 to vector<16x1xf32>
    %114 = arith.addf %110, %113 : vector<16x1xf32>
    %115 = math.rsqrt %114 : vector<16x1xf32>
    %116 = vector.broadcast %115 : vector<16x1xf32> to vector<16x256xf32>
    %117 = arith.mulf %112, %116 : vector<16x256xf32>
    %cst_54 = arith.constant 0.000000e+00 : f32
    %118 = vector.broadcast %cst_54 : f32 to vector<16x256xf32>
    %119 = arith.maximumf %117, %118 : vector<16x256xf32>
    %c17_i32_55 = arith.constant 17 : i32
    %120 = tpu.dynamic_rotate %119 by %c17_i32_55 dim 1 : vector<16x256xf32>, i32 -> vector<16x256xf32>
    %121 = vector.broadcast %16 : vector<1x256xf32> to vector<16x256xf32>
    %122 = arith.mulf %120, %121 : vector<16x256xf32>
    %c0_56 = arith.constant 0 : index
    %c0_57 = arith.constant 0 : index
    %c0_58 = arith.constant 0 : index
    %c0_59 = arith.constant 0 : index
    %123 = vector.load %arg3[%c0_56, %c0_57, %c0_58, %c0_59] : memref<3x9x16x16xf32, #tpu.memory_space<vmem>>, vector<1x1x16x16xf32>
    %124 = vector.shape_cast %123 : vector<1x1x16x16xf32> to vector<16x16xf32>
    %cst_60 = arith.constant dense<0.000000e+00> : vector<16x256xf32>
    %125 = tpu.matmul %124, %122, %cst_60 {dimension_numbers = #tpu.dot_dimension_numbers<[1], [0], [0], [1], [0, 0, 1, 1], [], []>} : vector<16x16xf32>, vector<16x256xf32>, vector<16x256xf32> -> vector<16x256xf32>
    %c16_i32_61 = arith.constant 16 : i32
    %126 = tpu.dynamic_rotate %119 by %c16_i32_61 dim 1 : vector<16x256xf32>, i32 -> vector<16x256xf32>
    %127 = vector.broadcast %19 : vector<1x256xf32> to vector<16x256xf32>
    %128 = arith.mulf %126, %127 : vector<16x256xf32>
    %c0_62 = arith.constant 0 : index
    %c1_63 = arith.constant 1 : index
    %c0_64 = arith.constant 0 : index
    %c0_65 = arith.constant 0 : index
    %129 = vector.load %arg3[%c0_62, %c1_63, %c0_64, %c0_65] : memref<3x9x16x16xf32, #tpu.memory_space<vmem>>, vector<1x1x16x16xf32>
    %130 = vector.shape_cast %129 : vector<1x1x16x16xf32> to vector<16x16xf32>
    %cst_66 = arith.constant dense<0.000000e+00> : vector<16x256xf32>
    %131 = tpu.matmul %130, %128, %cst_66 {dimension_numbers = #tpu.dot_dimension_numbers<[1], [0], [0], [1], [0, 0, 1, 1], [], []>} : vector<16x16xf32>, vector<16x256xf32>, vector<16x256xf32> -> vector<16x256xf32>
    %132 = arith.addf %125, %131 : vector<16x256xf32>
    %c15_i32_67 = arith.constant 15 : i32
    %133 = tpu.dynamic_rotate %119 by %c15_i32_67 dim 1 : vector<16x256xf32>, i32 -> vector<16x256xf32>
    %134 = vector.broadcast %23 : vector<1x256xf32> to vector<16x256xf32>
    %135 = arith.mulf %133, %134 : vector<16x256xf32>
    %c0_68 = arith.constant 0 : index
    %c2_69 = arith.constant 2 : index
    %c0_70 = arith.constant 0 : index
    %c0_71 = arith.constant 0 : index
    %136 = vector.load %arg3[%c0_68, %c2_69, %c0_70, %c0_71] : memref<3x9x16x16xf32, #tpu.memory_space<vmem>>, vector<1x1x16x16xf32>
    %137 = vector.shape_cast %136 : vector<1x1x16x16xf32> to vector<16x16xf32>
    %cst_72 = arith.constant dense<0.000000e+00> : vector<16x256xf32>
    %138 = tpu.matmul %137, %135, %cst_72 {dimension_numbers = #tpu.dot_dimension_numbers<[1], [0], [0], [1], [0, 0, 1, 1], [], []>} : vector<16x16xf32>, vector<16x256xf32>, vector<16x256xf32> -> vector<16x256xf32>
    %139 = arith.addf %132, %138 : vector<16x256xf32>
    %c1_i32_73 = arith.constant 1 : i32
    %140 = tpu.dynamic_rotate %119 by %c1_i32_73 dim 1 : vector<16x256xf32>, i32 -> vector<16x256xf32>
    %141 = vector.broadcast %26 : vector<1x256xf32> to vector<16x256xf32>
    %142 = arith.mulf %140, %141 : vector<16x256xf32>
    %c0_74 = arith.constant 0 : index
    %c3_75 = arith.constant 3 : index
    %c0_76 = arith.constant 0 : index
    %c0_77 = arith.constant 0 : index
    %143 = vector.load %arg3[%c0_74, %c3_75, %c0_76, %c0_77] : memref<3x9x16x16xf32, #tpu.memory_space<vmem>>, vector<1x1x16x16xf32>
    %144 = vector.shape_cast %143 : vector<1x1x16x16xf32> to vector<16x16xf32>
    %cst_78 = arith.constant dense<0.000000e+00> : vector<16x256xf32>
    %145 = tpu.matmul %144, %142, %cst_78 {dimension_numbers = #tpu.dot_dimension_numbers<[1], [0], [0], [1], [0, 0, 1, 1], [], []>} : vector<16x16xf32>, vector<16x256xf32>, vector<16x256xf32> -> vector<16x256xf32>
    %146 = arith.addf %139, %145 : vector<16x256xf32>
    %c0_79 = arith.constant 0 : index
    %c4_80 = arith.constant 4 : index
    %c0_81 = arith.constant 0 : index
    %c0_82 = arith.constant 0 : index
    %147 = vector.load %arg3[%c0_79, %c4_80, %c0_81, %c0_82] : memref<3x9x16x16xf32, #tpu.memory_space<vmem>>, vector<1x1x16x16xf32>
    %148 = vector.shape_cast %147 : vector<1x1x16x16xf32> to vector<16x16xf32>
    %cst_83 = arith.constant dense<0.000000e+00> : vector<16x256xf32>
    %149 = tpu.matmul %148, %119, %cst_83 {dimension_numbers = #tpu.dot_dimension_numbers<[1], [0], [0], [1], [0, 0, 1, 1], [], []>} : vector<16x16xf32>, vector<16x256xf32>, vector<16x256xf32> -> vector<16x256xf32>
    %150 = arith.addf %146, %149 : vector<16x256xf32>
    %c255_i32_84 = arith.constant 255 : i32
    %151 = tpu.dynamic_rotate %119 by %c255_i32_84 dim 1 : vector<16x256xf32>, i32 -> vector<16x256xf32>
    %152 = vector.broadcast %29 : vector<1x256xf32> to vector<16x256xf32>
    %153 = arith.mulf %151, %152 : vector<16x256xf32>
    %c0_85 = arith.constant 0 : index
    %c5_86 = arith.constant 5 : index
    %c0_87 = arith.constant 0 : index
    %c0_88 = arith.constant 0 : index
    %154 = vector.load %arg3[%c0_85, %c5_86, %c0_87, %c0_88] : memref<3x9x16x16xf32, #tpu.memory_space<vmem>>, vector<1x1x16x16xf32>
    %155 = vector.shape_cast %154 : vector<1x1x16x16xf32> to vector<16x16xf32>
    %cst_89 = arith.constant dense<0.000000e+00> : vector<16x256xf32>
    %156 = tpu.matmul %155, %153, %cst_89 {dimension_numbers = #tpu.dot_dimension_numbers<[1], [0], [0], [1], [0, 0, 1, 1], [], []>} : vector<16x16xf32>, vector<16x256xf32>, vector<16x256xf32> -> vector<16x256xf32>
    %157 = arith.addf %150, %156 : vector<16x256xf32>
    %c241_i32_90 = arith.constant 241 : i32
    %158 = tpu.dynamic_rotate %119 by %c241_i32_90 dim 1 : vector<16x256xf32>, i32 -> vector<16x256xf32>
    %159 = vector.broadcast %33 : vector<1x256xf32> to vector<16x256xf32>
    %160 = arith.mulf %158, %159 : vector<16x256xf32>
    %c0_91 = arith.constant 0 : index
    %c6_92 = arith.constant 6 : index
    %c0_93 = arith.constant 0 : index
    %c0_94 = arith.constant 0 : index
    %161 = vector.load %arg3[%c0_91, %c6_92, %c0_93, %c0_94] : memref<3x9x16x16xf32, #tpu.memory_space<vmem>>, vector<1x1x16x16xf32>
    %162 = vector.shape_cast %161 : vector<1x1x16x16xf32> to vector<16x16xf32>
    %cst_95 = arith.constant dense<0.000000e+00> : vector<16x256xf32>
    %163 = tpu.matmul %162, %160, %cst_95 {dimension_numbers = #tpu.dot_dimension_numbers<[1], [0], [0], [1], [0, 0, 1, 1], [], []>} : vector<16x16xf32>, vector<16x256xf32>, vector<16x256xf32> -> vector<16x256xf32>
    %164 = arith.addf %157, %163 : vector<16x256xf32>
    %c240_i32_96 = arith.constant 240 : i32
    %165 = tpu.dynamic_rotate %119 by %c240_i32_96 dim 1 : vector<16x256xf32>, i32 -> vector<16x256xf32>
    %166 = vector.broadcast %36 : vector<1x256xf32> to vector<16x256xf32>
    %167 = arith.mulf %165, %166 : vector<16x256xf32>
    %c0_97 = arith.constant 0 : index
    %c7_98 = arith.constant 7 : index
    %c0_99 = arith.constant 0 : index
    %c0_100 = arith.constant 0 : index
    %168 = vector.load %arg3[%c0_97, %c7_98, %c0_99, %c0_100] : memref<3x9x16x16xf32, #tpu.memory_space<vmem>>, vector<1x1x16x16xf32>
    %169 = vector.shape_cast %168 : vector<1x1x16x16xf32> to vector<16x16xf32>
    %cst_101 = arith.constant dense<0.000000e+00> : vector<16x256xf32>
    %170 = tpu.matmul %169, %167, %cst_101 {dimension_numbers = #tpu.dot_dimension_numbers<[1], [0], [0], [1], [0, 0, 1, 1], [], []>} : vector<16x16xf32>, vector<16x256xf32>, vector<16x256xf32> -> vector<16x256xf32>
    %171 = arith.addf %164, %170 : vector<16x256xf32>
    %c239_i32_102 = arith.constant 239 : i32
    %172 = tpu.dynamic_rotate %119 by %c239_i32_102 dim 1 : vector<16x256xf32>, i32 -> vector<16x256xf32>
    %173 = vector.broadcast %40 : vector<1x256xf32> to vector<16x256xf32>
    %174 = arith.mulf %172, %173 : vector<16x256xf32>
    %c0_103 = arith.constant 0 : index
    %c8_104 = arith.constant 8 : index
    %c0_105 = arith.constant 0 : index
    %c0_106 = arith.constant 0 : index
    %175 = vector.load %arg3[%c0_103, %c8_104, %c0_105, %c0_106] : memref<3x9x16x16xf32, #tpu.memory_space<vmem>>, vector<1x1x16x16xf32>
    %176 = vector.shape_cast %175 : vector<1x1x16x16xf32> to vector<16x16xf32>
    %cst_107 = arith.constant dense<0.000000e+00> : vector<16x256xf32>
    %177 = tpu.matmul %176, %174, %cst_107 {dimension_numbers = #tpu.dot_dimension_numbers<[1], [0], [0], [1], [0, 0, 1, 1], [], []>} : vector<16x16xf32>, vector<16x256xf32>, vector<16x256xf32> -> vector<16x256xf32>
    %178 = arith.addf %171, %177 : vector<16x256xf32>
    %cst_108 = arith.constant dense<0.000000e+00> : vector<16xf32>
    %179 = vector.multi_reduction <add>, %178, %cst_108 [1] : vector<16x256xf32> to vector<16xf32>
    %180 = vector.shape_cast %179 : vector<16xf32> to vector<16x1xf32>
    %181 = arith.mulf %178, %178 : vector<16x256xf32>
    %cst_109 = arith.constant dense<0.000000e+00> : vector<16xf32>
    %182 = vector.multi_reduction <add>, %181, %cst_109 [1] : vector<16x256xf32> to vector<16xf32>
    %183 = vector.shape_cast %182 : vector<16xf32> to vector<16x1xf32>
    %cst_110 = arith.constant 3.906250e-03 : f32
    %184 = vector.broadcast %cst_110 : f32 to vector<16x1xf32>
    %185 = arith.mulf %180, %184 : vector<16x1xf32>
    %cst_111 = arith.constant 3.906250e-03 : f32
    %186 = vector.broadcast %cst_111 : f32 to vector<16x1xf32>
    %187 = arith.mulf %183, %186 : vector<16x1xf32>
    %188 = arith.mulf %185, %185 : vector<16x1xf32>
    %189 = arith.subf %187, %188 : vector<16x1xf32>
    %190 = vector.broadcast %185 : vector<16x1xf32> to vector<16x256xf32>
    %191 = arith.subf %178, %190 : vector<16x256xf32>
    %cst_112 = arith.constant 9.99999974E-6 : f32
    %192 = vector.broadcast %cst_112 : f32 to vector<16x1xf32>
    %193 = arith.addf %189, %192 : vector<16x1xf32>
    %194 = math.rsqrt %193 : vector<16x1xf32>
    %195 = vector.broadcast %194 : vector<16x1xf32> to vector<16x256xf32>
    %196 = arith.mulf %191, %195 : vector<16x256xf32>
    %cst_113 = arith.constant 0.000000e+00 : f32
    %197 = vector.broadcast %cst_113 : f32 to vector<16x256xf32>
    %198 = arith.maximumf %196, %197 : vector<16x256xf32>
    %c17_i32_114 = arith.constant 17 : i32
    %199 = tpu.dynamic_rotate %198 by %c17_i32_114 dim 1 : vector<16x256xf32>, i32 -> vector<16x256xf32>
    %200 = vector.broadcast %16 : vector<1x256xf32> to vector<16x256xf32>
    %201 = arith.mulf %199, %200 : vector<16x256xf32>
    %c1_115 = arith.constant 1 : index
    %c0_116 = arith.constant 0 : index
    %c0_117 = arith.constant 0 : index
    %c0_118 = arith.constant 0 : index
    %202 = vector.load %arg3[%c1_115, %c0_116, %c0_117, %c0_118] : memref<3x9x16x16xf32, #tpu.memory_space<vmem>>, vector<1x1x16x16xf32>
    %203 = vector.shape_cast %202 : vector<1x1x16x16xf32> to vector<16x16xf32>
    %cst_119 = arith.constant dense<0.000000e+00> : vector<16x256xf32>
    %204 = tpu.matmul %203, %201, %cst_119 {dimension_numbers = #tpu.dot_dimension_numbers<[1], [0], [0], [1], [0, 0, 1, 1], [], []>} : vector<16x16xf32>, vector<16x256xf32>, vector<16x256xf32> -> vector<16x256xf32>
    %c16_i32_120 = arith.constant 16 : i32
    %205 = tpu.dynamic_rotate %198 by %c16_i32_120 dim 1 : vector<16x256xf32>, i32 -> vector<16x256xf32>
    %206 = vector.broadcast %19 : vector<1x256xf32> to vector<16x256xf32>
    %207 = arith.mulf %205, %206 : vector<16x256xf32>
    %c1_121 = arith.constant 1 : index
    %c1_122 = arith.constant 1 : index
    %c0_123 = arith.constant 0 : index
    %c0_124 = arith.constant 0 : index
    %208 = vector.load %arg3[%c1_121, %c1_122, %c0_123, %c0_124] : memref<3x9x16x16xf32, #tpu.memory_space<vmem>>, vector<1x1x16x16xf32>
    %209 = vector.shape_cast %208 : vector<1x1x16x16xf32> to vector<16x16xf32>
    %cst_125 = arith.constant dense<0.000000e+00> : vector<16x256xf32>
    %210 = tpu.matmul %209, %207, %cst_125 {dimension_numbers = #tpu.dot_dimension_numbers<[1], [0], [0], [1], [0, 0, 1, 1], [], []>} : vector<16x16xf32>, vector<16x256xf32>, vector<16x256xf32> -> vector<16x256xf32>
    %211 = arith.addf %204, %210 : vector<16x256xf32>
    %c15_i32_126 = arith.constant 15 : i32
    %212 = tpu.dynamic_rotate %198 by %c15_i32_126 dim 1 : vector<16x256xf32>, i32 -> vector<16x256xf32>
    %213 = vector.broadcast %23 : vector<1x256xf32> to vector<16x256xf32>
    %214 = arith.mulf %212, %213 : vector<16x256xf32>
    %c1_127 = arith.constant 1 : index
    %c2_128 = arith.constant 2 : index
    %c0_129 = arith.constant 0 : index
    %c0_130 = arith.constant 0 : index
    %215 = vector.load %arg3[%c1_127, %c2_128, %c0_129, %c0_130] : memref<3x9x16x16xf32, #tpu.memory_space<vmem>>, vector<1x1x16x16xf32>
    %216 = vector.shape_cast %215 : vector<1x1x16x16xf32> to vector<16x16xf32>
    %cst_131 = arith.constant dense<0.000000e+00> : vector<16x256xf32>
    %217 = tpu.matmul %216, %214, %cst_131 {dimension_numbers = #tpu.dot_dimension_numbers<[1], [0], [0], [1], [0, 0, 1, 1], [], []>} : vector<16x16xf32>, vector<16x256xf32>, vector<16x256xf32> -> vector<16x256xf32>
    %218 = arith.addf %211, %217 : vector<16x256xf32>
    %c1_i32_132 = arith.constant 1 : i32
    %219 = tpu.dynamic_rotate %198 by %c1_i32_132 dim 1 : vector<16x256xf32>, i32 -> vector<16x256xf32>
    %220 = vector.broadcast %26 : vector<1x256xf32> to vector<16x256xf32>
    %221 = arith.mulf %219, %220 : vector<16x256xf32>
    %c1_133 = arith.constant 1 : index
    %c3_134 = arith.constant 3 : index
    %c0_135 = arith.constant 0 : index
    %c0_136 = arith.constant 0 : index
    %222 = vector.load %arg3[%c1_133, %c3_134, %c0_135, %c0_136] : memref<3x9x16x16xf32, #tpu.memory_space<vmem>>, vector<1x1x16x16xf32>
    %223 = vector.shape_cast %222 : vector<1x1x16x16xf32> to vector<16x16xf32>
    %cst_137 = arith.constant dense<0.000000e+00> : vector<16x256xf32>
    %224 = tpu.matmul %223, %221, %cst_137 {dimension_numbers = #tpu.dot_dimension_numbers<[1], [0], [0], [1], [0, 0, 1, 1], [], []>} : vector<16x16xf32>, vector<16x256xf32>, vector<16x256xf32> -> vector<16x256xf32>
    %225 = arith.addf %218, %224 : vector<16x256xf32>
    %c1_138 = arith.constant 1 : index
    %c4_139 = arith.constant 4 : index
    %c0_140 = arith.constant 0 : index
    %c0_141 = arith.constant 0 : index
    %226 = vector.load %arg3[%c1_138, %c4_139, %c0_140, %c0_141] : memref<3x9x16x16xf32, #tpu.memory_space<vmem>>, vector<1x1x16x16xf32>
    %227 = vector.shape_cast %226 : vector<1x1x16x16xf32> to vector<16x16xf32>
    %cst_142 = arith.constant dense<0.000000e+00> : vector<16x256xf32>
    %228 = tpu.matmul %227, %198, %cst_142 {dimension_numbers = #tpu.dot_dimension_numbers<[1], [0], [0], [1], [0, 0, 1, 1], [], []>} : vector<16x16xf32>, vector<16x256xf32>, vector<16x256xf32> -> vector<16x256xf32>
    %229 = arith.addf %225, %228 : vector<16x256xf32>
    %c255_i32_143 = arith.constant 255 : i32
    %230 = tpu.dynamic_rotate %198 by %c255_i32_143 dim 1 : vector<16x256xf32>, i32 -> vector<16x256xf32>
    %231 = vector.broadcast %29 : vector<1x256xf32> to vector<16x256xf32>
    %232 = arith.mulf %230, %231 : vector<16x256xf32>
    %c1_144 = arith.constant 1 : index
    %c5_145 = arith.constant 5 : index
    %c0_146 = arith.constant 0 : index
    %c0_147 = arith.constant 0 : index
    %233 = vector.load %arg3[%c1_144, %c5_145, %c0_146, %c0_147] : memref<3x9x16x16xf32, #tpu.memory_space<vmem>>, vector<1x1x16x16xf32>
    %234 = vector.shape_cast %233 : vector<1x1x16x16xf32> to vector<16x16xf32>
    %cst_148 = arith.constant dense<0.000000e+00> : vector<16x256xf32>
    %235 = tpu.matmul %234, %232, %cst_148 {dimension_numbers = #tpu.dot_dimension_numbers<[1], [0], [0], [1], [0, 0, 1, 1], [], []>} : vector<16x16xf32>, vector<16x256xf32>, vector<16x256xf32> -> vector<16x256xf32>
    %236 = arith.addf %229, %235 : vector<16x256xf32>
    %c241_i32_149 = arith.constant 241 : i32
    %237 = tpu.dynamic_rotate %198 by %c241_i32_149 dim 1 : vector<16x256xf32>, i32 -> vector<16x256xf32>
    %238 = vector.broadcast %33 : vector<1x256xf32> to vector<16x256xf32>
    %239 = arith.mulf %237, %238 : vector<16x256xf32>
    %c1_150 = arith.constant 1 : index
    %c6_151 = arith.constant 6 : index
    %c0_152 = arith.constant 0 : index
    %c0_153 = arith.constant 0 : index
    %240 = vector.load %arg3[%c1_150, %c6_151, %c0_152, %c0_153] : memref<3x9x16x16xf32, #tpu.memory_space<vmem>>, vector<1x1x16x16xf32>
    %241 = vector.shape_cast %240 : vector<1x1x16x16xf32> to vector<16x16xf32>
    %cst_154 = arith.constant dense<0.000000e+00> : vector<16x256xf32>
    %242 = tpu.matmul %241, %239, %cst_154 {dimension_numbers = #tpu.dot_dimension_numbers<[1], [0], [0], [1], [0, 0, 1, 1], [], []>} : vector<16x16xf32>, vector<16x256xf32>, vector<16x256xf32> -> vector<16x256xf32>
    %243 = arith.addf %236, %242 : vector<16x256xf32>
    %c240_i32_155 = arith.constant 240 : i32
    %244 = tpu.dynamic_rotate %198 by %c240_i32_155 dim 1 : vector<16x256xf32>, i32 -> vector<16x256xf32>
    %245 = vector.broadcast %36 : vector<1x256xf32> to vector<16x256xf32>
    %246 = arith.mulf %244, %245 : vector<16x256xf32>
    %c1_156 = arith.constant 1 : index
    %c7_157 = arith.constant 7 : index
    %c0_158 = arith.constant 0 : index
    %c0_159 = arith.constant 0 : index
    %247 = vector.load %arg3[%c1_156, %c7_157, %c0_158, %c0_159] : memref<3x9x16x16xf32, #tpu.memory_space<vmem>>, vector<1x1x16x16xf32>
    %248 = vector.shape_cast %247 : vector<1x1x16x16xf32> to vector<16x16xf32>
    %cst_160 = arith.constant dense<0.000000e+00> : vector<16x256xf32>
    %249 = tpu.matmul %248, %246, %cst_160 {dimension_numbers = #tpu.dot_dimension_numbers<[1], [0], [0], [1], [0, 0, 1, 1], [], []>} : vector<16x16xf32>, vector<16x256xf32>, vector<16x256xf32> -> vector<16x256xf32>
    %250 = arith.addf %243, %249 : vector<16x256xf32>
    %c239_i32_161 = arith.constant 239 : i32
    %251 = tpu.dynamic_rotate %198 by %c239_i32_161 dim 1 : vector<16x256xf32>, i32 -> vector<16x256xf32>
    %252 = vector.broadcast %40 : vector<1x256xf32> to vector<16x256xf32>
    %253 = arith.mulf %251, %252 : vector<16x256xf32>
    %c1_162 = arith.constant 1 : index
    %c8_163 = arith.constant 8 : index
    %c0_164 = arith.constant 0 : index
    %c0_165 = arith.constant 0 : index
    %254 = vector.load %arg3[%c1_162, %c8_163, %c0_164, %c0_165] : memref<3x9x16x16xf32, #tpu.memory_space<vmem>>, vector<1x1x16x16xf32>
    %255 = vector.shape_cast %254 : vector<1x1x16x16xf32> to vector<16x16xf32>
    %cst_166 = arith.constant dense<0.000000e+00> : vector<16x256xf32>
    %256 = tpu.matmul %255, %253, %cst_166 {dimension_numbers = #tpu.dot_dimension_numbers<[1], [0], [0], [1], [0, 0, 1, 1], [], []>} : vector<16x16xf32>, vector<16x256xf32>, vector<16x256xf32> -> vector<16x256xf32>
    %257 = arith.addf %250, %256 : vector<16x256xf32>
    %cst_167 = arith.constant dense<0.000000e+00> : vector<16xf32>
    %258 = vector.multi_reduction <add>, %257, %cst_167 [1] : vector<16x256xf32> to vector<16xf32>
    %259 = vector.shape_cast %258 : vector<16xf32> to vector<16x1xf32>
    %260 = arith.mulf %257, %257 : vector<16x256xf32>
    %cst_168 = arith.constant dense<0.000000e+00> : vector<16xf32>
    %261 = vector.multi_reduction <add>, %260, %cst_168 [1] : vector<16x256xf32> to vector<16xf32>
    %262 = vector.shape_cast %261 : vector<16xf32> to vector<16x1xf32>
    %cst_169 = arith.constant 3.906250e-03 : f32
    %263 = vector.broadcast %cst_169 : f32 to vector<16x1xf32>
    %264 = arith.mulf %259, %263 : vector<16x1xf32>
    %cst_170 = arith.constant 3.906250e-03 : f32
    %265 = vector.broadcast %cst_170 : f32 to vector<16x1xf32>
    %266 = arith.mulf %262, %265 : vector<16x1xf32>
    %267 = arith.mulf %264, %264 : vector<16x1xf32>
    %268 = arith.subf %266, %267 : vector<16x1xf32>
    %269 = vector.broadcast %264 : vector<16x1xf32> to vector<16x256xf32>
    %270 = arith.subf %257, %269 : vector<16x256xf32>
    %cst_171 = arith.constant 9.99999974E-6 : f32
    %271 = vector.broadcast %cst_171 : f32 to vector<16x1xf32>
    %272 = arith.addf %268, %271 : vector<16x1xf32>
    %273 = math.rsqrt %272 : vector<16x1xf32>
    %274 = vector.broadcast %273 : vector<16x1xf32> to vector<16x256xf32>
    %275 = arith.mulf %270, %274 : vector<16x256xf32>
    %cst_172 = arith.constant 0.000000e+00 : f32
    %276 = vector.broadcast %cst_172 : f32 to vector<16x256xf32>
    %277 = arith.maximumf %275, %276 : vector<16x256xf32>
    %c17_i32_173 = arith.constant 17 : i32
    %278 = tpu.dynamic_rotate %277 by %c17_i32_173 dim 1 : vector<16x256xf32>, i32 -> vector<16x256xf32>
    %279 = vector.broadcast %16 : vector<1x256xf32> to vector<16x256xf32>
    %280 = arith.mulf %278, %279 : vector<16x256xf32>
    %c2_174 = arith.constant 2 : index
    %c0_175 = arith.constant 0 : index
    %c0_176 = arith.constant 0 : index
    %c0_177 = arith.constant 0 : index
    %281 = vector.load %arg3[%c2_174, %c0_175, %c0_176, %c0_177] : memref<3x9x16x16xf32, #tpu.memory_space<vmem>>, vector<1x1x16x16xf32>
    %282 = vector.shape_cast %281 : vector<1x1x16x16xf32> to vector<16x16xf32>
    %cst_178 = arith.constant dense<0.000000e+00> : vector<16x256xf32>
    %283 = tpu.matmul %282, %280, %cst_178 {dimension_numbers = #tpu.dot_dimension_numbers<[1], [0], [0], [1], [0, 0, 1, 1], [], []>} : vector<16x16xf32>, vector<16x256xf32>, vector<16x256xf32> -> vector<16x256xf32>
    %c16_i32_179 = arith.constant 16 : i32
    %284 = tpu.dynamic_rotate %277 by %c16_i32_179 dim 1 : vector<16x256xf32>, i32 -> vector<16x256xf32>
    %285 = vector.broadcast %19 : vector<1x256xf32> to vector<16x256xf32>
    %286 = arith.mulf %284, %285 : vector<16x256xf32>
    %c2_180 = arith.constant 2 : index
    %c1_181 = arith.constant 1 : index
    %c0_182 = arith.constant 0 : index
    %c0_183 = arith.constant 0 : index
    %287 = vector.load %arg3[%c2_180, %c1_181, %c0_182, %c0_183] : memref<3x9x16x16xf32, #tpu.memory_space<vmem>>, vector<1x1x16x16xf32>
    %288 = vector.shape_cast %287 : vector<1x1x16x16xf32> to vector<16x16xf32>
    %cst_184 = arith.constant dense<0.000000e+00> : vector<16x256xf32>
    %289 = tpu.matmul %288, %286, %cst_184 {dimension_numbers = #tpu.dot_dimension_numbers<[1], [0], [0], [1], [0, 0, 1, 1], [], []>} : vector<16x16xf32>, vector<16x256xf32>, vector<16x256xf32> -> vector<16x256xf32>
    %290 = arith.addf %283, %289 : vector<16x256xf32>
    %c15_i32_185 = arith.constant 15 : i32
    %291 = tpu.dynamic_rotate %277 by %c15_i32_185 dim 1 : vector<16x256xf32>, i32 -> vector<16x256xf32>
    %292 = vector.broadcast %23 : vector<1x256xf32> to vector<16x256xf32>
    %293 = arith.mulf %291, %292 : vector<16x256xf32>
    %c2_186 = arith.constant 2 : index
    %c2_187 = arith.constant 2 : index
    %c0_188 = arith.constant 0 : index
    %c0_189 = arith.constant 0 : index
    %294 = vector.load %arg3[%c2_186, %c2_187, %c0_188, %c0_189] : memref<3x9x16x16xf32, #tpu.memory_space<vmem>>, vector<1x1x16x16xf32>
    %295 = vector.shape_cast %294 : vector<1x1x16x16xf32> to vector<16x16xf32>
    %cst_190 = arith.constant dense<0.000000e+00> : vector<16x256xf32>
    %296 = tpu.matmul %295, %293, %cst_190 {dimension_numbers = #tpu.dot_dimension_numbers<[1], [0], [0], [1], [0, 0, 1, 1], [], []>} : vector<16x16xf32>, vector<16x256xf32>, vector<16x256xf32> -> vector<16x256xf32>
    %297 = arith.addf %290, %296 : vector<16x256xf32>
    %c1_i32_191 = arith.constant 1 : i32
    %298 = tpu.dynamic_rotate %277 by %c1_i32_191 dim 1 : vector<16x256xf32>, i32 -> vector<16x256xf32>
    %299 = vector.broadcast %26 : vector<1x256xf32> to vector<16x256xf32>
    %300 = arith.mulf %298, %299 : vector<16x256xf32>
    %c2_192 = arith.constant 2 : index
    %c3_193 = arith.constant 3 : index
    %c0_194 = arith.constant 0 : index
    %c0_195 = arith.constant 0 : index
    %301 = vector.load %arg3[%c2_192, %c3_193, %c0_194, %c0_195] : memref<3x9x16x16xf32, #tpu.memory_space<vmem>>, vector<1x1x16x16xf32>
    %302 = vector.shape_cast %301 : vector<1x1x16x16xf32> to vector<16x16xf32>
    %cst_196 = arith.constant dense<0.000000e+00> : vector<16x256xf32>
    %303 = tpu.matmul %302, %300, %cst_196 {dimension_numbers = #tpu.dot_dimension_numbers<[1], [0], [0], [1], [0, 0, 1, 1], [], []>} : vector<16x16xf32>, vector<16x256xf32>, vector<16x256xf32> -> vector<16x256xf32>
    %304 = arith.addf %297, %303 : vector<16x256xf32>
    %c2_197 = arith.constant 2 : index
    %c4_198 = arith.constant 4 : index
    %c0_199 = arith.constant 0 : index
    %c0_200 = arith.constant 0 : index
    %305 = vector.load %arg3[%c2_197, %c4_198, %c0_199, %c0_200] : memref<3x9x16x16xf32, #tpu.memory_space<vmem>>, vector<1x1x16x16xf32>
    %306 = vector.shape_cast %305 : vector<1x1x16x16xf32> to vector<16x16xf32>
    %cst_201 = arith.constant dense<0.000000e+00> : vector<16x256xf32>
    %307 = tpu.matmul %306, %277, %cst_201 {dimension_numbers = #tpu.dot_dimension_numbers<[1], [0], [0], [1], [0, 0, 1, 1], [], []>} : vector<16x16xf32>, vector<16x256xf32>, vector<16x256xf32> -> vector<16x256xf32>
    %308 = arith.addf %304, %307 : vector<16x256xf32>
    %c255_i32_202 = arith.constant 255 : i32
    %309 = tpu.dynamic_rotate %277 by %c255_i32_202 dim 1 : vector<16x256xf32>, i32 -> vector<16x256xf32>
    %310 = vector.broadcast %29 : vector<1x256xf32> to vector<16x256xf32>
    %311 = arith.mulf %309, %310 : vector<16x256xf32>
    %c2_203 = arith.constant 2 : index
    %c5_204 = arith.constant 5 : index
    %c0_205 = arith.constant 0 : index
    %c0_206 = arith.constant 0 : index
    %312 = vector.load %arg3[%c2_203, %c5_204, %c0_205, %c0_206] : memref<3x9x16x16xf32, #tpu.memory_space<vmem>>, vector<1x1x16x16xf32>
    %313 = vector.shape_cast %312 : vector<1x1x16x16xf32> to vector<16x16xf32>
    %cst_207 = arith.constant dense<0.000000e+00> : vector<16x256xf32>
    %314 = tpu.matmul %313, %311, %cst_207 {dimension_numbers = #tpu.dot_dimension_numbers<[1], [0], [0], [1], [0, 0, 1, 1], [], []>} : vector<16x16xf32>, vector<16x256xf32>, vector<16x256xf32> -> vector<16x256xf32>
    %315 = arith.addf %308, %314 : vector<16x256xf32>
    %c241_i32_208 = arith.constant 241 : i32
    %316 = tpu.dynamic_rotate %277 by %c241_i32_208 dim 1 : vector<16x256xf32>, i32 -> vector<16x256xf32>
    %317 = vector.broadcast %33 : vector<1x256xf32> to vector<16x256xf32>
    %318 = arith.mulf %316, %317 : vector<16x256xf32>
    %c2_209 = arith.constant 2 : index
    %c6_210 = arith.constant 6 : index
    %c0_211 = arith.constant 0 : index
    %c0_212 = arith.constant 0 : index
    %319 = vector.load %arg3[%c2_209, %c6_210, %c0_211, %c0_212] : memref<3x9x16x16xf32, #tpu.memory_space<vmem>>, vector<1x1x16x16xf32>
    %320 = vector.shape_cast %319 : vector<1x1x16x16xf32> to vector<16x16xf32>
    %cst_213 = arith.constant dense<0.000000e+00> : vector<16x256xf32>
    %321 = tpu.matmul %320, %318, %cst_213 {dimension_numbers = #tpu.dot_dimension_numbers<[1], [0], [0], [1], [0, 0, 1, 1], [], []>} : vector<16x16xf32>, vector<16x256xf32>, vector<16x256xf32> -> vector<16x256xf32>
    %322 = arith.addf %315, %321 : vector<16x256xf32>
    %c240_i32_214 = arith.constant 240 : i32
    %323 = tpu.dynamic_rotate %277 by %c240_i32_214 dim 1 : vector<16x256xf32>, i32 -> vector<16x256xf32>
    %324 = vector.broadcast %36 : vector<1x256xf32> to vector<16x256xf32>
    %325 = arith.mulf %323, %324 : vector<16x256xf32>
    %c2_215 = arith.constant 2 : index
    %c7_216 = arith.constant 7 : index
    %c0_217 = arith.constant 0 : index
    %c0_218 = arith.constant 0 : index
    %326 = vector.load %arg3[%c2_215, %c7_216, %c0_217, %c0_218] : memref<3x9x16x16xf32, #tpu.memory_space<vmem>>, vector<1x1x16x16xf32>
    %327 = vector.shape_cast %326 : vector<1x1x16x16xf32> to vector<16x16xf32>
    %cst_219 = arith.constant dense<0.000000e+00> : vector<16x256xf32>
    %328 = tpu.matmul %327, %325, %cst_219 {dimension_numbers = #tpu.dot_dimension_numbers<[1], [0], [0], [1], [0, 0, 1, 1], [], []>} : vector<16x16xf32>, vector<16x256xf32>, vector<16x256xf32> -> vector<16x256xf32>
    %329 = arith.addf %322, %328 : vector<16x256xf32>
    %c239_i32_220 = arith.constant 239 : i32
    %330 = tpu.dynamic_rotate %277 by %c239_i32_220 dim 1 : vector<16x256xf32>, i32 -> vector<16x256xf32>
    %331 = vector.broadcast %40 : vector<1x256xf32> to vector<16x256xf32>
    %332 = arith.mulf %330, %331 : vector<16x256xf32>
    %c2_221 = arith.constant 2 : index
    %c8_222 = arith.constant 8 : index
    %c0_223 = arith.constant 0 : index
    %c0_224 = arith.constant 0 : index
    %333 = vector.load %arg3[%c2_221, %c8_222, %c0_223, %c0_224] : memref<3x9x16x16xf32, #tpu.memory_space<vmem>>, vector<1x1x16x16xf32>
    %334 = vector.shape_cast %333 : vector<1x1x16x16xf32> to vector<16x16xf32>
    %cst_225 = arith.constant dense<0.000000e+00> : vector<16x256xf32>
    %335 = tpu.matmul %334, %332, %cst_225 {dimension_numbers = #tpu.dot_dimension_numbers<[1], [0], [0], [1], [0, 0, 1, 1], [], []>} : vector<16x16xf32>, vector<16x256xf32>, vector<16x256xf32> -> vector<16x256xf32>
    %336 = arith.addf %329, %335 : vector<16x256xf32>
    %cst_226 = arith.constant dense<0.000000e+00> : vector<16xf32>
    %337 = vector.multi_reduction <add>, %336, %cst_226 [1] : vector<16x256xf32> to vector<16xf32>
    %338 = vector.shape_cast %337 : vector<16xf32> to vector<16x1xf32>
    %339 = arith.mulf %336, %336 : vector<16x256xf32>
    %cst_227 = arith.constant dense<0.000000e+00> : vector<16xf32>
    %340 = vector.multi_reduction <add>, %339, %cst_227 [1] : vector<16x256xf32> to vector<16xf32>
    %341 = vector.shape_cast %340 : vector<16xf32> to vector<16x1xf32>
    %cst_228 = arith.constant 3.906250e-03 : f32
    %342 = vector.broadcast %cst_228 : f32 to vector<16x1xf32>
    %343 = arith.mulf %338, %342 : vector<16x1xf32>
    %cst_229 = arith.constant 3.906250e-03 : f32
    %344 = vector.broadcast %cst_229 : f32 to vector<16x1xf32>
    %345 = arith.mulf %341, %344 : vector<16x1xf32>
    %346 = arith.mulf %343, %343 : vector<16x1xf32>
    %347 = arith.subf %345, %346 : vector<16x1xf32>
    %348 = vector.broadcast %343 : vector<16x1xf32> to vector<16x256xf32>
    %349 = arith.subf %336, %348 : vector<16x256xf32>
    %cst_230 = arith.constant 9.99999974E-6 : f32
    %350 = vector.broadcast %cst_230 : f32 to vector<16x1xf32>
    %351 = arith.addf %347, %350 : vector<16x1xf32>
    %352 = math.rsqrt %351 : vector<16x1xf32>
    %353 = vector.broadcast %352 : vector<16x1xf32> to vector<16x256xf32>
    %354 = arith.mulf %349, %353 : vector<16x256xf32>
    %355 = arith.addf %354, %198 : vector<16x256xf32>
    %cst_231 = arith.constant 0.000000e+00 : f32
    %356 = vector.broadcast %cst_231 : f32 to vector<16x256xf32>
    %357 = arith.maximumf %355, %356 : vector<16x256xf32>
    %c0_232 = arith.constant 0 : index
    %c0_233 = arith.constant 0 : index
    %358 = vector.load %arg4[%c0_232, %c0_233] : memref<4x16xf32, #tpu.memory_space<vmem>>, vector<4x16xf32>
    %cst_234 = arith.constant dense<0.000000e+00> : vector<4x256xf32>
    %359 = tpu.matmul %358, %357, %cst_234 {dimension_numbers = #tpu.dot_dimension_numbers<[1], [0], [0], [1], [0, 0, 1, 1], [], []>} : vector<4x16xf32>, vector<16x256xf32>, vector<4x256xf32> -> vector<4x256xf32>
    %c0_235 = arith.constant 0 : index
    %c0_236 = arith.constant 0 : index
    %360 = vector.load %arg5[%c0_235, %c0_236] : memref<4x1xf32, #tpu.memory_space<vmem>>, vector<4x1xf32>
    %361 = vector.broadcast %360 : vector<4x1xf32> to vector<4x256xf32>
    %362 = arith.addf %359, %361 : vector<4x256xf32>
    %c0_237 = arith.constant 0 : index
    %c0_238 = arith.constant 0 : index
    %c0_239 = arith.constant 0 : index
    %363 = vector.load %arg6[%c0_237, %c0_238, %c0_239] : memref<1x4x256xf32, #tpu.memory_space<vmem>>, vector<1x4x256xf32>
    %364 = vector.shape_cast %363 : vector<1x4x256xf32> to vector<4x256xf32>
    %365 = vector.shape_cast %362 : vector<4x256xf32> to vector<1x4x256xf32>
    tpu.vector_store %arg6[%c0_237, %c0_238, %c0_239], %365 {strides = array<i32>} : memref<1x4x256xf32, #tpu.memory_space<vmem>>, vector<1x4x256xf32>,
    return
  }
  func.func @transform_0(%arg0: i32) -> (i32, i32, i32) {
    %c0_i32 = arith.constant 0 : i32
    %c0_i32_0 = arith.constant 0 : i32
    %c0_i32_1 = arith.constant 0 : i32
    return %arg0, %c0_i32, %c0_i32_0 : i32, i32, i32
  }
  func.func @transform_1(%arg0: i32) -> (i32, i32, i32) {
    %c0_i32 = arith.constant 0 : i32
    %c0_i32_0 = arith.constant 0 : i32
    %c0_i32_1 = arith.constant 0 : i32
    %c0_i32_2 = arith.constant 0 : i32
    return %c0_i32, %c0_i32_0, %c0_i32_1 : i32, i32, i32
  }
  func.func @transform_2(%arg0: i32) -> (i32, i32, i32, i32) {
    %c0_i32 = arith.constant 0 : i32
    %c0_i32_0 = arith.constant 0 : i32
    %c0_i32_1 = arith.constant 0 : i32
    %c0_i32_2 = arith.constant 0 : i32
    %c0_i32_3 = arith.constant 0 : i32
    return %c0_i32, %c0_i32_0, %c0_i32_1, %c0_i32_2 : i32, i32, i32, i32
  }
  func.func @transform_3(%arg0: i32) -> (i32, i32) {
    %c0_i32 = arith.constant 0 : i32
    %c0_i32_0 = arith.constant 0 : i32
    %c0_i32_1 = arith.constant 0 : i32
    return %c0_i32, %c0_i32_0 : i32, i32
  }
  func.func @transform_4(%arg0: i32) -> (i32, i32) {
    %c0_i32 = arith.constant 0 : i32
    %c0_i32_0 = arith.constant 0 : i32
    %c0_i32_1 = arith.constant 0 : i32
    return %c0_i32, %c0_i32_0 : i32, i32
  }
  func.func @transform_5(%arg0: i32) -> (i32, i32, i32) {
    %c0_i32 = arith.constant 0 : i32
    %c0_i32_0 = arith.constant 0 : i32
    %c0_i32_1 = arith.constant 0 : i32
    return %arg0, %c0_i32, %c0_i32_0 : i32, i32, i32
  }
}

</mosaic_0001>

<llo_original>
// kernel: tpu_custom_call.1
$region0: #{tpu_custom_call.1}
  #allocation0 [shape = 'u32[]', space=smem, size = 0x4, offset = 0x4, fixed_abs, tag = 'smem constant byte address 0x4 - core index']
  #allocation1 [shape = 'u32[144,128]{1,0:T(1,128)}', space=vmem, size = 0x12000, scoped, tag = 'internal scratch']
  %s0 = inlined_call_operand.vmem [shape: f32[2,8,256], index: 0, kind: input, shape index: {}]
  %s1 = inlined_call_operand.vmem [shape: f32[9,16,8], index: 1, kind: input, shape index: {}]
  %s2 = inlined_call_operand.hbm [shape: f32[3,9,16,16], index: 2, kind: input, shape index: {}]
  %s3 = inlined_call_operand.vmem [shape: f32[4,16], index: 3, kind: input, shape index: {}]
  %s4 = inlined_call_operand.vmem [shape: f32[4,1], index: 4, kind: input, shape index: {}]
  %s5 = inlined_call_operand.hbm [shape: f32[2,4,256], index: 5, kind: output, shape index: {}]
  %s6 = sld [smem:[#allocation0]]
  $region57: #{tpu_custom_call.1} parent=0
    _
  %s8 = ssub.s32 1, %s6
  %s9 = scalar_select 0, %s8, %s6
  $region1: #{tpu_custom_call.1} parent=0
    #allocation2 [shape = 'u8[221184]{0}', space=vmem, size = 0x36000, scoped, tag = 'input window, operand 2, single buffered']
    #allocation3 [shape = 's32[2]{0}', space=sflag, size = 0x8, scoped, tag = 'scoped memory for tpu_custom_call.1']
    #allocation4 [shape = 's32[2]{0}', space=sflag, size = 0x8, scoped, tag = 'scoped memory for tpu_custom_call.1']
    #allocation5 [shape = 'u8[8192]{0}', space=vmem, size = 0x2000, scoped, tag = 'output window, operand 0']
    %10 = vsyncpa [#allocation3], 0
    %11 = vsyncpa [#allocation4], 0
    %s12 = scalar_lea.sflag [#allocation4], 1
    %13 = vsyncpa %s12, 0
    loop: start=0, step=1, limit=4
    $region2: #{tpu_custom_call.1} parent=1 // loop_pre_header
      _
    $region3: #{tpu_custom_call.1} parent=1 // loop_header
      %s15 = sphi 0, %s19
      %p16 = scmp.ge.s32.totalorder %s15, 4
      %s25 = sphi 0, %s27
      %s28 = sphi 0, %s25
      %s29 = sphi 0, %s28
      %s45 = sphi 0, %s29
      %s49 = sphi 0, %s49
      %s51 = sphi 0, %s49
      %s52 = sphi 0, %s51
      %s66 = sphi 0, %s52
      %s70 = sphi 0, %s70
      %s72 = sphi 0, %s70
      %s73 = sphi 0, %s72
      %s87 = sphi 0, %s73
      %s91 = sphi 0, %s91
      %s93 = sphi 0, %s91
      %s94 = sphi 0, %s93
      %s108 = sphi 0, %s94
      %s112 = sphi 0, %s112
      %s114 = sphi 0, %s112
      %s115 = sphi 0, %s114
      %s129 = sphi 0, %s115
      %s135 = sphi 0, %s137
      %s138 = sphi 0, %s135
      %s139 = sphi 0, %s138
      %s155 = sphi 0, %s139
    $region4: #{tpu_custom_call.1} parent=1 // loop_header_branch
      %18 = sbr.rel (%p16) target = $region8
    $region5: #{tpu_custom_call.1} parent=1 // loop_body
      %s20 = ssub.s32 %s15, 1
      %s21 = ssub.s32 %s15, 2
      %s22 = sadd.s32 %s15, 1
      %s23 = ssub.s32 %s15, %s22
      %p24 = scmp.eq.s32.totalorder %s23, 0
      %s26 = sadd.s32 %s25, 1
      %s27 = scalar_select %p24, %s25, %s26
      %p30 = pneg %p24
      %p31 = scmp.eq.s32.totalorder %s15, 1
      %p32 = por %p30, %p31
      %p33 = scmp.ne.s32.totalorder %s25, %s28
      %p34 = scmp.eq.s32.totalorder %s15, 0
      %p35 = por %p33, %p34
      %p36 = scmp.ne.s32.totalorder %s25, %s28
      %p37 = scmp.eq.s32.totalorder %s20, 1
      %p38 = por %p36, %p37
      %p39 = scmp.ne.s32.totalorder %s28, %s29
      %p40 = scmp.eq.s32.totalorder %s20, 0
      %p41 = por %p39, %p40
      %p42 = scmp.ne.s32.totalorder %s28, %s29
      %p43 = scmp.eq.s32.totalorder %s21, 1
      %p44 = por %p42, %p43
      %p46 = scmp.ne.s32.totalorder %s29, %s45
      %p47 = scmp.eq.s32.totalorder %s21, 0
      %p48 = por %p46, %p47
      %s50 = sadd.s32 %s49, 1
      %p53 = scmp.eq.s32.totalorder %s15, 1
      %p54 = scmp.ne.s32.totalorder %s49, %s51
      %p55 = scmp.eq.s32.totalorder %s15, 0
      %p56 = por %p54, %p55
      %p57 = scmp.ne.s32.totalorder %s49, %s51
      %p58 = scmp.eq.s32.totalorder %s20, 1
      %p59 = por %p57, %p58
      %p60 = scmp.ne.s32.totalorder %s51, %s52
      %p61 = scmp.eq.s32.totalorder %s20, 0
      %p62 = por %p60, %p61
      %p63 = scmp.ne.s32.totalorder %s51, %s52
      %p64 = scmp.eq.s32.totalorder %s21, 1
      %p65 = por %p63, %p64
      %p67 = scmp.ne.s32.totalorder %s52, %s66
      %p68 = scmp.eq.s32.totalorder %s21, 0
      %p69 = por %p67, %p68
      %s71 = sadd.s32 %s70, 1
      %p74 = scmp.eq.s32.totalorder %s15, 1
      %p75 = scmp.ne.s32.totalorder %s70, %s72
      %p76 = scmp.eq.s32.totalorder %s15, 0
      %p77 = por %p75, %p76
      %p78 = scmp.ne.s32.totalorder %s70, %s72
      %p79 = scmp.eq.s32.totalorder %s20, 1
      %p80 = por %p78, %p79
      %p81 = scmp.ne.s32.totalorder %s72, %s73
      %p82 = scmp.eq.s32.totalorder %s20, 0
      %p83 = por %p81, %p82
      %p84 = scmp.ne.s32.totalorder %s72, %s73
      %p85 = scmp.eq.s32.totalorder %s21, 1
      %p86 = por %p84, %p85
      %p88 = scmp.ne.s32.totalorder %s73, %s87
      %p89 = scmp.eq.s32.totalorder %s21, 0
      %p90 = por %p88, %p89
      %s92 = sadd.s32 %s91, 1
      %p95 = scmp.eq.s32.totalorder %s15, 1
      %p96 = scmp.ne.s32.totalorder %s91, %s93
      %p97 = scmp.eq.s32.totalorder %s15, 0
      %p98 = por %p96, %p97
      %p99 = scmp.ne.s32.totalorder %s91, %s93
      %p100 = scmp.eq.s32.totalorder %s20, 1
      %p101 = por %p99, %p100
      %p102 = scmp.ne.s32.totalorder %s93, %s94
      %p103 = scmp.eq.s32.totalorder %s20, 0
      %p104 = por %p102, %p103
      %p105 = scmp.ne.s32.totalorder %s93, %s94
      %p106 = scmp.eq.s32.totalorder %s21, 1
      %p107 = por %p105, %p106
      %p109 = scmp.ne.s32.totalorder %s94, %s108
      %p110 = scmp.eq.s32.totalorder %s21, 0
      %p111 = por %p109, %p110
      %s113 = sadd.s32 %s112, 1
      %p116 = scmp.eq.s32.totalorder %s15, 1
      %p117 = scmp.ne.s32.totalorder %s112, %s114
      %p118 = scmp.eq.s32.totalorder %s15, 0
      %p119 = por %p117, %p118
      %p120 = scmp.ne.s32.totalorder %s112, %s114
      %p121 = scmp.eq.s32.totalorder %s20, 1
      %p122 = por %p120, %p121
      %p123 = scmp.ne.s32.totalorder %s114, %s115
      %p124 = scmp.eq.s32.totalorder %s20, 0
      %p125 = por %p123, %p124
      %p126 = scmp.ne.s32.totalorder %s114, %s115
      %p127 = scmp.eq.s32.totalorder %s21, 1
      %p128 = por %p126, %p127
      %p130 = scmp.ne.s32.totalorder %s115, %s129
      %p131 = scmp.eq.s32.totalorder %s21, 0
      %p132 = por %p130, %p131
      %s133 = ssub.s32 %s15, %s22
      %p134 = scmp.eq.s32.totalorder %s133, 0
      %s136 = sadd.s32 %s135, 1
      %s137 = scalar_select %p134, %s135, %s136
      %p140 = pneg %p134
      %p141 = scmp.eq.s32.totalorder %s15, 1
      %p142 = por %p140, %p141
      %p143 = scmp.ne.s32.totalorder %s135, %s138
      %p144 = scmp.eq.s32.totalorder %s15, 0
      %p145 = por %p143, %p144
      %p146 = scmp.ne.s32.totalorder %s135, %s138
      %p147 = scmp.eq.s32.totalorder %s20, 1
      %p148 = por %p146, %p147
      %p149 = scmp.ne.s32.totalorder %s138, %s139
      %p150 = scmp.eq.s32.totalorder %s20, 0
      %p151 = por %p149, %p150
      %p152 = scmp.ne.s32.totalorder %s138, %s139
      %p153 = scmp.eq.s32.totalorder %s21, 1
      %p154 = por %p152, %p153
      %p156 = scmp.ne.s32.totalorder %s139, %s155
      %p157 = scmp.eq.s32.totalorder %s21, 0
      %p158 = por %p156, %p157
      %p159 = scmp.le.s32.totalorder 1, %s15
      %p160 = scmp.lt.s32.totalorder %s15, 3
      %p161 = pnand %p159, %p160
      %p162 = pneg %p161
      // Predicated region
      $region9: #{tpu_custom_call.1} parent=5 // pred_check
        _
      $region10: #{tpu_custom_call.1} parent=5 // pred_check_branch
        %164 = sbr.rel (%p161) target = $region12
      $region11: #{tpu_custom_call.1} parent=5 // pred_region
        %s165 = ssub.s32 %s15, 1
        // Predicated region
        $region13: #{tpu_custom_call.1} parent=11 // pred_check
          %p166 = pneg %p62
        $region14: #{tpu_custom_call.1} parent=11 // pred_check_branch
          %168 = sbr.rel (%p166) target = $region16
        $region15: #{tpu_custom_call.1} parent=11 // pred_region
          _
        $region16: #{tpu_custom_call.1} parent=11 // pred_fallthru
          _
        // Predicated region
        $region17: #{tpu_custom_call.1} parent=11 // pred_check
          %p169 = pneg %p83
        $region18: #{tpu_custom_call.1} parent=11 // pred_check_branch
          %171 = sbr.rel (%p169) target = $region20
        $region19: #{tpu_custom_call.1} parent=11 // pred_region
          %s173 = ssub.s32 6912, 6912
          %174 = vsyncadd [#allocation3], %s173
          %s175 = sshll.u32 [#allocation2], 4
          %s176 = int_to_ptr.vmem [resolvable:$true] %s175
          %181 = dma.hbm_to_vmem [thread:$0]  %s2, 6912, %s176, [#allocation3], 128, 128, 8
        $region20: #{tpu_custom_call.1} parent=11 // pred_fallthru
          _
        // Predicated region
        $region21: #{tpu_custom_call.1} parent=11 // pred_check
          %p182 = pneg %p104
        $region22: #{tpu_custom_call.1} parent=11 // pred_check_branch
          %184 = sbr.rel (%p182) target = $region24
        $region23: #{tpu_custom_call.1} parent=11 // pred_region
          _
        $region24: #{tpu_custom_call.1} parent=11 // pred_fallthru
          _
        // Predicated region
        $region25: #{tpu_custom_call.1} parent=11 // pred_check
          %p185 = pneg %p125
        $region26: #{tpu_custom_call.1} parent=11 // pred_check_branch
          %187 = sbr.rel (%p185) target = $region28
        $region27: #{tpu_custom_call.1} parent=11 // pred_region
          _
        $region28: #{tpu_custom_call.1} parent=11 // pred_fallthru
          _
      $region12: #{tpu_custom_call.1} parent=5 // pred_fallthru
        _
      %p188 = scmp.lt.s32.totalorder %s15, 2
      // Predicated region
      $region29: #{tpu_custom_call.1} parent=5 // pred_check
        %p189 = pneg %p188
      $region30: #{tpu_custom_call.1} parent=5 // pred_check_branch
        %191 = sbr.rel (%p189) target = $region32
      $region31: #{tpu_custom_call.1} parent=5 // pred_region
        // Predicated region
        $region33: #{tpu_custom_call.1} parent=31 // pred_check
          %p192 = pneg %p35
        $region34: #{tpu_custom_call.1} parent=31 // pred_check_branch
          %194 = sbr.rel (%p192) target = $region36
        $region35: #{tpu_custom_call.1} parent=31 // pred_region
          %p195 = scmp.lt.s32.totalorder %s15, 1
          %s196 = scalar_select %p195, %s15, 1
          %s197 = smul.addr %s196, 2
          %s198 = smul.addr %s197, 8
          %s199 = scalar_lea.vmem %s0, %s198
        $region36: #{tpu_custom_call.1} parent=31 // pred_fallthru
          _
      $region32: #{tpu_custom_call.1} parent=5 // pred_fallthru
        _
      %p200 = scmp.le.s32.totalorder 1, %s15
      %p201 = scmp.lt.s32.totalorder %s15, 3
      %p202 = pnand %p200, %p201
      %p203 = pneg %p202
      // Predicated region
      $region37: #{tpu_custom_call.1} parent=5 // pred_check
        _
      $region38: #{tpu_custom_call.1} parent=5 // pred_check_branch
        %205 = sbr.rel (%p202) target = $region40
      $region39: #{tpu_custom_call.1} parent=5 // pred_region
        %s206 = ssub.s32 %s15, 1
        // Predicated region
        $region41: #{tpu_custom_call.1} parent=39 // pred_check
          %p207 = pneg %p83
        $region42: #{tpu_custom_call.1} parent=39 // pred_check_branch
          %209 = sbr.rel (%p207) target = $region44
        $region43: #{tpu_custom_call.1} parent=39 // pred_region
          %210 = dma.done [#allocation3], 6912
        $region44: #{tpu_custom_call.1} parent=39 // pred_fallthru
          _
        %p211 = scmp.lt.s32.totalorder %s20, 1
        %s212 = scalar_select %p211, %s20, 1
        %s213 = smul.addr %s212, 2
        %s214 = smul.addr %s213, 8
        %s215 = scalar_lea.vmem %s0, %s214
        %p216 = pneg %p41
        %p217 = pneg %p38
        %p218 = pneg %p62
        %p219 = pneg %p59
        %p220 = pneg %p83
        %p221 = pneg %p80
        %p222 = pneg %p104
        %p223 = pneg %p101
        %p224 = pneg %p125
        %p225 = pneg %p122
        %p226 = pneg %p151
        %p227 = pneg %p148
        %s228 = sand.u32 %s138, 1
        %s229 = scalar_lea.sflag [#allocation4], %s228
        %s230 = sand.u32 %s138, 1
        %s231 = smul.addr %s230, 8
        %s232 = scalar_lea.vmem [#allocation5], %s231
        %p233 = scmp.lt.s32.totalorder %s20, 1
        %s234 = scalar_select %p233, %s20, 1
        %s235 = smul.addr %s234, 2
        %s236 = smul.addr %s235, 8
        %s237 = scalar_lea.vmem %s0, %s236
        %v238 = vld [vmem:[%s237] sm:$0xff]
        %v239 = vld [vmem:[%s237 + $0x8] sm:$0xff]
        %v240 = vlaneseq
        %v241 = vand.u32 %v240, 127
        %v242 = vadd.s32 %v241, 128
        %v243 = vand.u32 %v241, 15
        %v244 = vand.u32 %v242, 15
        %vm245 = vcmp.ge.s32.totalorder %v241, 16
        %vm246 = vcmp.ge.s32.totalorder %v242, 16
        %vm247 = vcmp.lt.s32.totalorder %v241, 240
        %vm248 = vcmp.lt.s32.totalorder %v242, 240
        %vm249 = vcmp.ne.s32.totalorder %v243, 0
        %vm250 = vcmp.ne.s32.totalorder %v244, 0
        %vm251 = vcmp.ne.s32.totalorder %v243, 15
        %vm252 = vcmp.ne.s32.totalorder %v244, 15
        %vm253 = vmand %vm245, %vm249
        %vm254 = vmand %vm246, %vm250
        %v255 = vsel %vm253, 1.0, 0.0
        %v256 = vsel %vm254, 1.0, 0.0
        %v257 = vsel %vm245, 1.0, 0.0
        %v258 = vsel %vm246, 1.0, 0.0
        %vm259 = vmand %vm245, %vm251
        %vm260 = vmand %vm246, %vm252
        %v261 = vsel %vm259, 1.0, 0.0
        %v262 = vsel %vm260, 1.0, 0.0
        %v263 = vsel %vm249, 1.0, 0.0
        %v264 = vsel %vm250, 1.0, 0.0
        %v265 = vsel %vm251, 1.0, 0.0
        %v266 = vsel %vm252, 1.0, 0.0
        %vm267 = vmand %vm247, %vm249
        %vm268 = vmand %vm248, %vm250
        %v269 = vsel %vm267, 1.0, 0.0
        %v270 = vsel %vm268, 1.0, 0.0
        %v271 = vsel %vm247, 1.0, 0.0
        %v272 = vsel %vm248, 1.0, 0.0
        %vm273 = vmand %vm247, %vm251
        %vm274 = vmand %vm248, %vm252
        %v275 = vsel %vm273, 1.0, 0.0
        %v276 = vsel %vm274, 1.0, 0.0
        %277 = vrot.lane.b32.xlu0 %v238, 17
        %v278 = vpop.permute.xlu0 %277
        %279 = vrot.lane.b32.xlu0 %v239, 17
        %v280 = vpop.permute.xlu0 %279
        %vm281 = vcmp.lt.s32.totalorder %v241, 17
        %v282 = vsel %vm281, %v278, %v280
        %v283 = vsel %vm281, %v280, %v278
        %v284 = vmul.f32 %v283, %v255
        %v285 = vmul.f32 %v282, %v256
        %v286 = vld [vmem:[%s1] sm:$0xff]
        %v287 = vld [vmem:[%s1 + $0x8] sm:$0xff]
        %288 = vrot.lane.b32.xlu0 %v238, 16
        %v289 = vpop.permute.xlu0 %288
        %290 = vrot.lane.b32.xlu0 %v239, 16
        %v291 = vpop.permute.xlu0 %290
        %vm292 = vcmp.lt.s32.totalorder %v241, 16
        %v293 = vsel %vm292, %v289, %v291
        %v294 = vsel %vm292, %v291, %v289
        %v295 = vmul.f32 %v294, %v257
        %v296 = vmul.f32 %v293, %v258
        %s297 = scalar_lea.vmem %s1, 16
        %v298 = vld [vmem:[%s297] sm:$0xff]
        %v299 = vld [vmem:[%s297 + $0x8] sm:$0xff]
        %vm300 = vcmask 64512
        %v302 = vsel %vm300, %v298, 0
        %v305 = vsel %vm300, %v299, 0
        %307 = vmatprep.subr.mxu0 %v296
        %308 = vmatpush1.msra.mxu0 %v295
        %309 = vmatprep.subr.mxu0 0.0
        %310 = vmatpush1.msra.mxu0 0.0
        %311 = vmatprep.subr.mxu0 0.0
        %312 = vmatpush1.msra.mxu0 0.0
        %313 = vmatprep.subr.mxu0 0.0
        %314 = vmatpush1.msra.mxu0 0.0
        %315 = vmatprep.subr.mxu0 0.0
        %316 = vmatpush1.msra.mxu0 0.0
        %317 = vmatprep.subr.mxu0 0.0
        %318 = vmatpush1.msra.mxu0 0.0
        %319 = vmatprep.subr.mxu0 0.0
        %320 = vmatpush1.msra.mxu0 0.0
        %321 = vmatprep.subr.mxu0 0.0
        %322 = vmatpush1.msra.mxu0 0.0
        %323 = vmatprep.subr.mxu0 0.0
        %324 = vmatpush1.msra.mxu0 0.0
        %325 = vmatprep.subr.mxu0 0.0
        %326 = vmatpush1.msra.mxu0 0.0
        %327 = vmatprep.subr.mxu0 0.0
        %328 = vmatpush1.msra.mxu0 0.0
        %329 = vmatprep.subr.mxu0 0.0
        %330 = vmatpush1.msra.mxu0 0.0
        %331 = vmatprep.subr.mxu0 0.0
        %332 = vmatpush1.msra.mxu0 0.0
        %333 = vmatprep.subr.mxu0 0.0
        %334 = vmatpush1.msra.mxu0 0.0
        %335 = vmatprep.subr.mxu0 0.0
        %336 = vmatpush1.msra.mxu0 0.0
        %337 = vmatprep.subr.mxu0 0.0
        %338 = vmatpush1.msra.mxu0 0.0
        %339 = vmatprep.subr.mxu0 0.0
        %340 = vmatpush1.msra.mxu0 0.0
        %341 = vmatprep.subr.mxu0 0.0
        %342 = vmatpush1.msra.mxu0 0.0
        %343 = vmatprep.subr.mxu0 0.0
        %344 = vmatpush1.msra.mxu0 0.0
        %345 = vmatprep.subr.mxu0 0.0
        %346 = vmatpush1.msra.mxu0 0.0
        %347 = vmatprep.subr.mxu0 0.0
        %348 = vmatpush1.msra.mxu0 0.0
        %349 = vmatprep.subr.mxu0 0.0
        %350 = vmatpush1.msra.mxu0 0.0
        %351 = vmatprep.subr.mxu0 0.0
        %352 = vmatpush1.msra.mxu0 0.0
        %353 = vmatprep.subr.mxu0 0.0
        %354 = vmatpush1.msra.mxu0 0.0
        %355 = vmatprep.subr.mxu0 0.0
        %356 = vmatpush1.msra.mxu0 0.0
        %357 = vmatprep.subr.mxu0 0.0
        %358 = vmatpush1.msra.mxu0 0.0
        %359 = vmatprep.subr.mxu0 0.0
        %360 = vmatpush1.msra.mxu0 0.0
        %361 = vmatprep.subr.mxu0 0.0
        %362 = vmatpush1.msra.mxu0 0.0
        %363 = vmatprep.subr.mxu0 0.0
        %364 = vmatpush1.msra.mxu0 0.0
        %365 = vmatprep.subr.mxu0 0.0
        %366 = vmatpush1.msra.mxu0 0.0
        %367 = vmatprep.subr.mxu0 0.0
        %368 = vmatpush1.msra.mxu0 0.0
        %369 = vmatprep.subr.mxu0 0.0
        %370 = vmatpush1.msra.mxu0 0.0
        %371 = vmatprep.mubr.f32.mxu0 0.0
        %372 = vmatmul.mubr.f32.gmra.mrb[0].mxu0 %v302
        %v373 = vpop.f32.mrb[0].mxu0
        %v374 = vadd.f32 0.0, %v373
        %v375 = vpop.f32.mrb[0].mxu0
        %v376 = vadd.f32 0.0, %v375
        %377 = vmatprep.mubr.f32.mxu0 0.0
        %378 = vmatmul.mubr.f32.gmra.mrb[0].mxu0 %v305
        %v379 = vpop.f32.mrb[0].mxu0
        %v380 = vadd.f32 0.0, %v379
        %v381 = vpop.f32.mrb[0].mxu0
        %v382 = vadd.f32 0.0, %v381
        %383 = vdwg.mxu0
        %v385 = vsel %vm300, %v286, 0
        %v388 = vsel %vm300, %v287, 0
        %390 = vmatprep.subr.mxu0 %v285
        %391 = vmatpush1.msra.mxu0 %v284
        %392 = vmatprep.subr.mxu0 0.0
        %393 = vmatpush1.msra.mxu0 0.0
        %394 = vmatprep.subr.mxu0 0.0
        %395 = vmatpush1.msra.mxu0 0.0
        %396 = vmatprep.subr.mxu0 0.0
        %397 = vmatpush1.msra.mxu0 0.0
        %398 = vmatprep.subr.mxu0 0.0
        %399 = vmatpush1.msra.mxu0 0.0
        %400 = vmatprep.subr.mxu0 0.0
        %401 = vmatpush1.msra.mxu0 0.0
        %402 = vmatprep.subr.mxu0 0.0
        %403 = vmatpush1.msra.mxu0 0.0
        %404 = vmatprep.subr.mxu0 0.0
        %405 = vmatpush1.msra.mxu0 0.0
        %406 = vmatprep.subr.mxu0 0.0
        %407 = vmatpush1.msra.mxu0 0.0
        %408 = vmatprep.subr.mxu0 0.0
        %409 = vmatpush1.msra.mxu0 0.0
        %410 = vmatprep.subr.mxu0 0.0
        %411 = vmatpush1.msra.mxu0 0.0
        %412 = vmatprep.subr.mxu0 0.0
        %413 = vmatpush1.msra.mxu0 0.0
        %414 = vmatprep.subr.mxu0 0.0
        %415 = vmatpush1.msra.mxu0 0.0
        %416 = vmatprep.subr.mxu0 0.0
        %417 = vmatpush1.msra.mxu0 0.0
        %418 = vmatprep.subr.mxu0 0.0
        %419 = vmatpush1.msra.mxu0 0.0
        %420 = vmatprep.subr.mxu0 0.0
        %421 = vmatpush1.msra.mxu0 0.0
        %422 = vmatprep.subr.mxu0 0.0
        %423 = vmatpush1.msra.mxu0 0.0
        %424 = vmatprep.subr.mxu0 0.0
        %425 = vmatpush1.msra.mxu0 0.0
        %426 = vmatprep.subr.mxu0 0.0
        %427 = vmatpush1.msra.mxu0 0.0
        %428 = vmatprep.subr.mxu0 0.0
        %429 = vmatpush1.msra.mxu0 0.0
        %430 = vmatprep.subr.mxu0 0.0
        %431 = vmatpush1.msra.mxu0 0.0
        %432 = vmatprep.subr.mxu0 0.0
        %433 = vmatpush1.msra.mxu0 0.0
        %434 = vmatprep.subr.mxu0 0.0
        %435 = vmatpush1.msra.mxu0 0.0
        %436 = vmatprep.subr.mxu0 0.0
        %437 = vmatpush1.msra.mxu0 0.0
        %438 = vmatprep.subr.mxu0 0.0
        %439 = vmatpush1.msra.mxu0 0.0
        %440 = vmatprep.subr.mxu0 0.0
        %441 = vmatpush1.msra.mxu0 0.0
        %442 = vmatprep.subr.mxu0 0.0
        %443 = vmatpush1.msra.mxu0 0.0
        %444 = vmatprep.subr.mxu0 0.0
        %445 = vmatpush1.msra.mxu0 0.0
        %446 = vmatprep.subr.mxu0 0.0
        %447 = vmatpush1.msra.mxu0 0.0
        %448 = vmatprep.subr.mxu0 0.0
        %449 = vmatpush1.msra.mxu0 0.0
        %450 = vmatprep.subr.mxu0 0.0
        %451 = vmatpush1.msra.mxu0 0.0
        %452 = vmatprep.subr.mxu0 0.0
        %453 = vmatpush1.msra.mxu0 0.0
        %454 = vmatprep.mubr.f32.mxu0 0.0
        %455 = vmatmul.mubr.f32.gmra.mrb[0].mxu0 %v385
        %v456 = vpop.f32.mrb[0].mxu0
        %v457 = vadd.f32 %v374, %v456
        %v458 = vpop.f32.mrb[0].mxu0
        %v459 = vadd.f32 %v376, %v458
        %460 = vmatprep.mubr.f32.mxu0 0.0
        %461 = vmatmul.mubr.f32.gmra.mrb[0].mxu0 %v388
        %v462 = vpop.f32.mrb[0].mxu0
        %v463 = vadd.f32 %v380, %v462
        %v464 = vpop.f32.mrb[0].mxu0
        %v465 = vadd.f32 %v382, %v464
        %466 = vdwg.mxu0
        %467 = vrot.lane.b32.xlu0 %v238, 15
        %v468 = vpop.permute.xlu0 %467
        %469 = vrot.lane.b32.xlu0 %v239, 15
        %v470 = vpop.permute.xlu0 %469
        %vm471 = vcmp.lt.s32.totalorder %v241, 15
        %v472 = vsel %vm471, %v468, %v470
        %v473 = vsel %vm471, %v470, %v468
        %v474 = vmul.f32 %v473, %v261
        %v475 = vmul.f32 %v472, %v262
        %s476 = scalar_lea.vmem %s1, 32
        %v477 = vld [vmem:[%s476] sm:$0xff]
        %v478 = vld [vmem:[%s476 + $0x8] sm:$0xff]
        %v480 = vsel %vm300, %v477, 0
        %v483 = vsel %vm300, %v478, 0
        %485 = vmatprep.subr.mxu0 %v475
        %486 = vmatpush1.msra.mxu0 %v474
        %487 = vmatprep.subr.mxu0 0.0
        %488 = vmatpush1.msra.mxu0 0.0
        %489 = vmatprep.subr.mxu0 0.0
        %490 = vmatpush1.msra.mxu0 0.0
        %491 = vmatprep.subr.mxu0 0.0
        %492 = vmatpush1.msra.mxu0 0.0
        %493 = vmatprep.subr.mxu0 0.0
        %494 = vmatpush1.msra.mxu0 0.0
        %495 = vmatprep.subr.mxu0 0.0
        %496 = vmatpush1.msra.mxu0 0.0
        %497 = vmatprep.subr.mxu0 0.0
        %498 = vmatpush1.msra.mxu0 0.0
        %499 = vmatprep.subr.mxu0 0.0
        %500 = vmatpush1.msra.mxu0 0.0
        %501 = vmatprep.subr.mxu0 0.0
        %502 = vmatpush1.msra.mxu0 0.0
        %503 = vmatprep.subr.mxu0 0.0
        %504 = vmatpush1.msra.mxu0 0.0
        %505 = vmatprep.subr.mxu0 0.0
        %506 = vmatpush1.msra.mxu0 0.0
        %507 = vmatprep.subr.mxu0 0.0
        %508 = vmatpush1.msra.mxu0 0.0
        %509 = vmatprep.subr.mxu0 0.0
        %510 = vmatpush1.msra.mxu0 0.0
        %511 = vmatprep.subr.mxu0 0.0
        %512 = vmatpush1.msra.mxu0 0.0
        %513 = vmatprep.subr.mxu0 0.0
        %514 = vmatpush1.msra.mxu0 0.0
        %515 = vmatprep.subr.mxu0 0.0
        %516 = vmatpush1.msra.mxu0 0.0
        %517 = vmatprep.subr.mxu0 0.0
        %518 = vmatpush1.msra.mxu0 0.0
        %519 = vmatprep.subr.mxu0 0.0
        %520 = vmatpush1.msra.mxu0 0.0
        %521 = vmatprep.subr.mxu0 0.0
        %522 = vmatpush1.msra.mxu0 0.0
        %523 = vmatprep.subr.mxu0 0.0
        %524 = vmatpush1.msra.mxu0 0.0
        %525 = vmatprep.subr.mxu0 0.0
        %526 = vmatpush1.msra.mxu0 0.0
        %527 = vmatprep.subr.mxu0 0.0
        %528 = vmatpush1.msra.mxu0 0.0
        %529 = vmatprep.subr.mxu0 0.0
        %530 = vmatpush1.msra.mxu0 0.0
        %531 = vmatprep.subr.mxu0 0.0
        %532 = vmatpush1.msra.mxu0 0.0
        %533 = vmatprep.subr.mxu0 0.0
        %534 = vmatpush1.msra.mxu0 0.0
        %535 = vmatprep.subr.mxu0 0.0
        %536 = vmatpush1.msra.mxu0 0.0
        %537 = vmatprep.subr.mxu0 0.0
        %538 = vmatpush1.msra.mxu0 0.0
        %539 = vmatprep.subr.mxu0 0.0
        %540 = vmatpush1.msra.mxu0 0.0
        %541 = vmatprep.subr.mxu0 0.0
        %542 = vmatpush1.msra.mxu0 0.0
        %543 = vmatprep.subr.mxu0 0.0
        %544 = vmatpush1.msra.mxu0 0.0
        %545 = vmatprep.subr.mxu0 0.0
        %546 = vmatpush1.msra.mxu0 0.0
        %547 = vmatprep.subr.mxu0 0.0
        %548 = vmatpush1.msra.mxu0 0.0
        %549 = vmatprep.mubr.f32.mxu0 0.0
        %550 = vmatmul.mubr.f32.gmra.mrb[0].mxu0 %v480
        %v551 = vpop.f32.mrb[0].mxu0
        %v552 = vadd.f32 0.0, %v551
        %v553 = vpop.f32.mrb[0].mxu0
        %v554 = vadd.f32 0.0, %v553
        %555 = vmatprep.mubr.f32.mxu0 0.0
        %556 = vmatmul.mubr.f32.gmra.mrb[0].mxu0 %v483
        %v557 = vpop.f32.mrb[0].mxu0
        %v558 = vadd.f32 0.0, %v557
        %v559 = vpop.f32.mrb[0].mxu0
        %v560 = vadd.f32 0.0, %v559
        %561 = vdwg.mxu0
        %v562 = vadd.f32 %v457, %v552
        %v563 = vadd.f32 %v459, %v554
        %v564 = vadd.f32 %v463, %v558
        %v565 = vadd.f32 %v465, %v560
        %566 = vrot.lane.b32.xlu0 %v238, 1
        %v567 = vpop.permute.xlu0 %566
        %568 = vrot.lane.b32.xlu0 %v239, 1
        %v569 = vpop.permute.xlu0 %568
        %vm570 = vcmp.lt.s32.totalorder %v241, 1
        %v571 = vsel %vm570, %v567, %v569
        %v572 = vsel %vm570, %v569, %v567
        %v573 = vmul.f32 %v572, %v263
        %v574 = vmul.f32 %v571, %v264
        %s575 = scalar_lea.vmem %s1, 48
        %v576 = vld [vmem:[%s575] sm:$0xff]
        %v577 = vld [vmem:[%s575 + $0x8] sm:$0xff]
        %v579 = vsel %vm300, %v576, 0
        %v582 = vsel %vm300, %v577, 0
        %584 = vmatprep.subr.mxu0 %v574
        %585 = vmatpush1.msra.mxu0 %v573
        %586 = vmatprep.subr.mxu0 0.0
        %587 = vmatpush1.msra.mxu0 0.0
        %588 = vmatprep.subr.mxu0 0.0
        %589 = vmatpush1.msra.mxu0 0.0
        %590 = vmatprep.subr.mxu0 0.0
        %591 = vmatpush1.msra.mxu0 0.0
        %592 = vmatprep.subr.mxu0 0.0
        %593 = vmatpush1.msra.mxu0 0.0
        %594 = vmatprep.subr.mxu0 0.0
        %595 = vmatpush1.msra.mxu0 0.0
        %596 = vmatprep.subr.mxu0 0.0
        %597 = vmatpush1.msra.mxu0 0.0
        %598 = vmatprep.subr.mxu0 0.0
        %599 = vmatpush1.msra.mxu0 0.0
        %600 = vmatprep.subr.mxu0 0.0
        %601 = vmatpush1.msra.mxu0 0.0
        %602 = vmatprep.subr.mxu0 0.0
        %603 = vmatpush1.msra.mxu0 0.0
        %604 = vmatprep.subr.mxu0 0.0
        %605 = vmatpush1.msra.mxu0 0.0
        %606 = vmatprep.subr.mxu0 0.0
        %607 = vmatpush1.msra.mxu0 0.0
        %608 = vmatprep.subr.mxu0 0.0
        %609 = vmatpush1.msra.mxu0 0.0
        %610 = vmatprep.subr.mxu0 0.0
        %611 = vmatpush1.msra.mxu0 0.0
        %612 = vmatprep.subr.mxu0 0.0
        %613 = vmatpush1.msra.mxu0 0.0
        %614 = vmatprep.subr.mxu0 0.0
        %615 = vmatpush1.msra.mxu0 0.0
        %616 = vmatprep.subr.mxu0 0.0
        %617 = vmatpush1.msra.mxu0 0.0
        %618 = vmatprep.subr.mxu0 0.0
        %619 = vmatpush1.msra.mxu0 0.0
        %620 = vmatprep.subr.mxu0 0.0
        %621 = vmatpush1.msra.mxu0 0.0
        %622 = vmatprep.subr.mxu0 0.0
        %623 = vmatpush1.msra.mxu0 0.0
        %624 = vmatprep.subr.mxu0 0.0
        %625 = vmatpush1.msra.mxu0 0.0
        %626 = vmatprep.subr.mxu0 0.0
        %627 = vmatpush1.msra.mxu0 0.0
        %628 = vmatprep.subr.mxu0 0.0
        %629 = vmatpush1.msra.mxu0 0.0
        %630 = vmatprep.subr.mxu0 0.0
        %631 = vmatpush1.msra.mxu0 0.0
        %632 = vmatprep.subr.mxu0 0.0
        %633 = vmatpush1.msra.mxu0 0.0
        %634 = vmatprep.subr.mxu0 0.0
        %635 = vmatpush1.msra.mxu0 0.0
        %636 = vmatprep.subr.mxu0 0.0
        %637 = vmatpush1.msra.mxu0 0.0
        %638 = vmatprep.subr.mxu0 0.0
        %639 = vmatpush1.msra.mxu0 0.0
        %640 = vmatprep.subr.mxu0 0.0
        %641 = vmatpush1.msra.mxu0 0.0
        %642 = vmatprep.subr.mxu0 0.0
        %643 = vmatpush1.msra.mxu0 0.0
        %644 = vmatprep.subr.mxu0 0.0
        %645 = vmatpush1.msra.mxu0 0.0
        %646 = vmatprep.subr.mxu0 0.0
        %647 = vmatpush1.msra.mxu0 0.0
        %648 = vmatprep.mubr.f32.mxu0 0.0
        %649 = vmatmul.mubr.f32.gmra.mrb[0].mxu0 %v579
        %v650 = vpop.f32.mrb[0].mxu0
        %v651 = vadd.f32 0.0, %v650
        %v652 = vpop.f32.mrb[0].mxu0
        %v653 = vadd.f32 0.0, %v652
        %654 = vmatprep.mubr.f32.mxu0 0.0
        %655 = vmatmul.mubr.f32.gmra.mrb[0].mxu0 %v582
        %v656 = vpop.f32.mrb[0].mxu0
        %v657 = vadd.f32 0.0, %v656
        %v658 = vpop.f32.mrb[0].mxu0
        %v659 = vadd.f32 0.0, %v658
        %660 = vdwg.mxu0
        %v661 = vadd.f32 %v562, %v651
        %v662 = vadd.f32 %v563, %v653
        %v663 = vadd.f32 %v564, %v657
        %v664 = vadd.f32 %v565, %v659
        %s665 = scalar_lea.vmem %s1, 64
        %v666 = vld [vmem:[%s665] sm:$0xff]
        %v667 = vld [vmem:[%s665 + $0x8] sm:$0xff]
        %v669 = vsel %vm300, %v666, 0
        %v672 = vsel %vm300, %v667, 0
        %674 = vmatprep.subr.mxu0 %v239
        %675 = vmatpush1.msra.mxu0 %v238
        %676 = vmatprep.subr.mxu0 0.0
        %677 = vmatpush1.msra.mxu0 0.0
        %678 = vmatprep.subr.mxu0 0.0
        %679 = vmatpush1.msra.mxu0 0.0
        %680 = vmatprep.subr.mxu0 0.0
        %681 = vmatpush1.msra.mxu0 0.0
        %682 = vmatprep.subr.mxu0 0.0
        %683 = vmatpush1.msra.mxu0 0.0
        %684 = vmatprep.subr.mxu0 0.0
        %685 = vmatpush1.msra.mxu0 0.0
        %686 = vmatprep.subr.mxu0 0.0
        %687 = vmatpush1.msra.mxu0 0.0
        %688 = vmatprep.subr.mxu0 0.0
        %689 = vmatpush1.msra.mxu0 0.0
        %690 = vmatprep.subr.mxu0 0.0
        %691 = vmatpush1.msra.mxu0 0.0
        %692 = vmatprep.subr.mxu0 0.0
        %693 = vmatpush1.msra.mxu0 0.0
        %694 = vmatprep.subr.mxu0 0.0
        %695 = vmatpush1.msra.mxu0 0.0
        %696 = vmatprep.subr.mxu0 0.0
        %697 = vmatpush1.msra.mxu0 0.0
        %698 = vmatprep.subr.mxu0 0.0
        %699 = vmatpush1.msra.mxu0 0.0
        %700 = vmatprep.subr.mxu0 0.0
        %701 = vmatpush1.msra.mxu0 0.0
        %702 = vmatprep.subr.mxu0 0.0
        %703 = vmatpush1.msra.mxu0 0.0
        %704 = vmatprep.subr.mxu0 0.0
        %705 = vmatpush1.msra.mxu0 0.0
        %706 = vmatprep.subr.mxu0 0.0
        %707 = vmatpush1.msra.mxu0 0.0
        %708 = vmatprep.subr.mxu0 0.0
        %709 = vmatpush1.msra.mxu0 0.0
        %710 = vmatprep.subr.mxu0 0.0
        %711 = vmatpush1.msra.mxu0 0.0
        %712 = vmatprep.subr.mxu0 0.0
        %713 = vmatpush1.msra.mxu0 0.0
        %714 = vmatprep.subr.mxu0 0.0
        %715 = vmatpush1.msra.mxu0 0.0
        %716 = vmatprep.subr.mxu0 0.0
        %717 = vmatpush1.msra.mxu0 0.0
        %718 = vmatprep.subr.mxu0 0.0
        %719 = vmatpush1.msra.mxu0 0.0
        %720 = vmatprep.subr.mxu0 0.0
        %721 = vmatpush1.msra.mxu0 0.0
        %722 = vmatprep.subr.mxu0 0.0
        %723 = vmatpush1.msra.mxu0 0.0
        %724 = vmatprep.subr.mxu0 0.0
        %725 = vmatpush1.msra.mxu0 0.0
        %726 = vmatprep.subr.mxu0 0.0
        %727 = vmatpush1.msra.mxu0 0.0
        %728 = vmatprep.subr.mxu0 0.0
        %729 = vmatpush1.msra.mxu0 0.0
        %730 = vmatprep.subr.mxu0 0.0
        %731 = vmatpush1.msra.mxu0 0.0
        %732 = vmatprep.subr.mxu0 0.0
        %733 = vmatpush1.msra.mxu0 0.0
        %734 = vmatprep.subr.mxu0 0.0
        %735 = vmatpush1.msra.mxu0 0.0
        %736 = vmatprep.subr.mxu0 0.0
        %737 = vmatpush1.msra.mxu0 0.0
        %738 = vmatprep.mubr.f32.mxu0 0.0
        %739 = vmatmul.mubr.f32.gmra.mrb[0].mxu0 %v669
        %v740 = vpop.f32.mrb[0].mxu0
        %v741 = vadd.f32 0.0, %v740
        %v742 = vpop.f32.mrb[0].mxu0
        %v743 = vadd.f32 0.0, %v742
        %744 = vmatprep.mubr.f32.mxu0 0.0
        %745 = vmatmul.mubr.f32.gmra.mrb[0].mxu0 %v672
        %v746 = vpop.f32.mrb[0].mxu0
        %v747 = vadd.f32 0.0, %v746
        %v748 = vpop.f32.mrb[0].mxu0
        %v749 = vadd.f32 0.0, %v748
        %750 = vdwg.mxu0
        %v751 = vadd.f32 %v661, %v741
        %v752 = vadd.f32 %v662, %v743
        %v753 = vadd.f32 %v663, %v747
        %v754 = vadd.f32 %v664, %v749
        %755 = vrot.lane.b32.xlu0 %v238, 127
        %v756 = vpop.permute.xlu0 %755
        %757 = vrot.lane.b32.xlu0 %v239, 127
        %v758 = vpop.permute.xlu0 %757
        %vm759 = vcmp.lt.s32.totalorder %v241, 127
        %v760 = vsel %vm759, %v756, %v758
        %v761 = vsel %vm759, %v758, %v756
        %v762 = vmul.f32 %v760, %v265
        %v763 = vmul.f32 %v761, %v266
        %s764 = scalar_lea.vmem %s1, 80
        %v765 = vld [vmem:[%s764] sm:$0xff]
        %v766 = vld [vmem:[%s764 + $0x8] sm:$0xff]
        %v768 = vsel %vm300, %v765, 0
        %v771 = vsel %vm300, %v766, 0
        %773 = vmatprep.subr.mxu0 %v763
        %774 = vmatpush1.msra.mxu0 %v762
        %775 = vmatprep.subr.mxu0 0.0
        %776 = vmatpush1.msra.mxu0 0.0
        %777 = vmatprep.subr.mxu0 0.0
        %778 = vmatpush1.msra.mxu0 0.0
        %779 = vmatprep.subr.mxu0 0.0
        %780 = vmatpush1.msra.mxu0 0.0
        %781 = vmatprep.subr.mxu0 0.0
        %782 = vmatpush1.msra.mxu0 0.0
        %783 = vmatprep.subr.mxu0 0.0
        %784 = vmatpush1.msra.mxu0 0.0
        %785 = vmatprep.subr.mxu0 0.0
        %786 = vmatpush1.msra.mxu0 0.0
        %787 = vmatprep.subr.mxu0 0.0
        %788 = vmatpush1.msra.mxu0 0.0
        %789 = vmatprep.subr.mxu0 0.0
        %790 = vmatpush1.msra.mxu0 0.0
        %791 = vmatprep.subr.mxu0 0.0
        %792 = vmatpush1.msra.mxu0 0.0
        %793 = vmatprep.subr.mxu0 0.0
        %794 = vmatpush1.msra.mxu0 0.0
        %795 = vmatprep.subr.mxu0 0.0
        %796 = vmatpush1.msra.mxu0 0.0
        %797 = vmatprep.subr.mxu0 0.0
        %798 = vmatpush1.msra.mxu0 0.0
        %799 = vmatprep.subr.mxu0 0.0
        %800 = vmatpush1.msra.mxu0 0.0
        %801 = vmatprep.subr.mxu0 0.0
        %802 = vmatpush1.msra.mxu0 0.0
        %803 = vmatprep.subr.mxu0 0.0
        %804 = vmatpush1.msra.mxu0 0.0
        %805 = vmatprep.subr.mxu0 0.0
        %806 = vmatpush1.msra.mxu0 0.0
        %807 = vmatprep.subr.mxu0 0.0
        %808 = vmatpush1.msra.mxu0 0.0
        %809 = vmatprep.subr.mxu0 0.0
        %810 = vmatpush1.msra.mxu0 0.0
        %811 = vmatprep.subr.mxu0 0.0
        %812 = vmatpush1.msra.mxu0 0.0
        %813 = vmatprep.subr.mxu0 0.0
        %814 = vmatpush1.msra.mxu0 0.0
        %815 = vmatprep.subr.mxu0 0.0
        %816 = vmatpush1.msra.mxu0 0.0
        %817 = vmatprep.subr.mxu0 0.0
        %818 = vmatpush1.msra.mxu0 0.0
        %819 = vmatprep.subr.mxu0 0.0
        %820 = vmatpush1.msra.mxu0 0.0
        %821 = vmatprep.subr.mxu0 0.0
        %822 = vmatpush1.msra.mxu0 0.0
        %823 = vmatprep.subr.mxu0 0.0
        %824 = vmatpush1.msra.mxu0 0.0
        %825 = vmatprep.subr.mxu0 0.0
        %826 = vmatpush1.msra.mxu0 0.0
        %827 = vmatprep.subr.mxu0 0.0
        %828 = vmatpush1.msra.mxu0 0.0
        %829 = vmatprep.subr.mxu0 0.0
        %830 = vmatpush1.msra.mxu0 0.0
        %831 = vmatprep.subr.mxu0 0.0
        %832 = vmatpush1.msra.mxu0 0.0
        %833 = vmatprep.subr.mxu0 0.0
        %834 = vmatpush1.msra.mxu0 0.0
        %835 = vmatprep.subr.mxu0 0.0
        %836 = vmatpush1.msra.mxu0 0.0
        %837 = vmatprep.mubr.f32.mxu0 0.0
        %838 = vmatmul.mubr.f32.gmra.mrb[0].mxu0 %v768
        %v839 = vpop.f32.mrb[0].mxu0
        %v840 = vadd.f32 0.0, %v839
        %v841 = vpop.f32.mrb[0].mxu0
        %v842 = vadd.f32 0.0, %v841
        %843 = vmatprep.mubr.f32.mxu0 0.0
        %844 = vmatmul.mubr.f32.gmra.mrb[0].mxu0 %v771
        %v845 = vpop.f32.mrb[0].mxu0
        %v846 = vadd.f32 0.0, %v845
        %v847 = vpop.f32.mrb[0].mxu0
        %v848 = vadd.f32 0.0, %v847
        %849 = vdwg.mxu0
        %v850 = vadd.f32 %v751, %v840
        %v851 = vadd.f32 %v752, %v842
        %v852 = vadd.f32 %v753, %v846
        %v853 = vadd.f32 %v754, %v848
        %854 = vrot.lane.b32.xlu0 %v238, 113
        %v855 = vpop.permute.xlu0 %854
        %856 = vrot.lane.b32.xlu0 %v239, 113
        %v857 = vpop.permute.xlu0 %856
        %vm858 = vcmp.lt.s32.totalorder %v241, 113
        %v859 = vsel %vm858, %v855, %v857
        %v860 = vsel %vm858, %v857, %v855
        %v861 = vmul.f32 %v859, %v269
        %v862 = vmul.f32 %v860, %v270
        %s863 = scalar_lea.vmem %s1, 96
        %v864 = vld [vmem:[%s863] sm:$0xff]
        %v865 = vld [vmem:[%s863 + $0x8] sm:$0xff]
        %v867 = vsel %vm300, %v864, 0
        %v870 = vsel %vm300, %v865, 0
        %872 = vmatprep.subr.mxu0 %v862
        %873 = vmatpush1.msra.mxu0 %v861
        %874 = vmatprep.subr.mxu0 0.0
        %875 = vmatpush1.msra.mxu0 0.0
        %876 = vmatprep.subr.mxu0 0.0
        %877 = vmatpush1.msra.mxu0 0.0
        %878 = vmatprep.subr.mxu0 0.0
        %879 = vmatpush1.msra.mxu0 0.0
        %880 = vmatprep.subr.mxu0 0.0
        %881 = vmatpush1.msra.mxu0 0.0
        %882 = vmatprep.subr.mxu0 0.0
        %883 = vmatpush1.msra.mxu0 0.0
        %884 = vmatprep.subr.mxu0 0.0
        %885 = vmatpush1.msra.mxu0 0.0
        %886 = vmatprep.subr.mxu0 0.0
        %887 = vmatpush1.msra.mxu0 0.0
        %888 = vmatprep.subr.mxu0 0.0
        %889 = vmatpush1.msra.mxu0 0.0
        %890 = vmatprep.subr.mxu0 0.0
        %891 = vmatpush1.msra.mxu0 0.0
        %892 = vmatprep.subr.mxu0 0.0
        %893 = vmatpush1.msra.mxu0 0.0
        %894 = vmatprep.subr.mxu0 0.0
        %895 = vmatpush1.msra.mxu0 0.0
        %896 = vmatprep.subr.mxu0 0.0
        %897 = vmatpush1.msra.mxu0 0.0
        %898 = vmatprep.subr.mxu0 0.0
        %899 = vmatpush1.msra.mxu0 0.0
        %900 = vmatprep.subr.mxu0 0.0
        %901 = vmatpush1.msra.mxu0 0.0
        %902 = vmatprep.subr.mxu0 0.0
        %903 = vmatpush1.msra.mxu0 0.0
        %904 = vmatprep.subr.mxu0 0.0
        %905 = vmatpush1.msra.mxu0 0.0
        %906 = vmatprep.subr.mxu0 0.0
        %907 = vmatpush1.msra.mxu0 0.0
        %908 = vmatprep.subr.mxu0 0.0
        %909 = vmatpush1.msra.mxu0 0.0
        %910 = vmatprep.subr.mxu0 0.0
        %911 = vmatpush1.msra.mxu0 0.0
        %912 = vmatprep.subr.mxu0 0.0
        %913 = vmatpush1.msra.mxu0 0.0
        %914 = vmatprep.subr.mxu0 0.0
        %915 = vmatpush1.msra.mxu0 0.0
        %916 = vmatprep.subr.mxu0 0.0
        %917 = vmatpush1.msra.mxu0 0.0
        %918 = vmatprep.subr.mxu0 0.0
        %919 = vmatpush1.msra.mxu0 0.0
        %920 = vmatprep.subr.mxu0 0.0
        %921 = vmatpush1.msra.mxu0 0.0
        %922 = vmatprep.subr.mxu0 0.0
        %923 = vmatpush1.msra.mxu0 0.0
        %924 = vmatprep.subr.mxu0 0.0
        %925 = vmatpush1.msra.mxu0 0.0
        %926 = vmatprep.subr.mxu0 0.0
        %927 = vmatpush1.msra.mxu0 0.0
        %928 = vmatprep.subr.mxu0 0.0
        %929 = vmatpush1.msra.mxu0 0.0
        %930 = vmatprep.subr.mxu0 0.0
        %931 = vmatpush1.msra.mxu0 0.0
        %932 = vmatprep.subr.mxu0 0.0
        %933 = vmatpush1.msra.mxu0 0.0
        %934 = vmatprep.subr.mxu0 0.0
        %935 = vmatpush1.msra.mxu0 0.0
        %936 = vmatprep.mubr.f32.mxu0 0.0
        %937 = vmatmul.mubr.f32.gmra.mrb[0].mxu0 %v867
        %v938 = vpop.f32.mrb[0].mxu0
        %v939 = vadd.f32 0.0, %v938
        %v940 = vpop.f32.mrb[0].mxu0
        %v941 = vadd.f32 0.0, %v940
        %942 = vmatprep.mubr.f32.mxu0 0.0
        %943 = vmatmul.mubr.f32.gmra.mrb[0].mxu0 %v870
        %v944 = vpop.f32.mrb[0].mxu0
        %v945 = vadd.f32 0.0, %v944
        %v946 = vpop.f32.mrb[0].mxu0
        %v947 = vadd.f32 0.0, %v946
        %948 = vdwg.mxu0
        %v949 = vadd.f32 %v850, %v939
        %v950 = vadd.f32 %v851, %v941
        %v951 = vadd.f32 %v852, %v945
        %v952 = vadd.f32 %v853, %v947
        %953 = vrot.lane.b32.xlu0 %v238, 112
        %v954 = vpop.permute.xlu0 %953
        %955 = vrot.lane.b32.xlu0 %v239, 112
        %v956 = vpop.permute.xlu0 %955
        %vm957 = vcmp.lt.s32.totalorder %v241, 112
        %v958 = vsel %vm957, %v954, %v956
        %v959 = vsel %vm957, %v956, %v954
        %v960 = vmul.f32 %v958, %v271
        %v961 = vmul.f32 %v959, %v272
        %s962 = scalar_lea.vmem %s1, 112
        %v963 = vld [vmem:[%s962] sm:$0xff]
        %v964 = vld [vmem:[%s962 + $0x8] sm:$0xff]
        %v966 = vsel %vm300, %v963, 0
        %v969 = vsel %vm300, %v964, 0
        %971 = vmatprep.subr.mxu0 %v961
        %972 = vmatpush1.msra.mxu0 %v960
        %973 = vmatprep.subr.mxu0 0.0
        %974 = vmatpush1.msra.mxu0 0.0
        %975 = vmatprep.subr.mxu0 0.0
        %976 = vmatpush1.msra.mxu0 0.0
        %977 = vmatprep.subr.mxu0 0.0
        %978 = vmatpush1.msra.mxu0 0.0
        %979 = vmatprep.subr.mxu0 0.0
        %980 = vmatpush1.msra.mxu0 0.0
        %981 = vmatprep.subr.mxu0 0.0
        %982 = vmatpush1.msra.mxu0 0.0
        %983 = vmatprep.subr.mxu0 0.0
        %984 = vmatpush1.msra.mxu0 0.0
        %985 = vmatprep.subr.mxu0 0.0
        %986 = vmatpush1.msra.mxu0 0.0
        %987 = vmatprep.subr.mxu0 0.0
        %988 = vmatpush1.msra.mxu0 0.0
        %989 = vmatprep.subr.mxu0 0.0
        %990 = vmatpush1.msra.mxu0 0.0
        %991 = vmatprep.subr.mxu0 0.0
        %992 = vmatpush1.msra.mxu0 0.0
        %993 = vmatprep.subr.mxu0 0.0
        %994 = vmatpush1.msra.mxu0 0.0
        %995 = vmatprep.subr.mxu0 0.0
        %996 = vmatpush1.msra.mxu0 0.0
        %997 = vmatprep.subr.mxu0 0.0
        %998 = vmatpush1.msra.mxu0 0.0
        %999 = vmatprep.subr.mxu0 0.0
        %1000 = vmatpush1.msra.mxu0 0.0
        %1001 = vmatprep.subr.mxu0 0.0
        %1002 = vmatpush1.msra.mxu0 0.0
        %1003 = vmatprep.subr.mxu0 0.0
        %1004 = vmatpush1.msra.mxu0 0.0
        %1005 = vmatprep.subr.mxu0 0.0
        %1006 = vmatpush1.msra.mxu0 0.0
        %1007 = vmatprep.subr.mxu0 0.0
        %1008 = vmatpush1.msra.mxu0 0.0
        %1009 = vmatprep.subr.mxu0 0.0
        %1010 = vmatpush1.msra.mxu0 0.0
        %1011 = vmatprep.subr.mxu0 0.0
        %1012 = vmatpush1.msra.mxu0 0.0
        %1013 = vmatprep.subr.mxu0 0.0
        %1014 = vmatpush1.msra.mxu0 0.0
        %1015 = vmatprep.subr.mxu0 0.0
        %1016 = vmatpush1.msra.mxu0 0.0
        %1017 = vmatprep.subr.mxu0 0.0
        %1018 = vmatpush1.msra.mxu0 0.0
        %1019 = vmatprep.subr.mxu0 0.0
        %1020 = vmatpush1.msra.mxu0 0.0
        %1021 = vmatprep.subr.mxu0 0.0
        %1022 = vmatpush1.msra.mxu0 0.0
        %1023 = vmatprep.subr.mxu0 0.0
        %1024 = vmatpush1.msra.mxu0 0.0
        %1025 = vmatprep.subr.mxu0 0.0
        %1026 = vmatpush1.msra.mxu0 0.0
        %1027 = vmatprep.subr.mxu0 0.0
        %1028 = vmatpush1.msra.mxu0 0.0
        %1029 = vmatprep.subr.mxu0 0.0
        %1030 = vmatpush1.msra.mxu0 0.0
        %1031 = vmatprep.subr.mxu0 0.0
        %1032 = vmatpush1.msra.mxu0 0.0
        %1033 = vmatprep.subr.mxu0 0.0
        %1034 = vmatpush1.msra.mxu0 0.0
        %1035 = vmatprep.mubr.f32.mxu0 0.0
        %1036 = vmatmul.mubr.f32.gmra.mrb[0].mxu0 %v966
        %v1037 = vpop.f32.mrb[0].mxu0
        %v1038 = vadd.f32 0.0, %v1037
        %v1039 = vpop.f32.mrb[0].mxu0
        %v1040 = vadd.f32 0.0, %v1039
        %1041 = vmatprep.mubr.f32.mxu0 0.0
        %1042 = vmatmul.mubr.f32.gmra.mrb[0].mxu0 %v969
        %v1043 = vpop.f32.mrb[0].mxu0
        %v1044 = vadd.f32 0.0, %v1043
        %v1045 = vpop.f32.mrb[0].mxu0
        %v1046 = vadd.f32 0.0, %v1045
        %1047 = vdwg.mxu0
        %v1048 = vadd.f32 %v949, %v1038
        %v1049 = vadd.f32 %v950, %v1040
        %v1050 = vadd.f32 %v951, %v1044
        %v1051 = vadd.f32 %v952, %v1046
        %1052 = vrot.lane.b32.xlu0 %v238, 111
        %v1053 = vpop.permute.xlu0 %1052
        %1054 = vrot.lane.b32.xlu0 %v239, 111
        %v1055 = vpop.permute.xlu0 %1054
        %vm1056 = vcmp.lt.s32.totalorder %v241, 111
        %v1057 = vsel %vm1056, %v1053, %v1055
        %v1058 = vsel %vm1056, %v1055, %v1053
        %v1059 = vmul.f32 %v1057, %v275
        %v1060 = vmul.f32 %v1058, %v276
        %s1061 = scalar_lea.vmem %s1, 128
        %v1062 = vld [vmem:[%s1061] sm:$0xff]
        %v1063 = vld [vmem:[%s1061 + $0x8] sm:$0xff]
        %v1065 = vsel %vm300, %v1062, 0
        %v1068 = vsel %vm300, %v1063, 0
        %1070 = vmatprep.subr.mxu0 %v1060
        %1071 = vmatpush1.msra.mxu0 %v1059
        %1072 = vmatprep.subr.mxu0 0.0
        %1073 = vmatpush1.msra.mxu0 0.0
        %1074 = vmatprep.subr.mxu0 0.0
        %1075 = vmatpush1.msra.mxu0 0.0
        %1076 = vmatprep.subr.mxu0 0.0
        %1077 = vmatpush1.msra.mxu0 0.0
        %1078 = vmatprep.subr.mxu0 0.0
        %1079 = vmatpush1.msra.mxu0 0.0
        %1080 = vmatprep.subr.mxu0 0.0
        %1081 = vmatpush1.msra.mxu0 0.0
        %1082 = vmatprep.subr.mxu0 0.0
        %1083 = vmatpush1.msra.mxu0 0.0
        %1084 = vmatprep.subr.mxu0 0.0
        %1085 = vmatpush1.msra.mxu0 0.0
        %1086 = vmatprep.subr.mxu0 0.0
        %1087 = vmatpush1.msra.mxu0 0.0
        %1088 = vmatprep.subr.mxu0 0.0
        %1089 = vmatpush1.msra.mxu0 0.0
        %1090 = vmatprep.subr.mxu0 0.0
        %1091 = vmatpush1.msra.mxu0 0.0
        %1092 = vmatprep.subr.mxu0 0.0
        %1093 = vmatpush1.msra.mxu0 0.0
        %1094 = vmatprep.subr.mxu0 0.0
        %1095 = vmatpush1.msra.mxu0 0.0
        %1096 = vmatprep.subr.mxu0 0.0
        %1097 = vmatpush1.msra.mxu0 0.0
        %1098 = vmatprep.subr.mxu0 0.0
        %1099 = vmatpush1.msra.mxu0 0.0
        %1100 = vmatprep.subr.mxu0 0.0
        %1101 = vmatpush1.msra.mxu0 0.0
        %1102 = vmatprep.subr.mxu0 0.0
        %1103 = vmatpush1.msra.mxu0 0.0
        %1104 = vmatprep.subr.mxu0 0.0
        %1105 = vmatpush1.msra.mxu0 0.0
        %1106 = vmatprep.subr.mxu0 0.0
        %1107 = vmatpush1.msra.mxu0 0.0
        %1108 = vmatprep.subr.mxu0 0.0
        %1109 = vmatpush1.msra.mxu0 0.0
        %1110 = vmatprep.subr.mxu0 0.0
        %1111 = vmatpush1.msra.mxu0 0.0
        %1112 = vmatprep.subr.mxu0 0.0
        %1113 = vmatpush1.msra.mxu0 0.0
        %1114 = vmatprep.subr.mxu0 0.0
        %1115 = vmatpush1.msra.mxu0 0.0
        %1116 = vmatprep.subr.mxu0 0.0
        %1117 = vmatpush1.msra.mxu0 0.0
        %1118 = vmatprep.subr.mxu0 0.0
        %1119 = vmatpush1.msra.mxu0 0.0
        %1120 = vmatprep.subr.mxu0 0.0
        %1121 = vmatpush1.msra.mxu0 0.0
        %1122 = vmatprep.subr.mxu0 0.0
        %1123 = vmatpush1.msra.mxu0 0.0
        %1124 = vmatprep.subr.mxu0 0.0
        %1125 = vmatpush1.msra.mxu0 0.0
        %1126 = vmatprep.subr.mxu0 0.0
        %1127 = vmatpush1.msra.mxu0 0.0
        %1128 = vmatprep.subr.mxu0 0.0
        %1129 = vmatpush1.msra.mxu0 0.0
        %1130 = vmatprep.subr.mxu0 0.0
        %1131 = vmatpush1.msra.mxu0 0.0
        %1132 = vmatprep.subr.mxu0 0.0
        %1133 = vmatpush1.msra.mxu0 0.0
        %1134 = vmatprep.mubr.f32.mxu0 0.0
        %1135 = vmatmul.mubr.f32.gmra.mrb[0].mxu0 %v1065
        %v1136 = vpop.f32.mrb[0].mxu0
        %v1137 = vadd.f32 0.0, %v1136
        %v1138 = vpop.f32.mrb[0].mxu0
        %v1139 = vadd.f32 0.0, %v1138
        %1140 = vmatprep.mubr.f32.mxu0 0.0
        %1141 = vmatmul.mubr.f32.gmra.mrb[0].mxu0 %v1068
        %v1142 = vpop.f32.mrb[0].mxu0
        %v1143 = vadd.f32 0.0, %v1142
        %v1144 = vpop.f32.mrb[0].mxu0
        %v1145 = vadd.f32 0.0, %v1144
        %1146 = vdwg.mxu0
        %v1147 = vadd.f32 %v1048, %v1137
        %v1148 = vadd.f32 %v1049, %v1139
        %v1149 = vadd.f32 %v1050, %v1143
        %v1150 = vadd.f32 %v1051, %v1145
        %v1151 = vadd.f32 %v1147, %v1148
        %1152 = vadd.xlane.f32.xlu0 %v1151
        %v1153 = vpop.xlane.xlu0 %1152
        %v1154 = vadd.f32 %v1149, %v1150
        %1155 = vadd.xlane.f32.xlu0 %v1154
        %v1156 = vpop.xlane.xlu0 %1155
        %v1157 = vmul.f32 %v1147, %v1147
        %v1158 = vmul.f32 %v1148, %v1148
        %v1159 = vmul.f32 %v1149, %v1149
        %v1160 = vmul.f32 %v1150, %v1150
        %v1161 = vadd.f32 %v1157, %v1158
        %1162 = vadd.xlane.f32.xlu0 %v1161
        %v1163 = vpop.xlane.xlu0 %1162
        %v1164 = vadd.f32 %v1159, %v1160
        %1165 = vadd.xlane.f32.xlu0 %v1164
        %v1166 = vpop.xlane.xlu0 %1165
        %v1167 = vmul.f32 %v1153, 0.00390625
        %v1168 = vmul.f32 %v1156, 0.00390625
        %v1169 = vmul.f32 %v1163, 0.00390625
        %v1170 = vmul.f32 %v1166, 0.00390625
        %v1171 = vmul.f32 %v1167, %v1167
        %v1172 = vmul.f32 %v1168, %v1168
        %v1173 = vsub.f32 %v1169, %v1171
        %v1174 = vsub.f32 %v1170, %v1172
        %v1175 = vsub.f32 %v1147, %v1167
        %v1176 = vsub.f32 %v1148, %v1167
        %v1177 = vsub.f32 %v1149, %v1168
        %v1178 = vsub.f32 %v1150, %v1168
        %v1179 = vadd.f32 %v1173, 1e-05
        %v1180 = vadd.f32 %v1174, 1e-05
        %v1181 = vrsqrt.pop %v1179
        %v1182 = vrsqrt.pop %v1180
        %v1183 = vmul.f32 %v1175, %v1181
        %v1184 = vmul.f32 %v1176, %v1181
        %v1185 = vmul.f32 %v1177, %v1182
        %v1186 = vmul.f32 %v1178, %v1182
        %v1187 = vmax.f32 %v1183, 0.0
        %v1188 = vmax.f32 %v1184, 0.0
        %v1189 = vmax.f32 %v1185, 0.0
        %v1190 = vmax.f32 %v1186, 0.0
        %1191 = vrot.lane.b32.xlu0 %v1187, 17
        %v1192 = vpop.permute.xlu0 %1191
        %1193 = vrot.lane.b32.xlu0 %v1189, 17
        %v1194 = vpop.permute.xlu0 %1193
        %1195 = vrot.lane.b32.xlu0 %v1188, 17
        %v1196 = vpop.permute.xlu0 %1195
        %1197 = vrot.lane.b32.xlu0 %v1190, 17
        %v1198 = vpop.permute.xlu0 %1197
        %v1199 = vsel %vm281, %v1192, %v1196
        %v1200 = vsel %vm281, %v1194, %v1198
        %v1201 = vsel %vm281, %v1196, %v1192
        %v1202 = vsel %vm281, %v1198, %v1194
        %v1203 = vmul.f32 %v1201, %v255
        %v1204 = vmul.f32 %v1199, %v256
        %v1205 = vmul.f32 %v1202, %v255
        %v1206 = vmul.f32 %v1200, %v256
        %v1207 = vld [vmem:[#allocation2] sm:$0xff]
        %v1208 = vld [vmem:[#allocation2 + $0x8] sm:$0xff]
        %1209 = vrot.lane.b32.xlu0 %v1187, 16
        %v1210 = vpop.permute.xlu0 %1209
        %1211 = vrot.lane.b32.xlu0 %v1189, 16
        %v1212 = vpop.permute.xlu0 %1211
        %1213 = vrot.lane.b32.xlu0 %v1188, 16
        %v1214 = vpop.permute.xlu0 %1213
        %1215 = vrot.lane.b32.xlu0 %v1190, 16
        %v1216 = vpop.permute.xlu0 %1215
        %v1217 = vsel %vm292, %v1210, %v1214
        %v1218 = vsel %vm292, %v1212, %v1216
        %v1219 = vsel %vm292, %v1214, %v1210
        %v1220 = vsel %vm292, %v1216, %v1212
        %v1221 = vmul.f32 %v1219, %v257
        %v1222 = vmul.f32 %v1217, %v258
        %v1223 = vmul.f32 %v1220, %v257
        %v1224 = vmul.f32 %v1218, %v258
        %s1225 = scalar_lea.vmem [#allocation2], 16
        %v1226 = vld [vmem:[%s1225] sm:$0xff]
        %v1227 = vld [vmem:[%s1225 + $0x8] sm:$0xff]
        %vm1228 = vcmask 130048
        %v1230 = vsel %vm1228, %v1226, 0
        %v1233 = vsel %vm1228, %v1227, 0
        %1235 = vmatprep.subr.mxu0 %v1222
        %1236 = vmatpush1.msra.mxu0 %v1221
        %1237 = vmatprep.subr.mxu0 %v1224
        %1238 = vmatpush1.msra.mxu0 %v1223
        %1239 = vmatprep.subr.mxu0 0.0
        %1240 = vmatpush1.msra.mxu0 0.0
        %1241 = vmatprep.subr.mxu0 0.0
        %1242 = vmatpush1.msra.mxu0 0.0
        %1243 = vmatprep.subr.mxu0 0.0
        %1244 = vmatpush1.msra.mxu0 0.0
        %1245 = vmatprep.subr.mxu0 0.0
        %1246 = vmatpush1.msra.mxu0 0.0
        %1247 = vmatprep.subr.mxu0 0.0
        %1248 = vmatpush1.msra.mxu0 0.0
        %1249 = vmatprep.subr.mxu0 0.0
        %1250 = vmatpush1.msra.mxu0 0.0
        %1251 = vmatprep.subr.mxu0 0.0
        %1252 = vmatpush1.msra.mxu0 0.0
        %1253 = vmatprep.subr.mxu0 0.0
        %1254 = vmatpush1.msra.mxu0 0.0
        %1255 = vmatprep.subr.mxu0 0.0
        %1256 = vmatpush1.msra.mxu0 0.0
        %1257 = vmatprep.subr.mxu0 0.0
        %1258 = vmatpush1.msra.mxu0 0.0
        %1259 = vmatprep.subr.mxu0 0.0
        %1260 = vmatpush1.msra.mxu0 0.0
        %1261 = vmatprep.subr.mxu0 0.0
        %1262 = vmatpush1.msra.mxu0 0.0
        %1263 = vmatprep.subr.mxu0 0.0
        %1264 = vmatpush1.msra.mxu0 0.0
        %1265 = vmatprep.subr.mxu0 0.0
        %1266 = vmatpush1.msra.mxu0 0.0
        %1267 = vmatprep.subr.mxu0 0.0
        %1268 = vmatpush1.msra.mxu0 0.0
        %1269 = vmatprep.subr.mxu0 0.0
        %1270 = vmatpush1.msra.mxu0 0.0
        %1271 = vmatprep.subr.mxu0 0.0
        %1272 = vmatpush1.msra.mxu0 0.0
        %1273 = vmatprep.subr.mxu0 0.0
        %1274 = vmatpush1.msra.mxu0 0.0
        %1275 = vmatprep.subr.mxu0 0.0
        %1276 = vmatpush1.msra.mxu0 0.0
        %1277 = vmatprep.subr.mxu0 0.0
        %1278 = vmatpush1.msra.mxu0 0.0
        %1279 = vmatprep.subr.mxu0 0.0
        %1280 = vmatpush1.msra.mxu0 0.0
        %1281 = vmatprep.subr.mxu0 0.0
        %1282 = vmatpush1.msra.mxu0 0.0
        %1283 = vmatprep.subr.mxu0 0.0
        %1284 = vmatpush1.msra.mxu0 0.0
        %1285 = vmatprep.subr.mxu0 0.0
        %1286 = vmatpush1.msra.mxu0 0.0
        %1287 = vmatprep.subr.mxu0 0.0
        %1288 = vmatpush1.msra.mxu0 0.0
        %1289 = vmatprep.subr.mxu0 0.0
        %1290 = vmatpush1.msra.mxu0 0.0
        %1291 = vmatprep.subr.mxu0 0.0
        %1292 = vmatpush1.msra.mxu0 0.0
        %1293 = vmatprep.subr.mxu0 0.0
        %1294 = vmatpush1.msra.mxu0 0.0
        %1295 = vmatprep.subr.mxu0 0.0
        %1296 = vmatpush1.msra.mxu0 0.0
        %1297 = vmatprep.subr.mxu0 0.0
        %1298 = vmatpush1.msra.mxu0 0.0
        %1299 = vmatprep.mubr.f32.mxu0 0.0
        %1300 = vmatmul.mubr.f32.gmra.mrb[0].mxu0 %v1230
        %v1301 = vpop.f32.mrb[0].mxu0
        %v1302 = vadd.f32 0.0, %v1301
        %v1303 = vpop.f32.mrb[0].mxu0
        %v1304 = vadd.f32 0.0, %v1303
        %1305 = vmatprep.mubr.f32.mxu0 0.0
        %1306 = vmatmul.mubr.f32.gmra.mrb[0].mxu0 %v1233
        %v1307 = vpop.f32.mrb[0].mxu0
        %v1308 = vadd.f32 0.0, %v1307
        %v1309 = vpop.f32.mrb[0].mxu0
        %v1310 = vadd.f32 0.0, %v1309
        %1311 = vdwg.mxu0
        %v1313 = vsel %vm1228, %v1207, 0
        %v1316 = vsel %vm1228, %v1208, 0
        %1318 = vmatprep.subr.mxu0 %v1204
        %1319 = vmatpush1.msra.mxu0 %v1203
        %1320 = vmatprep.subr.mxu0 %v1206
        %1321 = vmatpush1.msra.mxu0 %v1205
        %1322 = vmatprep.subr.mxu0 0.0
        %1323 = vmatpush1.msra.mxu0 0.0
        %1324 = vmatprep.subr.mxu0 0.0
        %1325 = vmatpush1.msra.mxu0 0.0
        %1326 = vmatprep.subr.mxu0 0.0
        %1327 = vmatpush1.msra.mxu0 0.0
        %1328 = vmatprep.subr.mxu0 0.0
        %1329 = vmatpush1.msra.mxu0 0.0
        %1330 = vmatprep.subr.mxu0 0.0
        %1331 = vmatpush1.msra.mxu0 0.0
        %1332 = vmatprep.subr.mxu0 0.0
        %1333 = vmatpush1.msra.mxu0 0.0
        %1334 = vmatprep.subr.mxu0 0.0
        %1335 = vmatpush1.msra.mxu0 0.0
        %1336 = vmatprep.subr.mxu0 0.0
        %1337 = vmatpush1.msra.mxu0 0.0
        %1338 = vmatprep.subr.mxu0 0.0
        %1339 = vmatpush1.msra.mxu0 0.0
        %1340 = vmatprep.subr.mxu0 0.0
        %1341 = vmatpush1.msra.mxu0 0.0
        %1342 = vmatprep.subr.mxu0 0.0
        %1343 = vmatpush1.msra.mxu0 0.0
        %1344 = vmatprep.subr.mxu0 0.0
        %1345 = vmatpush1.msra.mxu0 0.0
        %1346 = vmatprep.subr.mxu0 0.0
        %1347 = vmatpush1.msra.mxu0 0.0
        %1348 = vmatprep.subr.mxu0 0.0
        %1349 = vmatpush1.msra.mxu0 0.0
        %1350 = vmatprep.subr.mxu0 0.0
        %1351 = vmatpush1.msra.mxu0 0.0
        %1352 = vmatprep.subr.mxu0 0.0
        %1353 = vmatpush1.msra.mxu0 0.0
        %1354 = vmatprep.subr.mxu0 0.0
        %1355 = vmatpush1.msra.mxu0 0.0
        %1356 = vmatprep.subr.mxu0 0.0
        %1357 = vmatpush1.msra.mxu0 0.0
        %1358 = vmatprep.subr.mxu0 0.0
        %1359 = vmatpush1.msra.mxu0 0.0
        %1360 = vmatprep.subr.mxu0 0.0
        %1361 = vmatpush1.msra.mxu0 0.0
        %1362 = vmatprep.subr.mxu0 0.0
        %1363 = vmatpush1.msra.mxu0 0.0
        %1364 = vmatprep.subr.mxu0 0.0
        %1365 = vmatpush1.msra.mxu0 0.0
        %1366 = vmatprep.subr.mxu0 0.0
        %1367 = vmatpush1.msra.mxu0 0.0
        %1368 = vmatprep.subr.mxu0 0.0
        %1369 = vmatpush1.msra.mxu0 0.0
        %1370 = vmatprep.subr.mxu0 0.0
        %1371 = vmatpush1.msra.mxu0 0.0
        %1372 = vmatprep.subr.mxu0 0.0
        %1373 = vmatpush1.msra.mxu0 0.0
        %1374 = vmatprep.subr.mxu0 0.0
        %1375 = vmatpush1.msra.mxu0 0.0
        %1376 = vmatprep.subr.mxu0 0.0
        %1377 = vmatpush1.msra.mxu0 0.0
        %1378 = vmatprep.subr.mxu0 0.0
        %1379 = vmatpush1.msra.mxu0 0.0
        %1380 = vmatprep.subr.mxu0 0.0
        %1381 = vmatpush1.msra.mxu0 0.0
        %1382 = vmatprep.mubr.f32.mxu0 0.0
        %1383 = vmatmul.mubr.f32.gmra.mrb[0].mxu0 %v1313
        %v1384 = vpop.f32.mrb[0].mxu0
        %v1385 = vadd.f32 %v1302, %v1384
        %v1386 = vpop.f32.mrb[0].mxu0
        %v1387 = vadd.f32 %v1304, %v1386
        %1388 = vmatprep.mubr.f32.mxu0 0.0
        %1389 = vmatmul.mubr.f32.gmra.mrb[0].mxu0 %v1316
        %v1390 = vpop.f32.mrb[0].mxu0
        %v1391 = vadd.f32 %v1308, %v1390
        %v1392 = vpop.f32.mrb[0].mxu0
        %v1393 = vadd.f32 %v1310, %v1392
        %1394 = vdwg.mxu0
        %1395 = vrot.lane.b32.xlu0 %v1187, 15
        %v1396 = vpop.permute.xlu0 %1395
        %1397 = vrot.lane.b32.xlu0 %v1189, 15
        %v1398 = vpop.permute.xlu0 %1397
        %1399 = vrot.lane.b32.xlu0 %v1188, 15
        %v1400 = vpop.permute.xlu0 %1399
        %1401 = vrot.lane.b32.xlu0 %v1190, 15
        %v1402 = vpop.permute.xlu0 %1401
        %v1403 = vsel %vm471, %v1396, %v1400
        %v1404 = vsel %vm471, %v1398, %v1402
        %v1405 = vsel %vm471, %v1400, %v1396
        %v1406 = vsel %vm471, %v1402, %v1398
        %v1407 = vmul.f32 %v1405, %v261
        %v1408 = vmul.f32 %v1403, %v262
        %v1409 = vmul.f32 %v1406, %v261
        %v1410 = vmul.f32 %v1404, %v262
        %s1411 = scalar_lea.vmem [#allocation2], 32
        %v1412 = vld [vmem:[%s1411] sm:$0xff]
        %v1413 = vld [vmem:[%s1411 + $0x8] sm:$0xff]
        %v1415 = vsel %vm1228, %v1412, 0
        %v1418 = vsel %vm1228, %v1413, 0
        %1420 = vmatprep.subr.mxu0 %v1408
        %1421 = vmatpush1.msra.mxu0 %v1407
        %1422 = vmatprep.subr.mxu0 %v1410
        %1423 = vmatpush1.msra.mxu0 %v1409
        %1424 = vmatprep.subr.mxu0 0.0
        %1425 = vmatpush1.msra.mxu0 0.0
        %1426 = vmatprep.subr.mxu0 0.0
        %1427 = vmatpush1.msra.mxu0 0.0
        %1428 = vmatprep.subr.mxu0 0.0
        %1429 = vmatpush1.msra.mxu0 0.0
        %1430 = vmatprep.subr.mxu0 0.0
        %1431 = vmatpush1.msra.mxu0 0.0
        %1432 = vmatprep.subr.mxu0 0.0
        %1433 = vmatpush1.msra.mxu0 0.0
        %1434 = vmatprep.subr.mxu0 0.0
        %1435 = vmatpush1.msra.mxu0 0.0
        %1436 = vmatprep.subr.mxu0 0.0
        %1437 = vmatpush1.msra.mxu0 0.0
        %1438 = vmatprep.subr.mxu0 0.0
        %1439 = vmatpush1.msra.mxu0 0.0
        %1440 = vmatprep.subr.mxu0 0.0
        %1441 = vmatpush1.msra.mxu0 0.0
        %1442 = vmatprep.subr.mxu0 0.0
        %1443 = vmatpush1.msra.mxu0 0.0
        %1444 = vmatprep.subr.mxu0 0.0
        %1445 = vmatpush1.msra.mxu0 0.0
        %1446 = vmatprep.subr.mxu0 0.0
        %1447 = vmatpush1.msra.mxu0 0.0
        %1448 = vmatprep.subr.mxu0 0.0
        %1449 = vmatpush1.msra.mxu0 0.0
        %1450 = vmatprep.subr.mxu0 0.0
        %1451 = vmatpush1.msra.mxu0 0.0
        %1452 = vmatprep.subr.mxu0 0.0
        %1453 = vmatpush1.msra.mxu0 0.0
        %1454 = vmatprep.subr.mxu0 0.0
        %1455 = vmatpush1.msra.mxu0 0.0
        %1456 = vmatprep.subr.mxu0 0.0
        %1457 = vmatpush1.msra.mxu0 0.0
        %1458 = vmatprep.subr.mxu0 0.0
        %1459 = vmatpush1.msra.mxu0 0.0
        %1460 = vmatprep.subr.mxu0 0.0
        %1461 = vmatpush1.msra.mxu0 0.0
        %1462 = vmatprep.subr.mxu0 0.0
        %1463 = vmatpush1.msra.mxu0 0.0
        %1464 = vmatprep.subr.mxu0 0.0
        %1465 = vmatpush1.msra.mxu0 0.0
        %1466 = vmatprep.subr.mxu0 0.0
        %1467 = vmatpush1.msra.mxu0 0.0
        %1468 = vmatprep.subr.mxu0 0.0
        %1469 = vmatpush1.msra.mxu0 0.0
        %1470 = vmatprep.subr.mxu0 0.0
        %1471 = vmatpush1.msra.mxu0 0.0
        %1472 = vmatprep.subr.mxu0 0.0
        %1473 = vmatpush1.msra.mxu0 0.0
        %1474 = vmatprep.subr.mxu0 0.0
        %1475 = vmatpush1.msra.mxu0 0.0
        %1476 = vmatprep.subr.mxu0 0.0
        %1477 = vmatpush1.msra.mxu0 0.0
        %1478 = vmatprep.subr.mxu0 0.0
        %1479 = vmatpush1.msra.mxu0 0.0
        %1480 = vmatprep.subr.mxu0 0.0
        %1481 = vmatpush1.msra.mxu0 0.0
        %1482 = vmatprep.subr.mxu0 0.0
        %1483 = vmatpush1.msra.mxu0 0.0
        %1484 = vmatprep.mubr.f32.mxu0 0.0
        %1485 = vmatmul.mubr.f32.gmra.mrb[0].mxu0 %v1415
        %v1486 = vpop.f32.mrb[0].mxu0
        %v1487 = vadd.f32 0.0, %v1486
        %v1488 = vpop.f32.mrb[0].mxu0
        %v1489 = vadd.f32 0.0, %v1488
        %1490 = vmatprep.mubr.f32.mxu0 0.0
        %1491 = vmatmul.mubr.f32.gmra.mrb[0].mxu0 %v1418
        %v1492 = vpop.f32.mrb[0].mxu0
        %v1493 = vadd.f32 0.0, %v1492
        %v1494 = vpop.f32.mrb[0].mxu0
        %v1495 = vadd.f32 0.0, %v1494
        %1496 = vdwg.mxu0
        %v1497 = vadd.f32 %v1385, %v1487
        %v1498 = vadd.f32 %v1387, %v1489
        %v1499 = vadd.f32 %v1391, %v1493
        %v1500 = vadd.f32 %v1393, %v1495
        %1501 = vrot.lane.b32.xlu0 %v1187, 1
        %v1502 = vpop.permute.xlu0 %1501
        %1503 = vrot.lane.b32.xlu0 %v1189, 1
        %v1504 = vpop.permute.xlu0 %1503
        %1505 = vrot.lane.b32.xlu0 %v1188, 1
        %v1506 = vpop.permute.xlu0 %1505
        %1507 = vrot.lane.b32.xlu0 %v1190, 1
        %v1508 = vpop.permute.xlu0 %1507
        %v1509 = vsel %vm570, %v1502, %v1506
        %v1510 = vsel %vm570, %v1504, %v1508
        %v1511 = vsel %vm570, %v1506, %v1502
        %v1512 = vsel %vm570, %v1508, %v1504
        %v1513 = vmul.f32 %v1511, %v263
        %v1514 = vmul.f32 %v1509, %v264
        %v1515 = vmul.f32 %v1512, %v263
        %v1516 = vmul.f32 %v1510, %v264
        %s1517 = scalar_lea.vmem [#allocation2], 48
        %v1518 = vld [vmem:[%s1517] sm:$0xff]
        %v1519 = vld [vmem:[%s1517 + $0x8] sm:$0xff]
        %v1521 = vsel %vm1228, %v1518, 0
        %v1524 = vsel %vm1228, %v1519, 0
        %1526 = vmatprep.subr.mxu0 %v1514
        %1527 = vmatpush1.msra.mxu0 %v1513
        %1528 = vmatprep.subr.mxu0 %v1516
        %1529 = vmatpush1.msra.mxu0 %v1515
        %1530 = vmatprep.subr.mxu0 0.0
        %1531 = vmatpush1.msra.mxu0 0.0
        %1532 = vmatprep.subr.mxu0 0.0
        %1533 = vmatpush1.msra.mxu0 0.0
        %1534 = vmatprep.subr.mxu0 0.0
        %1535 = vmatpush1.msra.mxu0 0.0
        %1536 = vmatprep.subr.mxu0 0.0
        %1537 = vmatpush1.msra.mxu0 0.0
        %1538 = vmatprep.subr.mxu0 0.0
        %1539 = vmatpush1.msra.mxu0 0.0
        %1540 = vmatprep.subr.mxu0 0.0
        %1541 = vmatpush1.msra.mxu0 0.0
        %1542 = vmatprep.subr.mxu0 0.0
        %1543 = vmatpush1.msra.mxu0 0.0
        %1544 = vmatprep.subr.mxu0 0.0
        %1545 = vmatpush1.msra.mxu0 0.0
        %1546 = vmatprep.subr.mxu0 0.0
        %1547 = vmatpush1.msra.mxu0 0.0
        %1548 = vmatprep.subr.mxu0 0.0
        %1549 = vmatpush1.msra.mxu0 0.0
        %1550 = vmatprep.subr.mxu0 0.0
        %1551 = vmatpush1.msra.mxu0 0.0
        %1552 = vmatprep.subr.mxu0 0.0
        %1553 = vmatpush1.msra.mxu0 0.0
        %1554 = vmatprep.subr.mxu0 0.0
        %1555 = vmatpush1.msra.mxu0 0.0
        %1556 = vmatprep.subr.mxu0 0.0
        %1557 = vmatpush1.msra.mxu0 0.0
        %1558 = vmatprep.subr.mxu0 0.0
        %1559 = vmatpush1.msra.mxu0 0.0
        %1560 = vmatprep.subr.mxu0 0.0
        %1561 = vmatpush1.msra.mxu0 0.0
        %1562 = vmatprep.subr.mxu0 0.0
        %1563 = vmatpush1.msra.mxu0 0.0
        %1564 = vmatprep.subr.mxu0 0.0
        %1565 = vmatpush1.msra.mxu0 0.0
        %1566 = vmatprep.subr.mxu0 0.0
        %1567 = vmatpush1.msra.mxu0 0.0
        %1568 = vmatprep.subr.mxu0 0.0
        %1569 = vmatpush1.msra.mxu0 0.0
        %1570 = vmatprep.subr.mxu0 0.0
        %1571 = vmatpush1.msra.mxu0 0.0
        %1572 = vmatprep.subr.mxu0 0.0
        %1573 = vmatpush1.msra.mxu0 0.0
        %1574 = vmatprep.subr.mxu0 0.0
        %1575 = vmatpush1.msra.mxu0 0.0
        %1576 = vmatprep.subr.mxu0 0.0
        %1577 = vmatpush1.msra.mxu0 0.0
        %1578 = vmatprep.subr.mxu0 0.0
        %1579 = vmatpush1.msra.mxu0 0.0
        %1580 = vmatprep.subr.mxu0 0.0
        %1581 = vmatpush1.msra.mxu0 0.0
        %1582 = vmatprep.subr.mxu0 0.0
        %1583 = vmatpush1.msra.mxu0 0.0
        %1584 = vmatprep.subr.mxu0 0.0
        %1585 = vmatpush1.msra.mxu0 0.0
        %1586 = vmatprep.subr.mxu0 0.0
        %1587 = vmatpush1.msra.mxu0 0.0
        %1588 = vmatprep.subr.mxu0 0.0
        %1589 = vmatpush1.msra.mxu0 0.0
        %1590 = vmatprep.mubr.f32.mxu0 0.0
        %1591 = vmatmul.mubr.f32.gmra.mrb[0].mxu0 %v1521
        %v1592 = vpop.f32.mrb[0].mxu0
        %v1593 = vadd.f32 0.0, %v1592
        %v1594 = vpop.f32.mrb[0].mxu0
        %v1595 = vadd.f32 0.0, %v1594
        %1596 = vmatprep.mubr.f32.mxu0 0.0
        %1597 = vmatmul.mubr.f32.gmra.mrb[0].mxu0 %v1524
        %v1598 = vpop.f32.mrb[0].mxu0
        %v1599 = vadd.f32 0.0, %v1598
        %v1600 = vpop.f32.mrb[0].mxu0
        %v1601 = vadd.f32 0.0, %v1600
        %1602 = vdwg.mxu0
        %v1603 = vadd.f32 %v1497, %v1593
        %v1604 = vadd.f32 %v1498, %v1595
        %v1605 = vadd.f32 %v1499, %v1599
        %v1606 = vadd.f32 %v1500, %v1601
        %s1607 = scalar_lea.vmem [#allocation2], 64
        %v1608 = vld [vmem:[%s1607] sm:$0xff]
        %v1609 = vld [vmem:[%s1607 + $0x8] sm:$0xff]
        %v1611 = vsel %vm1228, %v1608, 0
        %v1614 = vsel %vm1228, %v1609, 0
        %1616 = vmatprep.subr.mxu0 %v1188
        %1617 = vmatpush1.msra.mxu0 %v1187
        %1618 = vmatprep.subr.mxu0 %v1190
        %1619 = vmatpush1.msra.mxu0 %v1189
        %1620 = vmatprep.subr.mxu0 0.0
        %1621 = vmatpush1.msra.mxu0 0.0
        %1622 = vmatprep.subr.mxu0 0.0
        %1623 = vmatpush1.msra.mxu0 0.0
        %1624 = vmatprep.subr.mxu0 0.0
        %1625 = vmatpush1.msra.mxu0 0.0
        %1626 = vmatprep.subr.mxu0 0.0
        %1627 = vmatpush1.msra.mxu0 0.0
        %1628 = vmatprep.subr.mxu0 0.0
        %1629 = vmatpush1.msra.mxu0 0.0
        %1630 = vmatprep.subr.mxu0 0.0
        %1631 = vmatpush1.msra.mxu0 0.0
        %1632 = vmatprep.subr.mxu0 0.0
        %1633 = vmatpush1.msra.mxu0 0.0
        %1634 = vmatprep.subr.mxu0 0.0
        %1635 = vmatpush1.msra.mxu0 0.0
        %1636 = vmatprep.subr.mxu0 0.0
        %1637 = vmatpush1.msra.mxu0 0.0
        %1638 = vmatprep.subr.mxu0 0.0
        %1639 = vmatpush1.msra.mxu0 0.0
        %1640 = vmatprep.subr.mxu0 0.0
        %1641 = vmatpush1.msra.mxu0 0.0
        %1642 = vmatprep.subr.mxu0 0.0
        %1643 = vmatpush1.msra.mxu0 0.0
        %1644 = vmatprep.subr.mxu0 0.0
        %1645 = vmatpush1.msra.mxu0 0.0
        %1646 = vmatprep.subr.mxu0 0.0
        %1647 = vmatpush1.msra.mxu0 0.0
        %1648 = vmatprep.subr.mxu0 0.0
        %1649 = vmatpush1.msra.mxu0 0.0
        %1650 = vmatprep.subr.mxu0 0.0
        %1651 = vmatpush1.msra.mxu0 0.0
        %1652 = vmatprep.subr.mxu0 0.0
        %1653 = vmatpush1.msra.mxu0 0.0
        %1654 = vmatprep.subr.mxu0 0.0
        %1655 = vmatpush1.msra.mxu0 0.0
        %1656 = vmatprep.subr.mxu0 0.0
        %1657 = vmatpush1.msra.mxu0 0.0
        %1658 = vmatprep.subr.mxu0 0.0
        %1659 = vmatpush1.msra.mxu0 0.0
        %1660 = vmatprep.subr.mxu0 0.0
        %1661 = vmatpush1.msra.mxu0 0.0
        %1662 = vmatprep.subr.mxu0 0.0
        %1663 = vmatpush1.msra.mxu0 0.0
        %1664 = vmatprep.subr.mxu0 0.0
        %1665 = vmatpush1.msra.mxu0 0.0
        %1666 = vmatprep.subr.mxu0 0.0
        %1667 = vmatpush1.msra.mxu0 0.0
        %1668 = vmatprep.subr.mxu0 0.0
        %1669 = vmatpush1.msra.mxu0 0.0
        %1670 = vmatprep.subr.mxu0 0.0
        %1671 = vmatpush1.msra.mxu0 0.0
        %1672 = vmatprep.subr.mxu0 0.0
        %1673 = vmatpush1.msra.mxu0 0.0
        %1674 = vmatprep.subr.mxu0 0.0
        %1675 = vmatpush1.msra.mxu0 0.0
        %1676 = vmatprep.subr.mxu0 0.0
        %1677 = vmatpush1.msra.mxu0 0.0
        %1678 = vmatprep.subr.mxu0 0.0
        %1679 = vmatpush1.msra.mxu0 0.0
        %1680 = vmatprep.mubr.f32.mxu0 0.0
        %1681 = vmatmul.mubr.f32.gmra.mrb[0].mxu0 %v1611
        %v1682 = vpop.f32.mrb[0].mxu0
        %v1683 = vadd.f32 0.0, %v1682
        %v1684 = vpop.f32.mrb[0].mxu0
        %v1685 = vadd.f32 0.0, %v1684
        %1686 = vmatprep.mubr.f32.mxu0 0.0
        %1687 = vmatmul.mubr.f32.gmra.mrb[0].mxu0 %v1614
        %v1688 = vpop.f32.mrb[0].mxu0
        %v1689 = vadd.f32 0.0, %v1688
        %v1690 = vpop.f32.mrb[0].mxu0
        %v1691 = vadd.f32 0.0, %v1690
        %1692 = vdwg.mxu0
        %v1693 = vadd.f32 %v1603, %v1683
        %v1694 = vadd.f32 %v1604, %v1685
        %v1695 = vadd.f32 %v1605, %v1689
        %v1696 = vadd.f32 %v1606, %v1691
        %1697 = vrot.lane.b32.xlu0 %v1187, 127
        %v1698 = vpop.permute.xlu0 %1697
        %1699 = vrot.lane.b32.xlu0 %v1189, 127
        %v1700 = vpop.permute.xlu0 %1699
        %1701 = vrot.lane.b32.xlu0 %v1188, 127
        %v1702 = vpop.permute.xlu0 %1701
        %1703 = vrot.lane.b32.xlu0 %v1190, 127
        %v1704 = vpop.permute.xlu0 %1703
        %v1705 = vsel %vm759, %v1698, %v1702
        %v1706 = vsel %vm759, %v1700, %v1704
        %v1707 = vsel %vm759, %v1702, %v1698
        %v1708 = vsel %vm759, %v1704, %v1700
        %v1709 = vmul.f32 %v1705, %v265
        %v1710 = vmul.f32 %v1707, %v266
        %v1711 = vmul.f32 %v1706, %v265
        %v1712 = vmul.f32 %v1708, %v266
        %s1713 = scalar_lea.vmem [#allocation2], 80
        %v1714 = vld [vmem:[%s1713] sm:$0xff]
        %v1715 = vld [vmem:[%s1713 + $0x8] sm:$0xff]
        %v1717 = vsel %vm1228, %v1714, 0
        %v1720 = vsel %vm1228, %v1715, 0
        %1722 = vmatprep.subr.mxu0 %v1710
        %1723 = vmatpush1.msra.mxu0 %v1709
        %1724 = vmatprep.subr.mxu0 %v1712
        %1725 = vmatpush1.msra.mxu0 %v1711
        %1726 = vmatprep.subr.mxu0 0.0
        %1727 = vmatpush1.msra.mxu0 0.0
        %1728 = vmatprep.subr.mxu0 0.0
        %1729 = vmatpush1.msra.mxu0 0.0
        %1730 = vmatprep.subr.mxu0 0.0
        %1731 = vmatpush1.msra.mxu0 0.0
        %1732 = vmatprep.subr.mxu0 0.0
        %1733 = vmatpush1.msra.mxu0 0.0
        %1734 = vmatprep.subr.mxu0 0.0
        %1735 = vmatpush1.msra.mxu0 0.0
        %1736 = vmatprep.subr.mxu0 0.0
        %1737 = vmatpush1.msra.mxu0 0.0
        %1738 = vmatprep.subr.mxu0 0.0
        %1739 = vmatpush1.msra.mxu0 0.0
        %1740 = vmatprep.subr.mxu0 0.0
        %1741 = vmatpush1.msra.mxu0 0.0
        %1742 = vmatprep.subr.mxu0 0.0
        %1743 = vmatpush1.msra.mxu0 0.0
        %1744 = vmatprep.subr.mxu0 0.0
        %1745 = vmatpush1.msra.mxu0 0.0
        %1746 = vmatprep.subr.mxu0 0.0
        %1747 = vmatpush1.msra.mxu0 0.0
        %1748 = vmatprep.subr.mxu0 0.0
        %1749 = vmatpush1.msra.mxu0 0.0
        %1750 = vmatprep.subr.mxu0 0.0
        %1751 = vmatpush1.msra.mxu0 0.0
        %1752 = vmatprep.subr.mxu0 0.0
        %1753 = vmatpush1.msra.mxu0 0.0
        %1754 = vmatprep.subr.mxu0 0.0
        %1755 = vmatpush1.msra.mxu0 0.0
        %1756 = vmatprep.subr.mxu0 0.0
        %1757 = vmatpush1.msra.mxu0 0.0
        %1758 = vmatprep.subr.mxu0 0.0
        %1759 = vmatpush1.msra.mxu0 0.0
        %1760 = vmatprep.subr.mxu0 0.0
        %1761 = vmatpush1.msra.mxu0 0.0
        %1762 = vmatprep.subr.mxu0 0.0
        %1763 = vmatpush1.msra.mxu0 0.0
        %1764 = vmatprep.subr.mxu0 0.0
        %1765 = vmatpush1.msra.mxu0 0.0
        %1766 = vmatprep.subr.mxu0 0.0
        %1767 = vmatpush1.msra.mxu0 0.0
        %1768 = vmatprep.subr.mxu0 0.0
        %1769 = vmatpush1.msra.mxu0 0.0
        %1770 = vmatprep.subr.mxu0 0.0
        %1771 = vmatpush1.msra.mxu0 0.0
        %1772 = vmatprep.subr.mxu0 0.0
        %1773 = vmatpush1.msra.mxu0 0.0
        %1774 = vmatprep.subr.mxu0 0.0
        %1775 = vmatpush1.msra.mxu0 0.0
        %1776 = vmatprep.subr.mxu0 0.0
        %1777 = vmatpush1.msra.mxu0 0.0
        %1778 = vmatprep.subr.mxu0 0.0
        %1779 = vmatpush1.msra.mxu0 0.0
        %1780 = vmatprep.subr.mxu0 0.0
        %1781 = vmatpush1.msra.mxu0 0.0
        %1782 = vmatprep.subr.mxu0 0.0
        %1783 = vmatpush1.msra.mxu0 0.0
        %1784 = vmatprep.subr.mxu0 0.0
        %1785 = vmatpush1.msra.mxu0 0.0
        %1786 = vmatprep.mubr.f32.mxu0 0.0
        %1787 = vmatmul.mubr.f32.gmra.mrb[0].mxu0 %v1717
        %v1788 = vpop.f32.mrb[0].mxu0
        %v1789 = vadd.f32 0.0, %v1788
        %v1790 = vpop.f32.mrb[0].mxu0
        %v1791 = vadd.f32 0.0, %v1790
        %1792 = vmatprep.mubr.f32.mxu0 0.0
        %1793 = vmatmul.mubr.f32.gmra.mrb[0].mxu0 %v1720
        %v1794 = vpop.f32.mrb[0].mxu0
        %v1795 = vadd.f32 0.0, %v1794
        %v1796 = vpop.f32.mrb[0].mxu0
        %v1797 = vadd.f32 0.0, %v1796
        %1798 = vdwg.mxu0
        %v1799 = vadd.f32 %v1693, %v1789
        %v1800 = vadd.f32 %v1694, %v1791
        %v1801 = vadd.f32 %v1695, %v1795
        %v1802 = vadd.f32 %v1696, %v1797
        %1803 = vrot.lane.b32.xlu0 %v1187, 113
        %v1804 = vpop.permute.xlu0 %1803
        %1805 = vrot.lane.b32.xlu0 %v1189, 113
        %v1806 = vpop.permute.xlu0 %1805
        %1807 = vrot.lane.b32.xlu0 %v1188, 113
        %v1808 = vpop.permute.xlu0 %1807
        %1809 = vrot.lane.b32.xlu0 %v1190, 113
        %v1810 = vpop.permute.xlu0 %1809
        %v1811 = vsel %vm858, %v1804, %v1808
        %v1812 = vsel %vm858, %v1806, %v1810
        %v1813 = vsel %vm858, %v1808, %v1804
        %v1814 = vsel %vm858, %v1810, %v1806
        %v1815 = vmul.f32 %v1811, %v269
        %v1816 = vmul.f32 %v1813, %v270
        %v1817 = vmul.f32 %v1812, %v269
        %v1818 = vmul.f32 %v1814, %v270
        %s1819 = scalar_lea.vmem [#allocation2], 96
        %v1820 = vld [vmem:[%s1819] sm:$0xff]
        %v1821 = vld [vmem:[%s1819 + $0x8] sm:$0xff]
        %v1823 = vsel %vm1228, %v1820, 0
        %v1826 = vsel %vm1228, %v1821, 0
        %1828 = vmatprep.subr.mxu0 %v1816
        %1829 = vmatpush1.msra.mxu0 %v1815
        %1830 = vmatprep.subr.mxu0 %v1818
        %1831 = vmatpush1.msra.mxu0 %v1817
        %1832 = vmatprep.subr.mxu0 0.0
        %1833 = vmatpush1.msra.mxu0 0.0
        %1834 = vmatprep.subr.mxu0 0.0
        %1835 = vmatpush1.msra.mxu0 0.0
        %1836 = vmatprep.subr.mxu0 0.0
        %1837 = vmatpush1.msra.mxu0 0.0
        %1838 = vmatprep.subr.mxu0 0.0
        %1839 = vmatpush1.msra.mxu0 0.0
        %1840 = vmatprep.subr.mxu0 0.0
        %1841 = vmatpush1.msra.mxu0 0.0
        %1842 = vmatprep.subr.mxu0 0.0
        %1843 = vmatpush1.msra.mxu0 0.0
        %1844 = vmatprep.subr.mxu0 0.0
        %1845 = vmatpush1.msra.mxu0 0.0
        %1846 = vmatprep.subr.mxu0 0.0
        %1847 = vmatpush1.msra.mxu0 0.0
        %1848 = vmatprep.subr.mxu0 0.0
        %1849 = vmatpush1.msra.mxu0 0.0
        %1850 = vmatprep.subr.mxu0 0.0
        %1851 = vmatpush1.msra.mxu0 0.0
        %1852 = vmatprep.subr.mxu0 0.0
        %1853 = vmatpush1.msra.mxu0 0.0
        %1854 = vmatprep.subr.mxu0 0.0
        %1855 = vmatpush1.msra.mxu0 0.0
        %1856 = vmatprep.subr.mxu0 0.0
        %1857 = vmatpush1.msra.mxu0 0.0
        %1858 = vmatprep.subr.mxu0 0.0
        %1859 = vmatpush1.msra.mxu0 0.0
        %1860 = vmatprep.subr.mxu0 0.0
        %1861 = vmatpush1.msra.mxu0 0.0
        %1862 = vmatprep.subr.mxu0 0.0
        %1863 = vmatpush1.msra.mxu0 0.0
        %1864 = vmatprep.subr.mxu0 0.0
        %1865 = vmatpush1.msra.mxu0 0.0
        %1866 = vmatprep.subr.mxu0 0.0
        %1867 = vmatpush1.msra.mxu0 0.0
        %1868 = vmatprep.subr.mxu0 0.0
        %1869 = vmatpush1.msra.mxu0 0.0
        %1870 = vmatprep.subr.mxu0 0.0
        %1871 = vmatpush1.msra.mxu0 0.0
        %1872 = vmatprep.subr.mxu0 0.0
        %1873 = vmatpush1.msra.mxu0 0.0
        %1874 = vmatprep.subr.mxu0 0.0
        %1875 = vmatpush1.msra.mxu0 0.0
        %1876 = vmatprep.subr.mxu0 0.0
        %1877 = vmatpush1.msra.mxu0 0.0
        %1878 = vmatprep.subr.mxu0 0.0
        %1879 = vmatpush1.msra.mxu0 0.0
        %1880 = vmatprep.subr.mxu0 0.0
        %1881 = vmatpush1.msra.mxu0 0.0
        %1882 = vmatprep.subr.mxu0 0.0
        %1883 = vmatpush1.msra.mxu0 0.0
        %1884 = vmatprep.subr.mxu0 0.0
        %1885 = vmatpush1.msra.mxu0 0.0
        %1886 = vmatprep.subr.mxu0 0.0
        %1887 = vmatpush1.msra.mxu0 0.0
        %1888 = vmatprep.subr.mxu0 0.0
        %1889 = vmatpush1.msra.mxu0 0.0
        %1890 = vmatprep.subr.mxu0 0.0
        %1891 = vmatpush1.msra.mxu0 0.0
        %1892 = vmatprep.mubr.f32.mxu0 0.0
        %1893 = vmatmul.mubr.f32.gmra.mrb[0].mxu0 %v1823
        %v1894 = vpop.f32.mrb[0].mxu0
        %v1895 = vadd.f32 0.0, %v1894
        %v1896 = vpop.f32.mrb[0].mxu0
        %v1897 = vadd.f32 0.0, %v1896
        %1898 = vmatprep.mubr.f32.mxu0 0.0
        %1899 = vmatmul.mubr.f32.gmra.mrb[0].mxu0 %v1826
        %v1900 = vpop.f32.mrb[0].mxu0
        %v1901 = vadd.f32 0.0, %v1900
        %v1902 = vpop.f32.mrb[0].mxu0
        %v1903 = vadd.f32 0.0, %v1902
        %1904 = vdwg.mxu0
        %v1905 = vadd.f32 %v1799, %v1895
        %v1906 = vadd.f32 %v1800, %v1897
        %v1907 = vadd.f32 %v1801, %v1901
        %v1908 = vadd.f32 %v1802, %v1903
        %1909 = vrot.lane.b32.xlu0 %v1187, 112
        %v1910 = vpop.permute.xlu0 %1909
        %1911 = vrot.lane.b32.xlu0 %v1189, 112
        %v1912 = vpop.permute.xlu0 %1911
        %1913 = vrot.lane.b32.xlu0 %v1188, 112
        %v1914 = vpop.permute.xlu0 %1913
        %1915 = vrot.lane.b32.xlu0 %v1190, 112
        %v1916 = vpop.permute.xlu0 %1915
        %v1917 = vsel %vm957, %v1910, %v1914
        %v1918 = vsel %vm957, %v1912, %v1916
        %v1919 = vsel %vm957, %v1914, %v1910
        %v1920 = vsel %vm957, %v1916, %v1912
        %v1921 = vmul.f32 %v1917, %v271
        %v1922 = vmul.f32 %v1919, %v272
        %v1923 = vmul.f32 %v1918, %v271
        %v1924 = vmul.f32 %v1920, %v272
        %s1925 = scalar_lea.vmem [#allocation2], 112
        %v1926 = vld [vmem:[%s1925] sm:$0xff]
        %v1927 = vld [vmem:[%s1925 + $0x8] sm:$0xff]
        %v1929 = vsel %vm1228, %v1926, 0
        %v1932 = vsel %vm1228, %v1927, 0
        %1934 = vmatprep.subr.mxu0 %v1922
        %1935 = vmatpush1.msra.mxu0 %v1921
        %1936 = vmatprep.subr.mxu0 %v1924
        %1937 = vmatpush1.msra.mxu0 %v1923
        %1938 = vmatprep.subr.mxu0 0.0
        %1939 = vmatpush1.msra.mxu0 0.0
        %1940 = vmatprep.subr.mxu0 0.0
        %1941 = vmatpush1.msra.mxu0 0.0
        %1942 = vmatprep.subr.mxu0 0.0
        %1943 = vmatpush1.msra.mxu0 0.0
        %1944 = vmatprep.subr.mxu0 0.0
        %1945 = vmatpush1.msra.mxu0 0.0
        %1946 = vmatprep.subr.mxu0 0.0
        %1947 = vmatpush1.msra.mxu0 0.0
        %1948 = vmatprep.subr.mxu0 0.0
        %1949 = vmatpush1.msra.mxu0 0.0
        %1950 = vmatprep.subr.mxu0 0.0
        %1951 = vmatpush1.msra.mxu0 0.0
        %1952 = vmatprep.subr.mxu0 0.0
        %1953 = vmatpush1.msra.mxu0 0.0
        %1954 = vmatprep.subr.mxu0 0.0
        %1955 = vmatpush1.msra.mxu0 0.0
        %1956 = vmatprep.subr.mxu0 0.0
        %1957 = vmatpush1.msra.mxu0 0.0
        %1958 = vmatprep.subr.mxu0 0.0
        %1959 = vmatpush1.msra.mxu0 0.0
        %1960 = vmatprep.subr.mxu0 0.0
        %1961 = vmatpush1.msra.mxu0 0.0
        %1962 = vmatprep.subr.mxu0 0.0
        %1963 = vmatpush1.msra.mxu0 0.0
        %1964 = vmatprep.subr.mxu0 0.0
        %1965 = vmatpush1.msra.mxu0 0.0
        %1966 = vmatprep.subr.mxu0 0.0
        %1967 = vmatpush1.msra.mxu0 0.0
        %1968 = vmatprep.subr.mxu0 0.0
        %1969 = vmatpush1.msra.mxu0 0.0
        %1970 = vmatprep.subr.mxu0 0.0
        %1971 = vmatpush1.msra.mxu0 0.0
        %1972 = vmatprep.subr.mxu0 0.0
        %1973 = vmatpush1.msra.mxu0 0.0
        %1974 = vmatprep.subr.mxu0 0.0
        %1975 = vmatpush1.msra.mxu0 0.0
        %1976 = vmatprep.subr.mxu0 0.0
        %1977 = vmatpush1.msra.mxu0 0.0
        %1978 = vmatprep.subr.mxu0 0.0
        %1979 = vmatpush1.msra.mxu0 0.0
        %1980 = vmatprep.subr.mxu0 0.0
        %1981 = vmatpush1.msra.mxu0 0.0
        %1982 = vmatprep.subr.mxu0 0.0
        %1983 = vmatpush1.msra.mxu0 0.0
        %1984 = vmatprep.subr.mxu0 0.0
        %1985 = vmatpush1.msra.mxu0 0.0
        %1986 = vmatprep.subr.mxu0 0.0
        %1987 = vmatpush1.msra.mxu0 0.0
        %1988 = vmatprep.subr.mxu0 0.0
        %1989 = vmatpush1.msra.mxu0 0.0
        %1990 = vmatprep.subr.mxu0 0.0
        %1991 = vmatpush1.msra.mxu0 0.0
        %1992 = vmatprep.subr.mxu0 0.0
        %1993 = vmatpush1.msra.mxu0 0.0
        %1994 = vmatprep.subr.mxu0 0.0
        %1995 = vmatpush1.msra.mxu0 0.0
        %1996 = vmatprep.subr.mxu0 0.0
        %1997 = vmatpush1.msra.mxu0 0.0
        %1998 = vmatprep.mubr.f32.mxu0 0.0
        %1999 = vmatmul.mubr.f32.gmra.mrb[0].mxu0 %v1929
        %v2000 = vpop.f32.mrb[0].mxu0
        %v2001 = vadd.f32 0.0, %v2000
        %v2002 = vpop.f32.mrb[0].mxu0
        %v2003 = vadd.f32 0.0, %v2002
        %2004 = vmatprep.mubr.f32.mxu0 0.0
        %2005 = vmatmul.mubr.f32.gmra.mrb[0].mxu0 %v1932
        %v2006 = vpop.f32.mrb[0].mxu0
        %v2007 = vadd.f32 0.0, %v2006
        %v2008 = vpop.f32.mrb[0].mxu0
        %v2009 = vadd.f32 0.0, %v2008
        %2010 = vdwg.mxu0
        %v2011 = vadd.f32 %v1905, %v2001
        %v2012 = vadd.f32 %v1906, %v2003
        %v2013 = vadd.f32 %v1907, %v2007
        %v2014 = vadd.f32 %v1908, %v2009
        %2015 = vrot.lane.b32.xlu0 %v1187, 111
        %v2016 = vpop.permute.xlu0 %2015
        %2017 = vrot.lane.b32.xlu0 %v1189, 111
        %v2018 = vpop.permute.xlu0 %2017
        %2019 = vrot.lane.b32.xlu0 %v1188, 111
        %v2020 = vpop.permute.xlu0 %2019
        %2021 = vrot.lane.b32.xlu0 %v1190, 111
        %v2022 = vpop.permute.xlu0 %2021
        %v2023 = vsel %vm1056, %v2016, %v2020
        %v2024 = vsel %vm1056, %v2018, %v2022
        %v2025 = vsel %vm1056, %v2020, %v2016
        %v2026 = vsel %vm1056, %v2022, %v2018
        %v2027 = vmul.f32 %v2023, %v275
        %v2028 = vmul.f32 %v2025, %v276
        %v2029 = vmul.f32 %v2024, %v275
        %v2030 = vmul.f32 %v2026, %v276
        %s2031 = scalar_lea.vmem [#allocation2], 128
        %v2032 = vld [vmem:[%s2031] sm:$0xff]
        %v2033 = vld [vmem:[%s2031 + $0x8] sm:$0xff]
        %v2035 = vsel %vm1228, %v2032, 0
        %v2038 = vsel %vm1228, %v2033, 0
        %2040 = vmatprep.subr.mxu0 %v2028
        %2041 = vmatpush1.msra.mxu0 %v2027
        %2042 = vmatprep.subr.mxu0 %v2030
        %2043 = vmatpush1.msra.mxu0 %v2029
        %2044 = vmatprep.subr.mxu0 0.0
        %2045 = vmatpush1.msra.mxu0 0.0
        %2046 = vmatprep.subr.mxu0 0.0
        %2047 = vmatpush1.msra.mxu0 0.0
        %2048 = vmatprep.subr.mxu0 0.0
        %2049 = vmatpush1.msra.mxu0 0.0
        %2050 = vmatprep.subr.mxu0 0.0
        %2051 = vmatpush1.msra.mxu0 0.0
        %2052 = vmatprep.subr.mxu0 0.0
        %2053 = vmatpush1.msra.mxu0 0.0
        %2054 = vmatprep.subr.mxu0 0.0
        %2055 = vmatpush1.msra.mxu0 0.0
        %2056 = vmatprep.subr.mxu0 0.0
        %2057 = vmatpush1.msra.mxu0 0.0
        %2058 = vmatprep.subr.mxu0 0.0
        %2059 = vmatpush1.msra.mxu0 0.0
        %2060 = vmatprep.subr.mxu0 0.0
        %2061 = vmatpush1.msra.mxu0 0.0
        %2062 = vmatprep.subr.mxu0 0.0
        %2063 = vmatpush1.msra.mxu0 0.0
        %2064 = vmatprep.subr.mxu0 0.0
        %2065 = vmatpush1.msra.mxu0 0.0
        %2066 = vmatprep.subr.mxu0 0.0
        %2067 = vmatpush1.msra.mxu0 0.0
        %2068 = vmatprep.subr.mxu0 0.0
        %2069 = vmatpush1.msra.mxu0 0.0
        %2070 = vmatprep.subr.mxu0 0.0
        %2071 = vmatpush1.msra.mxu0 0.0
        %2072 = vmatprep.subr.mxu0 0.0
        %2073 = vmatpush1.msra.mxu0 0.0
        %2074 = vmatprep.subr.mxu0 0.0
        %2075 = vmatpush1.msra.mxu0 0.0
        %2076 = vmatprep.subr.mxu0 0.0
        %2077 = vmatpush1.msra.mxu0 0.0
        %2078 = vmatprep.subr.mxu0 0.0
        %2079 = vmatpush1.msra.mxu0 0.0
        %2080 = vmatprep.subr.mxu0 0.0
        %2081 = vmatpush1.msra.mxu0 0.0
        %2082 = vmatprep.subr.mxu0 0.0
        %2083 = vmatpush1.msra.mxu0 0.0
        %2084 = vmatprep.subr.mxu0 0.0
        %2085 = vmatpush1.msra.mxu0 0.0
        %2086 = vmatprep.subr.mxu0 0.0
        %2087 = vmatpush1.msra.mxu0 0.0
        %2088 = vmatprep.subr.mxu0 0.0
        %2089 = vmatpush1.msra.mxu0 0.0
        %2090 = vmatprep.subr.mxu0 0.0
        %2091 = vmatpush1.msra.mxu0 0.0
        %2092 = vmatprep.subr.mxu0 0.0
        %2093 = vmatpush1.msra.mxu0 0.0
        %2094 = vmatprep.subr.mxu0 0.0
        %2095 = vmatpush1.msra.mxu0 0.0
        %2096 = vmatprep.subr.mxu0 0.0
        %2097 = vmatpush1.msra.mxu0 0.0
        %2098 = vmatprep.subr.mxu0 0.0
        %2099 = vmatpush1.msra.mxu0 0.0
        %2100 = vmatprep.subr.mxu0 0.0
        %2101 = vmatpush1.msra.mxu0 0.0
        %2102 = vmatprep.subr.mxu0 0.0
        %2103 = vmatpush1.msra.mxu0 0.0
        %2104 = vmatprep.mubr.f32.mxu0 0.0
        %2105 = vmatmul.mubr.f32.gmra.mrb[0].mxu0 %v2035
        %v2106 = vpop.f32.mrb[0].mxu0
        %v2107 = vadd.f32 0.0, %v2106
        %v2108 = vpop.f32.mrb[0].mxu0
        %v2109 = vadd.f32 0.0, %v2108
        %2110 = vmatprep.mubr.f32.mxu0 0.0
        %2111 = vmatmul.mubr.f32.gmra.mrb[0].mxu0 %v2038
        %v2112 = vpop.f32.mrb[0].mxu0
        %v2113 = vadd.f32 0.0, %v2112
        %v2114 = vpop.f32.mrb[0].mxu0
        %v2115 = vadd.f32 0.0, %v2114
        %2116 = vdwg.mxu0
        %v2117 = vadd.f32 %v2011, %v2107
        %v2118 = vadd.f32 %v2012, %v2109
        %v2119 = vadd.f32 %v2013, %v2113
        %v2120 = vadd.f32 %v2014, %v2115
        %v2121 = vadd.f32 %v2117, %v2118
        %2122 = vadd.xlane.f32.xlu0 %v2121
        %v2123 = vpop.xlane.xlu0 %2122
        %v2124 = vadd.f32 %v2119, %v2120
        %2125 = vadd.xlane.f32.xlu0 %v2124
        %v2126 = vpop.xlane.xlu0 %2125
        %v2127 = vmul.f32 %v2117, %v2117
        %v2128 = vmul.f32 %v2118, %v2118
        %v2129 = vmul.f32 %v2119, %v2119
        %v2130 = vmul.f32 %v2120, %v2120
        %v2131 = vadd.f32 %v2127, %v2128
        %2132 = vadd.xlane.f32.xlu0 %v2131
        %v2133 = vpop.xlane.xlu0 %2132
        %v2134 = vadd.f32 %v2129, %v2130
        %2135 = vadd.xlane.f32.xlu0 %v2134
        %v2136 = vpop.xlane.xlu0 %2135
        %v2137 = vmul.f32 %v2123, 0.00390625
        %v2138 = vmul.f32 %v2126, 0.00390625
        %v2139 = vmul.f32 %v2133, 0.00390625
        %v2140 = vmul.f32 %v2136, 0.00390625
        %v2141 = vmul.f32 %v2137, %v2137
        %v2142 = vmul.f32 %v2138, %v2138
        %v2143 = vsub.f32 %v2139, %v2141
        %v2144 = vsub.f32 %v2140, %v2142
        %v2145 = vsub.f32 %v2117, %v2137
        %v2146 = vsub.f32 %v2118, %v2137
        %v2147 = vsub.f32 %v2119, %v2138
        %v2148 = vsub.f32 %v2120, %v2138
        %v2149 = vadd.f32 %v2143, 1e-05
        %v2150 = vadd.f32 %v2144, 1e-05
        %v2151 = vrsqrt.pop %v2149
        %v2152 = vrsqrt.pop %v2150
        %v2153 = vmul.f32 %v2145, %v2151
        %v2154 = vmul.f32 %v2146, %v2151
        %v2155 = vmul.f32 %v2147, %v2152
        %v2156 = vmul.f32 %v2148, %v2152
        %v2157 = vmax.f32 %v2153, 0.0
        %v2158 = vmax.f32 %v2154, 0.0
        %v2159 = vmax.f32 %v2155, 0.0
        %v2160 = vmax.f32 %v2156, 0.0
        %2161 = vrot.lane.b32.xlu0 %v2157, 17
        %v2162 = vpop.permute.xlu0 %2161
        %2163 = vrot.lane.b32.xlu0 %v2159, 17
        %v2164 = vpop.permute.xlu0 %2163
        %2165 = vrot.lane.b32.xlu0 %v2158, 17
        %v2166 = vpop.permute.xlu0 %2165
        %2167 = vrot.lane.b32.xlu0 %v2160, 17
        %v2168 = vpop.permute.xlu0 %2167
        %v2169 = vsel %vm281, %v2162, %v2166
        %v2170 = vsel %vm281, %v2164, %v2168
        %v2171 = vsel %vm281, %v2166, %v2162
        %v2172 = vsel %vm281, %v2168, %v2164
        %v2173 = vmul.f32 %v2171, %v255
        %v2174 = vmul.f32 %v2169, %v256
        %v2175 = vmul.f32 %v2172, %v255
        %v2176 = vmul.f32 %v2170, %v256
        %s2177 = scalar_lea.vmem [#allocation2], 144
        %v2178 = vld [vmem:[%s2177] sm:$0xff]
        %v2179 = vld [vmem:[%s2177 + $0x8] sm:$0xff]
        %2180 = vrot.lane.b32.xlu0 %v2157, 16
        %v2181 = vpop.permute.xlu0 %2180
        %2182 = vrot.lane.b32.xlu0 %v2159, 16
        %v2183 = vpop.permute.xlu0 %2182
        %2184 = vrot.lane.b32.xlu0 %v2158, 16
        %v2185 = vpop.permute.xlu0 %2184
        %2186 = vrot.lane.b32.xlu0 %v2160, 16
        %v2187 = vpop.permute.xlu0 %2186
        %v2188 = vsel %vm292, %v2181, %v2185
        %v2189 = vsel %vm292, %v2183, %v2187
        %v2190 = vsel %vm292, %v2185, %v2181
        %v2191 = vsel %vm292, %v2187, %v2183
        %v2192 = vmul.f32 %v2190, %v257
        %v2193 = vmul.f32 %v2188, %v258
        %v2194 = vmul.f32 %v2191, %v257
        %v2195 = vmul.f32 %v2189, %v258
        %s2196 = scalar_lea.vmem [#allocation2], 160
        %v2197 = vld [vmem:[%s2196] sm:$0xff]
        %v2198 = vld [vmem:[%s2196 + $0x8] sm:$0xff]
        %v2200 = vsel %vm1228, %v2197, 0
        %v2203 = vsel %vm1228, %v2198, 0
        %2205 = vmatprep.subr.mxu0 %v2193
        %2206 = vmatpush1.msra.mxu0 %v2192
        %2207 = vmatprep.subr.mxu0 %v2195
        %2208 = vmatpush1.msra.mxu0 %v2194
        %2209 = vmatprep.subr.mxu0 0.0
        %2210 = vmatpush1.msra.mxu0 0.0
        %2211 = vmatprep.subr.mxu0 0.0
        %2212 = vmatpush1.msra.mxu0 0.0
        %2213 = vmatprep.subr.mxu0 0.0
        %2214 = vmatpush1.msra.mxu0 0.0
        %2215 = vmatprep.subr.mxu0 0.0
        %2216 = vmatpush1.msra.mxu0 0.0
        %2217 = vmatprep.subr.mxu0 0.0
        %2218 = vmatpush1.msra.mxu0 0.0
        %2219 = vmatprep.subr.mxu0 0.0
        %2220 = vmatpush1.msra.mxu0 0.0
        %2221 = vmatprep.subr.mxu0 0.0
        %2222 = vmatpush1.msra.mxu0 0.0
        %2223 = vmatprep.subr.mxu0 0.0
        %2224 = vmatpush1.msra.mxu0 0.0
        %2225 = vmatprep.subr.mxu0 0.0
        %2226 = vmatpush1.msra.mxu0 0.0
        %2227 = vmatprep.subr.mxu0 0.0
        %2228 = vmatpush1.msra.mxu0 0.0
        %2229 = vmatprep.subr.mxu0 0.0
        %2230 = vmatpush1.msra.mxu0 0.0
        %2231 = vmatprep.subr.mxu0 0.0
        %2232 = vmatpush1.msra.mxu0 0.0
        %2233 = vmatprep.subr.mxu0 0.0
        %2234 = vmatpush1.msra.mxu0 0.0
        %2235 = vmatprep.subr.mxu0 0.0
        %2236 = vmatpush1.msra.mxu0 0.0
        %2237 = vmatprep.subr.mxu0 0.0
        %2238 = vmatpush1.msra.mxu0 0.0
        %2239 = vmatprep.subr.mxu0 0.0
        %2240 = vmatpush1.msra.mxu0 0.0
        %2241 = vmatprep.subr.mxu0 0.0
        %2242 = vmatpush1.msra.mxu0 0.0
        %2243 = vmatprep.subr.mxu0 0.0
        %2244 = vmatpush1.msra.mxu0 0.0
        %2245 = vmatprep.subr.mxu0 0.0
        %2246 = vmatpush1.msra.mxu0 0.0
        %2247 = vmatprep.subr.mxu0 0.0
        %2248 = vmatpush1.msra.mxu0 0.0
        %2249 = vmatprep.subr.mxu0 0.0
        %2250 = vmatpush1.msra.mxu0 0.0
        %2251 = vmatprep.subr.mxu0 0.0
        %2252 = vmatpush1.msra.mxu0 0.0
        %2253 = vmatprep.subr.mxu0 0.0
        %2254 = vmatpush1.msra.mxu0 0.0
        %2255 = vmatprep.subr.mxu0 0.0
        %2256 = vmatpush1.msra.mxu0 0.0
        %2257 = vmatprep.subr.mxu0 0.0
        %2258 = vmatpush1.msra.mxu0 0.0
        %2259 = vmatprep.subr.mxu0 0.0
        %2260 = vmatpush1.msra.mxu0 0.0
        %2261 = vmatprep.subr.mxu0 0.0
        %2262 = vmatpush1.msra.mxu0 0.0
        %2263 = vmatprep.subr.mxu0 0.0
        %2264 = vmatpush1.msra.mxu0 0.0
        %2265 = vmatprep.subr.mxu0 0.0
        %2266 = vmatpush1.msra.mxu0 0.0
        %2267 = vmatprep.subr.mxu0 0.0
        %2268 = vmatpush1.msra.mxu0 0.0
        %2269 = vmatprep.mubr.f32.mxu0 0.0
        %2270 = vmatmul.mubr.f32.gmra.mrb[0].mxu0 %v2200
        %v2271 = vpop.f32.mrb[0].mxu0
        %v2272 = vadd.f32 0.0, %v2271
        %v2273 = vpop.f32.mrb[0].mxu0
        %v2274 = vadd.f32 0.0, %v2273
        %2275 = vmatprep.mubr.f32.mxu0 0.0
        %2276 = vmatmul.mubr.f32.gmra.mrb[0].mxu0 %v2203
        %v2277 = vpop.f32.mrb[0].mxu0
        %v2278 = vadd.f32 0.0, %v2277
        %v2279 = vpop.f32.mrb[0].mxu0
        %v2280 = vadd.f32 0.0, %v2279
        %2281 = vdwg.mxu0
        %v2283 = vsel %vm1228, %v2178, 0
        %v2286 = vsel %vm1228, %v2179, 0
        %2288 = vmatprep.subr.mxu0 %v2174
        %2289 = vmatpush1.msra.mxu0 %v2173
        %2290 = vmatprep.subr.mxu0 %v2176
        %2291 = vmatpush1.msra.mxu0 %v2175
        %2292 = vmatprep.subr.mxu0 0.0
        %2293 = vmatpush1.msra.mxu0 0.0
        %2294 = vmatprep.subr.mxu0 0.0
        %2295 = vmatpush1.msra.mxu0 0.0
        %2296 = vmatprep.subr.mxu0 0.0
        %2297 = vmatpush1.msra.mxu0 0.0
        %2298 = vmatprep.subr.mxu0 0.0
        %2299 = vmatpush1.msra.mxu0 0.0
        %2300 = vmatprep.subr.mxu0 0.0
        %2301 = vmatpush1.msra.mxu0 0.0
        %2302 = vmatprep.subr.mxu0 0.0
        %2303 = vmatpush1.msra.mxu0 0.0
        %2304 = vmatprep.subr.mxu0 0.0
        %2305 = vmatpush1.msra.mxu0 0.0
        %2306 = vmatprep.subr.mxu0 0.0
        %2307 = vmatpush1.msra.mxu0 0.0
        %2308 = vmatprep.subr.mxu0 0.0
        %2309 = vmatpush1.msra.mxu0 0.0
        %2310 = vmatprep.subr.mxu0 0.0
        %2311 = vmatpush1.msra.mxu0 0.0
        %2312 = vmatprep.subr.mxu0 0.0
        %2313 = vmatpush1.msra.mxu0 0.0
        %2314 = vmatprep.subr.mxu0 0.0
        %2315 = vmatpush1.msra.mxu0 0.0
        %2316 = vmatprep.subr.mxu0 0.0
        %2317 = vmatpush1.msra.mxu0 0.0
        %2318 = vmatprep.subr.mxu0 0.0
        %2319 = vmatpush1.msra.mxu0 0.0
        %2320 = vmatprep.subr.mxu0 0.0
        %2321 = vmatpush1.msra.mxu0 0.0
        %2322 = vmatprep.subr.mxu0 0.0
        %2323 = vmatpush1.msra.mxu0 0.0
        %2324 = vmatprep.subr.mxu0 0.0
        %2325 = vmatpush1.msra.mxu0 0.0
        %2326 = vmatprep.subr.mxu0 0.0
        %2327 = vmatpush1.msra.mxu0 0.0
        %2328 = vmatprep.subr.mxu0 0.0
        %2329 = vmatpush1.msra.mxu0 0.0
        %2330 = vmatprep.subr.mxu0 0.0
        %2331 = vmatpush1.msra.mxu0 0.0
        %2332 = vmatprep.subr.mxu0 0.0
        %2333 = vmatpush1.msra.mxu0 0.0
        %2334 = vmatprep.subr.mxu0 0.0
        %2335 = vmatpush1.msra.mxu0 0.0
        %2336 = vmatprep.subr.mxu0 0.0
        %2337 = vmatpush1.msra.mxu0 0.0
        %2338 = vmatprep.subr.mxu0 0.0
        %2339 = vmatpush1.msra.mxu0 0.0
        %2340 = vmatprep.subr.mxu0 0.0
        %2341 = vmatpush1.msra.mxu0 0.0
        %2342 = vmatprep.subr.mxu0 0.0
        %2343 = vmatpush1.msra.mxu0 0.0
        %2344 = vmatprep.subr.mxu0 0.0
        %2345 = vmatpush1.msra.mxu0 0.0
        %2346 = vmatprep.subr.mxu0 0.0
        %2347 = vmatpush1.msra.mxu0 0.0
        %2348 = vmatprep.subr.mxu0 0.0
        %2349 = vmatpush1.msra.mxu0 0.0
        %2350 = vmatprep.subr.mxu0 0.0
        %2351 = vmatpush1.msra.mxu0 0.0
        %2352 = vmatprep.mubr.f32.mxu0 0.0
        %2353 = vmatmul.mubr.f32.gmra.mrb[0].mxu0 %v2283
        %v2354 = vpop.f32.mrb[0].mxu0
        %v2355 = vadd.f32 %v2272, %v2354
        %v2356 = vpop.f32.mrb[0].mxu0
        %v2357 = vadd.f32 %v2274, %v2356
        %2358 = vmatprep.mubr.f32.mxu0 0.0
        %2359 = vmatmul.mubr.f32.gmra.mrb[0].mxu0 %v2286
        %v2360 = vpop.f32.mrb[0].mxu0
        %v2361 = vadd.f32 %v2278, %v2360
        %v2362 = vpop.f32.mrb[0].mxu0
        %v2363 = vadd.f32 %v2280, %v2362
        %2364 = vdwg.mxu0
        %2365 = vrot.lane.b32.xlu0 %v2157, 15
        %v2366 = vpop.permute.xlu0 %2365
        %2367 = vrot.lane.b32.xlu0 %v2159, 15
        %v2368 = vpop.permute.xlu0 %2367
        %2369 = vrot.lane.b32.xlu0 %v2158, 15
        %v2370 = vpop.permute.xlu0 %2369
        %2371 = vrot.lane.b32.xlu0 %v2160, 15
        %v2372 = vpop.permute.xlu0 %2371
        %v2373 = vsel %vm471, %v2366, %v2370
        %v2374 = vsel %vm471, %v2368, %v2372
        %v2375 = vsel %vm471, %v2370, %v2366
        %v2376 = vsel %vm471, %v2372, %v2368
        %v2377 = vmul.f32 %v2375, %v261
        %v2378 = vmul.f32 %v2373, %v262
        %v2379 = vmul.f32 %v2376, %v261
        %v2380 = vmul.f32 %v2374, %v262
        %s2381 = scalar_lea.vmem [#allocation2], 176
        %v2382 = vld [vmem:[%s2381] sm:$0xff]
        %v2383 = vld [vmem:[%s2381 + $0x8] sm:$0xff]
        %v2385 = vsel %vm1228, %v2382, 0
        %v2388 = vsel %vm1228, %v2383, 0
        %2390 = vmatprep.subr.mxu0 %v2378
        %2391 = vmatpush1.msra.mxu0 %v2377
        %2392 = vmatprep.subr.mxu0 %v2380
        %2393 = vmatpush1.msra.mxu0 %v2379
        %2394 = vmatprep.subr.mxu0 0.0
        %2395 = vmatpush1.msra.mxu0 0.0
        %2396 = vmatprep.subr.mxu0 0.0
        %2397 = vmatpush1.msra.mxu0 0.0
        %2398 = vmatprep.subr.mxu0 0.0
        %2399 = vmatpush1.msra.mxu0 0.0
        %2400 = vmatprep.subr.mxu0 0.0
        %2401 = vmatpush1.msra.mxu0 0.0
        %2402 = vmatprep.subr.mxu0 0.0
        %2403 = vmatpush1.msra.mxu0 0.0
        %2404 = vmatprep.subr.mxu0 0.0
        %2405 = vmatpush1.msra.mxu0 0.0
        %2406 = vmatprep.subr.mxu0 0.0
        %2407 = vmatpush1.msra.mxu0 0.0
        %2408 = vmatprep.subr.mxu0 0.0
        %2409 = vmatpush1.msra.mxu0 0.0
        %2410 = vmatprep.subr.mxu0 0.0
        %2411 = vmatpush1.msra.mxu0 0.0
        %2412 = vmatprep.subr.mxu0 0.0
        %2413 = vmatpush1.msra.mxu0 0.0
        %2414 = vmatprep.subr.mxu0 0.0
        %2415 = vmatpush1.msra.mxu0 0.0
        %2416 = vmatprep.subr.mxu0 0.0
        %2417 = vmatpush1.msra.mxu0 0.0
        %2418 = vmatprep.subr.mxu0 0.0
        %2419 = vmatpush1.msra.mxu0 0.0
        %2420 = vmatprep.subr.mxu0 0.0
        %2421 = vmatpush1.msra.mxu0 0.0
        %2422 = vmatprep.subr.mxu0 0.0
        %2423 = vmatpush1.msra.mxu0 0.0
        %2424 = vmatprep.subr.mxu0 0.0
        %2425 = vmatpush1.msra.mxu0 0.0
        %2426 = vmatprep.subr.mxu0 0.0
        %2427 = vmatpush1.msra.mxu0 0.0
        %2428 = vmatprep.subr.mxu0 0.0
        %2429 = vmatpush1.msra.mxu0 0.0
        %2430 = vmatprep.subr.mxu0 0.0
        %2431 = vmatpush1.msra.mxu0 0.0
        %2432 = vmatprep.subr.mxu0 0.0
        %2433 = vmatpush1.msra.mxu0 0.0
        %2434 = vmatprep.subr.mxu0 0.0
        %2435 = vmatpush1.msra.mxu0 0.0
        %2436 = vmatprep.subr.mxu0 0.0
        %2437 = vmatpush1.msra.mxu0 0.0
        %2438 = vmatprep.subr.mxu0 0.0
        %2439 = vmatpush1.msra.mxu0 0.0
        %2440 = vmatprep.subr.mxu0 0.0
        %2441 = vmatpush1.msra.mxu0 0.0
        %2442 = vmatprep.subr.mxu0 0.0
        %2443 = vmatpush1.msra.mxu0 0.0
        %2444 = vmatprep.subr.mxu0 0.0
        %2445 = vmatpush1.msra.mxu0 0.0
        %2446 = vmatprep.subr.mxu0 0.0
        %2447 = vmatpush1.msra.mxu0 0.0
        %2448 = vmatprep.subr.mxu0 0.0
        %2449 = vmatpush1.msra.mxu0 0.0
        %2450 = vmatprep.subr.mxu0 0.0
        %2451 = vmatpush1.msra.mxu0 0.0
        %2452 = vmatprep.subr.mxu0 0.0
        %2453 = vmatpush1.msra.mxu0 0.0
        %2454 = vmatprep.mubr.f32.mxu0 0.0
        %2455 = vmatmul.mubr.f32.gmra.mrb[0].mxu0 %v2385
        %v2456 = vpop.f32.mrb[0].mxu0
        %v2457 = vadd.f32 0.0, %v2456
        %v2458 = vpop.f32.mrb[0].mxu0
        %v2459 = vadd.f32 0.0, %v2458
        %2460 = vmatprep.mubr.f32.mxu0 0.0
        %2461 = vmatmul.mubr.f32.gmra.mrb[0].mxu0 %v2388
        %v2462 = vpop.f32.mrb[0].mxu0
        %v2463 = vadd.f32 0.0, %v2462
        %v2464 = vpop.f32.mrb[0].mxu0
        %v2465 = vadd.f32 0.0, %v2464
        %2466 = vdwg.mxu0
        %v2467 = vadd.f32 %v2355, %v2457
        %v2468 = vadd.f32 %v2357, %v2459
        %v2469 = vadd.f32 %v2361, %v2463
        %v2470 = vadd.f32 %v2363, %v2465
        %2471 = vrot.lane.b32.xlu0 %v2157, 1
        %v2472 = vpop.permute.xlu0 %2471
        %2473 = vrot.lane.b32.xlu0 %v2159, 1
        %v2474 = vpop.permute.xlu0 %2473
        %2475 = vrot.lane.b32.xlu0 %v2158, 1
        %v2476 = vpop.permute.xlu0 %2475
        %2477 = vrot.lane.b32.xlu0 %v2160, 1
        %v2478 = vpop.permute.xlu0 %2477
        %v2479 = vsel %vm570, %v2472, %v2476
        %v2480 = vsel %vm570, %v2474, %v2478
        %v2481 = vsel %vm570, %v2476, %v2472
        %v2482 = vsel %vm570, %v2478, %v2474
        %v2483 = vmul.f32 %v2481, %v263
        %v2484 = vmul.f32 %v2479, %v264
        %v2485 = vmul.f32 %v2482, %v263
        %v2486 = vmul.f32 %v2480, %v264
        %s2487 = scalar_lea.vmem [#allocation2], 192
        %v2488 = vld [vmem:[%s2487] sm:$0xff]
        %v2489 = vld [vmem:[%s2487 + $0x8] sm:$0xff]
        %v2491 = vsel %vm1228, %v2488, 0
        %v2494 = vsel %vm1228, %v2489, 0
        %2496 = vmatprep.subr.mxu0 %v2484
        %2497 = vmatpush1.msra.mxu0 %v2483
        %2498 = vmatprep.subr.mxu0 %v2486
        %2499 = vmatpush1.msra.mxu0 %v2485
        %2500 = vmatprep.subr.mxu0 0.0
        %2501 = vmatpush1.msra.mxu0 0.0
        %2502 = vmatprep.subr.mxu0 0.0
        %2503 = vmatpush1.msra.mxu0 0.0
        %2504 = vmatprep.subr.mxu0 0.0
        %2505 = vmatpush1.msra.mxu0 0.0
        %2506 = vmatprep.subr.mxu0 0.0
        %2507 = vmatpush1.msra.mxu0 0.0
        %2508 = vmatprep.subr.mxu0 0.0
        %2509 = vmatpush1.msra.mxu0 0.0
        %2510 = vmatprep.subr.mxu0 0.0
        %2511 = vmatpush1.msra.mxu0 0.0
        %2512 = vmatprep.subr.mxu0 0.0
        %2513 = vmatpush1.msra.mxu0 0.0
        %2514 = vmatprep.subr.mxu0 0.0
        %2515 = vmatpush1.msra.mxu0 0.0
        %2516 = vmatprep.subr.mxu0 0.0
        %2517 = vmatpush1.msra.mxu0 0.0
        %2518 = vmatprep.subr.mxu0 0.0
        %2519 = vmatpush1.msra.mxu0 0.0
        %2520 = vmatprep.subr.mxu0 0.0
        %2521 = vmatpush1.msra.mxu0 0.0
        %2522 = vmatprep.subr.mxu0 0.0
        %2523 = vmatpush1.msra.mxu0 0.0
        %2524 = vmatprep.subr.mxu0 0.0
        %2525 = vmatpush1.msra.mxu0 0.0
        %2526 = vmatprep.subr.mxu0 0.0
        %2527 = vmatpush1.msra.mxu0 0.0
        %2528 = vmatprep.subr.mxu0 0.0
        %2529 = vmatpush1.msra.mxu0 0.0
        %2530 = vmatprep.subr.mxu0 0.0
        %2531 = vmatpush1.msra.mxu0 0.0
        %2532 = vmatprep.subr.mxu0 0.0
        %2533 = vmatpush1.msra.mxu0 0.0
        %2534 = vmatprep.subr.mxu0 0.0
        %2535 = vmatpush1.msra.mxu0 0.0
        %2536 = vmatprep.subr.mxu0 0.0
        %2537 = vmatpush1.msra.mxu0 0.0
        %2538 = vmatprep.subr.mxu0 0.0
        %2539 = vmatpush1.msra.mxu0 0.0
        %2540 = vmatprep.subr.mxu0 0.0
        %2541 = vmatpush1.msra.mxu0 0.0
        %2542 = vmatprep.subr.mxu0 0.0
        %2543 = vmatpush1.msra.mxu0 0.0
        %2544 = vmatprep.subr.mxu0 0.0
        %2545 = vmatpush1.msra.mxu0 0.0
        %2546 = vmatprep.subr.mxu0 0.0
        %2547 = vmatpush1.msra.mxu0 0.0
        %2548 = vmatprep.subr.mxu0 0.0
        %2549 = vmatpush1.msra.mxu0 0.0
        %2550 = vmatprep.subr.mxu0 0.0
        %2551 = vmatpush1.msra.mxu0 0.0
        %2552 = vmatprep.subr.mxu0 0.0
        %2553 = vmatpush1.msra.mxu0 0.0
        %2554 = vmatprep.subr.mxu0 0.0
        %2555 = vmatpush1.msra.mxu0 0.0
        %2556 = vmatprep.subr.mxu0 0.0
        %2557 = vmatpush1.msra.mxu0 0.0
        %2558 = vmatprep.subr.mxu0 0.0
        %2559 = vmatpush1.msra.mxu0 0.0
        %2560 = vmatprep.mubr.f32.mxu0 0.0
        %2561 = vmatmul.mubr.f32.gmra.mrb[0].mxu0 %v2491
        %v2562 = vpop.f32.mrb[0].mxu0
        %v2563 = vadd.f32 0.0, %v2562
        %v2564 = vpop.f32.mrb[0].mxu0
        %v2565 = vadd.f32 0.0, %v2564
        %2566 = vmatprep.mubr.f32.mxu0 0.0
        %2567 = vmatmul.mubr.f32.gmra.mrb[0].mxu0 %v2494
        %v2568 = vpop.f32.mrb[0].mxu0
        %v2569 = vadd.f32 0.0, %v2568
        %v2570 = vpop.f32.mrb[0].mxu0
        %v2571 = vadd.f32 0.0, %v2570
        %2572 = vdwg.mxu0
        %v2573 = vadd.f32 %v2467, %v2563
        %v2574 = vadd.f32 %v2468, %v2565
        %v2575 = vadd.f32 %v2469, %v2569
        %v2576 = vadd.f32 %v2470, %v2571
        %s2577 = scalar_lea.vmem [#allocation2], 208
        %v2578 = vld [vmem:[%s2577] sm:$0xff]
        %v2579 = vld [vmem:[%s2577 + $0x8] sm:$0xff]
        %v2581 = vsel %vm1228, %v2578, 0
        %v2584 = vsel %vm1228, %v2579, 0
        %2586 = vmatprep.subr.mxu0 %v2158
        %2587 = vmatpush1.msra.mxu0 %v2157
        %2588 = vmatprep.subr.mxu0 %v2160
        %2589 = vmatpush1.msra.mxu0 %v2159
        %2590 = vmatprep.subr.mxu0 0.0
        %2591 = vmatpush1.msra.mxu0 0.0
        %2592 = vmatprep.subr.mxu0 0.0
        %2593 = vmatpush1.msra.mxu0 0.0
        %2594 = vmatprep.subr.mxu0 0.0
        %2595 = vmatpush1.msra.mxu0 0.0
        %2596 = vmatprep.subr.mxu0 0.0
        %2597 = vmatpush1.msra.mxu0 0.0
        %2598 = vmatprep.subr.mxu0 0.0
        %2599 = vmatpush1.msra.mxu0 0.0
        %2600 = vmatprep.subr.mxu0 0.0
        %2601 = vmatpush1.msra.mxu0 0.0
        %2602 = vmatprep.subr.mxu0 0.0
        %2603 = vmatpush1.msra.mxu0 0.0
        %2604 = vmatprep.subr.mxu0 0.0
        %2605 = vmatpush1.msra.mxu0 0.0
        %2606 = vmatprep.subr.mxu0 0.0
        %2607 = vmatpush1.msra.mxu0 0.0
        %2608 = vmatprep.subr.mxu0 0.0
        %2609 = vmatpush1.msra.mxu0 0.0
        %2610 = vmatprep.subr.mxu0 0.0
        %2611 = vmatpush1.msra.mxu0 0.0
        %2612 = vmatprep.subr.mxu0 0.0
        %2613 = vmatpush1.msra.mxu0 0.0
        %2614 = vmatprep.subr.mxu0 0.0
        %2615 = vmatpush1.msra.mxu0 0.0
        %2616 = vmatprep.subr.mxu0 0.0
        %2617 = vmatpush1.msra.mxu0 0.0
        %2618 = vmatprep.subr.mxu0 0.0
        %2619 = vmatpush1.msra.mxu0 0.0
        %2620 = vmatprep.subr.mxu0 0.0
        %2621 = vmatpush1.msra.mxu0 0.0
        %2622 = vmatprep.subr.mxu0 0.0
        %2623 = vmatpush1.msra.mxu0 0.0
        %2624 = vmatprep.subr.mxu0 0.0
        %2625 = vmatpush1.msra.mxu0 0.0
        %2626 = vmatprep.subr.mxu0 0.0
        %2627 = vmatpush1.msra.mxu0 0.0
        %2628 = vmatprep.subr.mxu0 0.0
        %2629 = vmatpush1.msra.mxu0 0.0
        %2630 = vmatprep.subr.mxu0 0.0
        %2631 = vmatpush1.msra.mxu0 0.0
        %2632 = vmatprep.subr.mxu0 0.0
        %2633 = vmatpush1.msra.mxu0 0.0
        %2634 = vmatprep.subr.mxu0 0.0
        %2635 = vmatpush1.msra.mxu0 0.0
        %2636 = vmatprep.subr.mxu0 0.0
        %2637 = vmatpush1.msra.mxu0 0.0
        %2638 = vmatprep.subr.mxu0 0.0
        %2639 = vmatpush1.msra.mxu0 0.0
        %2640 = vmatprep.subr.mxu0 0.0
        %2641 = vmatpush1.msra.mxu0 0.0
        %2642 = vmatprep.subr.mxu0 0.0
        %2643 = vmatpush1.msra.mxu0 0.0
        %2644 = vmatprep.subr.mxu0 0.0
        %2645 = vmatpush1.msra.mxu0 0.0
        %2646 = vmatprep.subr.mxu0 0.0
        %2647 = vmatpush1.msra.mxu0 0.0
        %2648 = vmatprep.subr.mxu0 0.0
        %2649 = vmatpush1.msra.mxu0 0.0
        %2650 = vmatprep.mubr.f32.mxu0 0.0
        %2651 = vmatmul.mubr.f32.gmra.mrb[0].mxu0 %v2581
        %v2652 = vpop.f32.mrb[0].mxu0
        %v2653 = vadd.f32 0.0, %v2652
        %v2654 = vpop.f32.mrb[0].mxu0
        %v2655 = vadd.f32 0.0, %v2654
        %2656 = vmatprep.mubr.f32.mxu0 0.0
        %2657 = vmatmul.mubr.f32.gmra.mrb[0].mxu0 %v2584
        %v2658 = vpop.f32.mrb[0].mxu0
        %v2659 = vadd.f32 0.0, %v2658
        %v2660 = vpop.f32.mrb[0].mxu0
        %v2661 = vadd.f32 0.0, %v2660
        %2662 = vdwg.mxu0
        %v2663 = vadd.f32 %v2573, %v2653
        %v2664 = vadd.f32 %v2574, %v2655
        %v2665 = vadd.f32 %v2575, %v2659
        %v2666 = vadd.f32 %v2576, %v2661
        %2667 = vrot.lane.b32.xlu0 %v2157, 127
        %v2668 = vpop.permute.xlu0 %2667
        %2669 = vrot.lane.b32.xlu0 %v2159, 127
        %v2670 = vpop.permute.xlu0 %2669
        %2671 = vrot.lane.b32.xlu0 %v2158, 127
        %v2672 = vpop.permute.xlu0 %2671
        %2673 = vrot.lane.b32.xlu0 %v2160, 127
        %v2674 = vpop.permute.xlu0 %2673
        %v2675 = vsel %vm759, %v2668, %v2672
        %v2676 = vsel %vm759, %v2670, %v2674
        %v2677 = vsel %vm759, %v2672, %v2668
        %v2678 = vsel %vm759, %v2674, %v2670
        %v2679 = vmul.f32 %v2675, %v265
        %v2680 = vmul.f32 %v2677, %v266
        %v2681 = vmul.f32 %v2676, %v265
        %v2682 = vmul.f32 %v2678, %v266
        %s2683 = scalar_lea.vmem [#allocation2], 224
        %v2684 = vld [vmem:[%s2683] sm:$0xff]
        %v2685 = vld [vmem:[%s2683 + $0x8] sm:$0xff]
        %v2687 = vsel %vm1228, %v2684, 0
        %v2690 = vsel %vm1228, %v2685, 0
        %2692 = vmatprep.subr.mxu0 %v2680
        %2693 = vmatpush1.msra.mxu0 %v2679
        %2694 = vmatprep.subr.mxu0 %v2682
        %2695 = vmatpush1.msra.mxu0 %v2681
        %2696 = vmatprep.subr.mxu0 0.0
        %2697 = vmatpush1.msra.mxu0 0.0
        %2698 = vmatprep.subr.mxu0 0.0
        %2699 = vmatpush1.msra.mxu0 0.0
        %2700 = vmatprep.subr.mxu0 0.0
        %2701 = vmatpush1.msra.mxu0 0.0
        %2702 = vmatprep.subr.mxu0 0.0
        %2703 = vmatpush1.msra.mxu0 0.0
        %2704 = vmatprep.subr.mxu0 0.0
        %2705 = vmatpush1.msra.mxu0 0.0
        %2706 = vmatprep.subr.mxu0 0.0
        %2707 = vmatpush1.msra.mxu0 0.0
        %2708 = vmatprep.subr.mxu0 0.0
        %2709 = vmatpush1.msra.mxu0 0.0
        %2710 = vmatprep.subr.mxu0 0.0
        %2711 = vmatpush1.msra.mxu0 0.0
        %2712 = vmatprep.subr.mxu0 0.0
        %2713 = vmatpush1.msra.mxu0 0.0
        %2714 = vmatprep.subr.mxu0 0.0
        %2715 = vmatpush1.msra.mxu0 0.0
        %2716 = vmatprep.subr.mxu0 0.0
        %2717 = vmatpush1.msra.mxu0 0.0
        %2718 = vmatprep.subr.mxu0 0.0
        %2719 = vmatpush1.msra.mxu0 0.0
        %2720 = vmatprep.subr.mxu0 0.0
        %2721 = vmatpush1.msra.mxu0 0.0
        %2722 = vmatprep.subr.mxu0 0.0
        %2723 = vmatpush1.msra.mxu0 0.0
        %2724 = vmatprep.subr.mxu0 0.0
        %2725 = vmatpush1.msra.mxu0 0.0
        %2726 = vmatprep.subr.mxu0 0.0
        %2727 = vmatpush1.msra.mxu0 0.0
        %2728 = vmatprep.subr.mxu0 0.0
        %2729 = vmatpush1.msra.mxu0 0.0
        %2730 = vmatprep.subr.mxu0 0.0
        %2731 = vmatpush1.msra.mxu0 0.0
        %2732 = vmatprep.subr.mxu0 0.0
        %2733 = vmatpush1.msra.mxu0 0.0
        %2734 = vmatprep.subr.mxu0 0.0
        %2735 = vmatpush1.msra.mxu0 0.0
        %2736 = vmatprep.subr.mxu0 0.0
        %2737 = vmatpush1.msra.mxu0 0.0
        %2738 = vmatprep.subr.mxu0 0.0
        %2739 = vmatpush1.msra.mxu0 0.0
        %2740 = vmatprep.subr.mxu0 0.0
        %2741 = vmatpush1.msra.mxu0 0.0
        %2742 = vmatprep.subr.mxu0 0.0
        %2743 = vmatpush1.msra.mxu0 0.0
        %2744 = vmatprep.subr.mxu0 0.0
        %2745 = vmatpush1.msra.mxu0 0.0
        %2746 = vmatprep.subr.mxu0 0.0
        %2747 = vmatpush1.msra.mxu0 0.0
        %2748 = vmatprep.subr.mxu0 0.0
        %2749 = vmatpush1.msra.mxu0 0.0
        %2750 = vmatprep.subr.mxu0 0.0
        %2751 = vmatpush1.msra.mxu0 0.0
        %2752 = vmatprep.subr.mxu0 0.0
        %2753 = vmatpush1.msra.mxu0 0.0
        %2754 = vmatprep.subr.mxu0 0.0
        %2755 = vmatpush1.msra.mxu0 0.0
        %2756 = vmatprep.mubr.f32.mxu0 0.0
        %2757 = vmatmul.mubr.f32.gmra.mrb[0].mxu0 %v2687
        %v2758 = vpop.f32.mrb[0].mxu0
        %v2759 = vadd.f32 0.0, %v2758
        %v2760 = vpop.f32.mrb[0].mxu0
        %v2761 = vadd.f32 0.0, %v2760
        %2762 = vmatprep.mubr.f32.mxu0 0.0
        %2763 = vmatmul.mubr.f32.gmra.mrb[0].mxu0 %v2690
        %v2764 = vpop.f32.mrb[0].mxu0
        %v2765 = vadd.f32 0.0, %v2764
        %v2766 = vpop.f32.mrb[0].mxu0
        %v2767 = vadd.f32 0.0, %v2766
        %2768 = vdwg.mxu0
        %v2769 = vadd.f32 %v2663, %v2759
        %v2770 = vadd.f32 %v2664, %v2761
        %v2771 = vadd.f32 %v2665, %v2765
        %v2772 = vadd.f32 %v2666, %v2767
        %2773 = vrot.lane.b32.xlu0 %v2157, 113
        %v2774 = vpop.permute.xlu0 %2773
        %2775 = vrot.lane.b32.xlu0 %v2159, 113
        %v2776 = vpop.permute.xlu0 %2775
        %2777 = vrot.lane.b32.xlu0 %v2158, 113
        %v2778 = vpop.permute.xlu0 %2777
        %2779 = vrot.lane.b32.xlu0 %v2160, 113
        %v2780 = vpop.permute.xlu0 %2779
        %v2781 = vsel %vm858, %v2774, %v2778
        %v2782 = vsel %vm858, %v2776, %v2780
        %v2783 = vsel %vm858, %v2778, %v2774
        %v2784 = vsel %vm858, %v2780, %v2776
        %v2785 = vmul.f32 %v2781, %v269
        %v2786 = vmul.f32 %v2783, %v270
        %v2787 = vmul.f32 %v2782, %v269
        %v2788 = vmul.f32 %v2784, %v270
        %s2789 = scalar_lea.vmem [#allocation2], 240
        %v2790 = vld [vmem:[%s2789] sm:$0xff]
        %v2791 = vld [vmem:[%s2789 + $0x8] sm:$0xff]
        %v2793 = vsel %vm1228, %v2790, 0
        %v2796 = vsel %vm1228, %v2791, 0
        %2798 = vmatprep.subr.mxu0 %v2786
        %2799 = vmatpush1.msra.mxu0 %v2785
        %2800 = vmatprep.subr.mxu0 %v2788
        %2801 = vmatpush1.msra.mxu0 %v2787
        %2802 = vmatprep.subr.mxu0 0.0
        %2803 = vmatpush1.msra.mxu0 0.0
        %2804 = vmatprep.subr.mxu0 0.0
        %2805 = vmatpush1.msra.mxu0 0.0
        %2806 = vmatprep.subr.mxu0 0.0
        %2807 = vmatpush1.msra.mxu0 0.0
        %2808 = vmatprep.subr.mxu0 0.0
        %2809 = vmatpush1.msra.mxu0 0.0
        %2810 = vmatprep.subr.mxu0 0.0
        %2811 = vmatpush1.msra.mxu0 0.0
        %2812 = vmatprep.subr.mxu0 0.0
        %2813 = vmatpush1.msra.mxu0 0.0
        %2814 = vmatprep.subr.mxu0 0.0
        %2815 = vmatpush1.msra.mxu0 0.0
        %2816 = vmatprep.subr.mxu0 0.0
        %2817 = vmatpush1.msra.mxu0 0.0
        %2818 = vmatprep.subr.mxu0 0.0
        %2819 = vmatpush1.msra.mxu0 0.0
        %2820 = vmatprep.subr.mxu0 0.0
        %2821 = vmatpush1.msra.mxu0 0.0
        %2822 = vmatprep.subr.mxu0 0.0
        %2823 = vmatpush1.msra.mxu0 0.0
        %2824 = vmatprep.subr.mxu0 0.0
        %2825 = vmatpush1.msra.mxu0 0.0
        %2826 = vmatprep.subr.mxu0 0.0
        %2827 = vmatpush1.msra.mxu0 0.0
        %2828 = vmatprep.subr.mxu0 0.0
        %2829 = vmatpush1.msra.mxu0 0.0
        %2830 = vmatprep.subr.mxu0 0.0
        %2831 = vmatpush1.msra.mxu0 0.0
        %2832 = vmatprep.subr.mxu0 0.0
        %2833 = vmatpush1.msra.mxu0 0.0
        %2834 = vmatprep.subr.mxu0 0.0
        %2835 = vmatpush1.msra.mxu0 0.0
        %2836 = vmatprep.subr.mxu0 0.0
        %2837 = vmatpush1.msra.mxu0 0.0
        %2838 = vmatprep.subr.mxu0 0.0
        %2839 = vmatpush1.msra.mxu0 0.0
        %2840 = vmatprep.subr.mxu0 0.0
        %2841 = vmatpush1.msra.mxu0 0.0
        %2842 = vmatprep.subr.mxu0 0.0
        %2843 = vmatpush1.msra.mxu0 0.0
        %2844 = vmatprep.subr.mxu0 0.0
        %2845 = vmatpush1.msra.mxu0 0.0
        %2846 = vmatprep.subr.mxu0 0.0
        %2847 = vmatpush1.msra.mxu0 0.0
        %2848 = vmatprep.subr.mxu0 0.0
        %2849 = vmatpush1.msra.mxu0 0.0
        %2850 = vmatprep.subr.mxu0 0.0
        %2851 = vmatpush1.msra.mxu0 0.0
        %2852 = vmatprep.subr.mxu0 0.0
        %2853 = vmatpush1.msra.mxu0 0.0
        %2854 = vmatprep.subr.mxu0 0.0
        %2855 = vmatpush1.msra.mxu0 0.0
        %2856 = vmatprep.subr.mxu0 0.0
        %2857 = vmatpush1.msra.mxu0 0.0
        %2858 = vmatprep.subr.mxu0 0.0
        %2859 = vmatpush1.msra.mxu0 0.0
        %2860 = vmatprep.subr.mxu0 0.0
        %2861 = vmatpush1.msra.mxu0 0.0
        %2862 = vmatprep.mubr.f32.mxu0 0.0
        %2863 = vmatmul.mubr.f32.gmra.mrb[0].mxu0 %v2793
        %v2864 = vpop.f32.mrb[0].mxu0
        %v2865 = vadd.f32 0.0, %v2864
        %v2866 = vpop.f32.mrb[0].mxu0
        %v2867 = vadd.f32 0.0, %v2866
        %2868 = vmatprep.mubr.f32.mxu0 0.0
        %2869 = vmatmul.mubr.f32.gmra.mrb[0].mxu0 %v2796
        %v2870 = vpop.f32.mrb[0].mxu0
        %v2871 = vadd.f32 0.0, %v2870
        %v2872 = vpop.f32.mrb[0].mxu0
        %v2873 = vadd.f32 0.0, %v2872
        %2874 = vdwg.mxu0
        %v2875 = vadd.f32 %v2769, %v2865
        %v2876 = vadd.f32 %v2770, %v2867
        %v2877 = vadd.f32 %v2771, %v2871
        %v2878 = vadd.f32 %v2772, %v2873
        %2879 = vrot.lane.b32.xlu0 %v2157, 112
        %v2880 = vpop.permute.xlu0 %2879
        %2881 = vrot.lane.b32.xlu0 %v2159, 112
        %v2882 = vpop.permute.xlu0 %2881
        %2883 = vrot.lane.b32.xlu0 %v2158, 112
        %v2884 = vpop.permute.xlu0 %2883
        %2885 = vrot.lane.b32.xlu0 %v2160, 112
        %v2886 = vpop.permute.xlu0 %2885
        %v2887 = vsel %vm957, %v2880, %v2884
        %v2888 = vsel %vm957, %v2882, %v2886
        %v2889 = vsel %vm957, %v2884, %v2880
        %v2890 = vsel %vm957, %v2886, %v2882
        %v2891 = vmul.f32 %v2887, %v271
        %v2892 = vmul.f32 %v2889, %v272
        %v2893 = vmul.f32 %v2888, %v271
        %v2894 = vmul.f32 %v2890, %v272
        %s2895 = scalar_lea.vmem [#allocation2], 256
        %v2896 = vld [vmem:[%s2895] sm:$0xff]
        %v2897 = vld [vmem:[%s2895 + $0x8] sm:$0xff]
        %v2899 = vsel %vm1228, %v2896, 0
        %v2902 = vsel %vm1228, %v2897, 0
        %2904 = vmatprep.subr.mxu0 %v2892
        %2905 = vmatpush1.msra.mxu0 %v2891
        %2906 = vmatprep.subr.mxu0 %v2894
        %2907 = vmatpush1.msra.mxu0 %v2893
        %2908 = vmatprep.subr.mxu0 0.0
        %2909 = vmatpush1.msra.mxu0 0.0
        %2910 = vmatprep.subr.mxu0 0.0
        %2911 = vmatpush1.msra.mxu0 0.0
        %2912 = vmatprep.subr.mxu0 0.0
        %2913 = vmatpush1.msra.mxu0 0.0
        %2914 = vmatprep.subr.mxu0 0.0
        %2915 = vmatpush1.msra.mxu0 0.0
        %2916 = vmatprep.subr.mxu0 0.0
        %2917 = vmatpush1.msra.mxu0 0.0
        %2918 = vmatprep.subr.mxu0 0.0
        %2919 = vmatpush1.msra.mxu0 0.0
        %2920 = vmatprep.subr.mxu0 0.0
        %2921 = vmatpush1.msra.mxu0 0.0
        %2922 = vmatprep.subr.mxu0 0.0
        %2923 = vmatpush1.msra.mxu0 0.0
        %2924 = vmatprep.subr.mxu0 0.0
        %2925 = vmatpush1.msra.mxu0 0.0
        %2926 = vmatprep.subr.mxu0 0.0
        %2927 = vmatpush1.msra.mxu0 0.0
        %2928 = vmatprep.subr.mxu0 0.0
        %2929 = vmatpush1.msra.mxu0 0.0
        %2930 = vmatprep.subr.mxu0 0.0
        %2931 = vmatpush1.msra.mxu0 0.0
        %2932 = vmatprep.subr.mxu0 0.0
        %2933 = vmatpush1.msra.mxu0 0.0
        %2934 = vmatprep.subr.mxu0 0.0
        %2935 = vmatpush1.msra.mxu0 0.0
        %2936 = vmatprep.subr.mxu0 0.0
        %2937 = vmatpush1.msra.mxu0 0.0
        %2938 = vmatprep.subr.mxu0 0.0
        %2939 = vmatpush1.msra.mxu0 0.0
        %2940 = vmatprep.subr.mxu0 0.0
        %2941 = vmatpush1.msra.mxu0 0.0
        %2942 = vmatprep.subr.mxu0 0.0
        %2943 = vmatpush1.msra.mxu0 0.0
        %2944 = vmatprep.subr.mxu0 0.0
        %2945 = vmatpush1.msra.mxu0 0.0
        %2946 = vmatprep.subr.mxu0 0.0
        %2947 = vmatpush1.msra.mxu0 0.0
        %2948 = vmatprep.subr.mxu0 0.0
        %2949 = vmatpush1.msra.mxu0 0.0
        %2950 = vmatprep.subr.mxu0 0.0
        %2951 = vmatpush1.msra.mxu0 0.0
        %2952 = vmatprep.subr.mxu0 0.0
        %2953 = vmatpush1.msra.mxu0 0.0
        %2954 = vmatprep.subr.mxu0 0.0
        %2955 = vmatpush1.msra.mxu0 0.0
        %2956 = vmatprep.subr.mxu0 0.0
        %2957 = vmatpush1.msra.mxu0 0.0
        %2958 = vmatprep.subr.mxu0 0.0
        %2959 = vmatpush1.msra.mxu0 0.0
        %2960 = vmatprep.subr.mxu0 0.0
        %2961 = vmatpush1.msra.mxu0 0.0
        %2962 = vmatprep.subr.mxu0 0.0
        %2963 = vmatpush1.msra.mxu0 0.0
        %2964 = vmatprep.subr.mxu0 0.0
        %2965 = vmatpush1.msra.mxu0 0.0
        %2966 = vmatprep.subr.mxu0 0.0
        %2967 = vmatpush1.msra.mxu0 0.0
        %2968 = vmatprep.mubr.f32.mxu0 0.0
        %2969 = vmatmul.mubr.f32.gmra.mrb[0].mxu0 %v2899
        %v2970 = vpop.f32.mrb[0].mxu0
        %v2971 = vadd.f32 0.0, %v2970
        %v2972 = vpop.f32.mrb[0].mxu0
        %v2973 = vadd.f32 0.0, %v2972
        %2974 = vmatprep.mubr.f32.mxu0 0.0
        %2975 = vmatmul.mubr.f32.gmra.mrb[0].mxu0 %v2902
        %v2976 = vpop.f32.mrb[0].mxu0
        %v2977 = vadd.f32 0.0, %v2976
        %v2978 = vpop.f32.mrb[0].mxu0
        %v2979 = vadd.f32 0.0, %v2978
        %2980 = vdwg.mxu0
        %v2981 = vadd.f32 %v2875, %v2971
        %v2982 = vadd.f32 %v2876, %v2973
        %v2983 = vadd.f32 %v2877, %v2977
        %v2984 = vadd.f32 %v2878, %v2979
        %2985 = vrot.lane.b32.xlu0 %v2157, 111
        %v2986 = vpop.permute.xlu0 %2985
        %2987 = vrot.lane.b32.xlu0 %v2159, 111
        %v2988 = vpop.permute.xlu0 %2987
        %2989 = vrot.lane.b32.xlu0 %v2158, 111
        %v2990 = vpop.permute.xlu0 %2989
        %2991 = vrot.lane.b32.xlu0 %v2160, 111
        %v2992 = vpop.permute.xlu0 %2991
        %v2993 = vsel %vm1056, %v2986, %v2990
        %v2994 = vsel %vm1056, %v2988, %v2992
        %v2995 = vsel %vm1056, %v2990, %v2986
        %v2996 = vsel %vm1056, %v2992, %v2988
        %v2997 = vmul.f32 %v2993, %v275
        %v2998 = vmul.f32 %v2995, %v276
        %v2999 = vmul.f32 %v2994, %v275
        %v3000 = vmul.f32 %v2996, %v276
        %s3001 = scalar_lea.vmem [#allocation2], 272
        %v3002 = vld [vmem:[%s3001] sm:$0xff]
        %v3003 = vld [vmem:[%s3001 + $0x8] sm:$0xff]
        %v3005 = vsel %vm1228, %v3002, 0
        %v3008 = vsel %vm1228, %v3003, 0
        %3010 = vmatprep.subr.mxu0 %v2998
        %3011 = vmatpush1.msra.mxu0 %v2997
        %3012 = vmatprep.subr.mxu0 %v3000
        %3013 = vmatpush1.msra.mxu0 %v2999
        %3014 = vmatprep.subr.mxu0 0.0
        %3015 = vmatpush1.msra.mxu0 0.0
        %3016 = vmatprep.subr.mxu0 0.0
        %3017 = vmatpush1.msra.mxu0 0.0
        %3018 = vmatprep.subr.mxu0 0.0
        %3019 = vmatpush1.msra.mxu0 0.0
        %3020 = vmatprep.subr.mxu0 0.0
        %3021 = vmatpush1.msra.mxu0 0.0
        %3022 = vmatprep.subr.mxu0 0.0
        %3023 = vmatpush1.msra.mxu0 0.0
        %3024 = vmatprep.subr.mxu0 0.0
        %3025 = vmatpush1.msra.mxu0 0.0
        %3026 = vmatprep.subr.mxu0 0.0
        %3027 = vmatpush1.msra.mxu0 0.0
        %3028 = vmatprep.subr.mxu0 0.0
        %3029 = vmatpush1.msra.mxu0 0.0
        %3030 = vmatprep.subr.mxu0 0.0
        %3031 = vmatpush1.msra.mxu0 0.0
        %3032 = vmatprep.subr.mxu0 0.0
        %3033 = vmatpush1.msra.mxu0 0.0
        %3034 = vmatprep.subr.mxu0 0.0
        %3035 = vmatpush1.msra.mxu0 0.0
        %3036 = vmatprep.subr.mxu0 0.0
        %3037 = vmatpush1.msra.mxu0 0.0
        %3038 = vmatprep.subr.mxu0 0.0
        %3039 = vmatpush1.msra.mxu0 0.0
        %3040 = vmatprep.subr.mxu0 0.0
        %3041 = vmatpush1.msra.mxu0 0.0
        %3042 = vmatprep.subr.mxu0 0.0
        %3043 = vmatpush1.msra.mxu0 0.0
        %3044 = vmatprep.subr.mxu0 0.0
        %3045 = vmatpush1.msra.mxu0 0.0
        %3046 = vmatprep.subr.mxu0 0.0
        %3047 = vmatpush1.msra.mxu0 0.0
        %3048 = vmatprep.subr.mxu0 0.0
        %3049 = vmatpush1.msra.mxu0 0.0
        %3050 = vmatprep.subr.mxu0 0.0
        %3051 = vmatpush1.msra.mxu0 0.0
        %3052 = vmatprep.subr.mxu0 0.0
        %3053 = vmatpush1.msra.mxu0 0.0
        %3054 = vmatprep.subr.mxu0 0.0
        %3055 = vmatpush1.msra.mxu0 0.0
        %3056 = vmatprep.subr.mxu0 0.0
        %3057 = vmatpush1.msra.mxu0 0.0
        %3058 = vmatprep.subr.mxu0 0.0
        %3059 = vmatpush1.msra.mxu0 0.0
        %3060 = vmatprep.subr.mxu0 0.0
        %3061 = vmatpush1.msra.mxu0 0.0
        %3062 = vmatprep.subr.mxu0 0.0
        %3063 = vmatpush1.msra.mxu0 0.0
        %3064 = vmatprep.subr.mxu0 0.0
        %3065 = vmatpush1.msra.mxu0 0.0
        %3066 = vmatprep.subr.mxu0 0.0
        %3067 = vmatpush1.msra.mxu0 0.0
        %3068 = vmatprep.subr.mxu0 0.0
        %3069 = vmatpush1.msra.mxu0 0.0
        %3070 = vmatprep.subr.mxu0 0.0
        %3071 = vmatpush1.msra.mxu0 0.0
        %3072 = vmatprep.subr.mxu0 0.0
        %3073 = vmatpush1.msra.mxu0 0.0
        %3074 = vmatprep.mubr.f32.mxu0 0.0
        %3075 = vmatmul.mubr.f32.gmra.mrb[0].mxu0 %v3005
        %v3076 = vpop.f32.mrb[0].mxu0
        %v3077 = vadd.f32 0.0, %v3076
        %v3078 = vpop.f32.mrb[0].mxu0
        %v3079 = vadd.f32 0.0, %v3078
        %3080 = vmatprep.mubr.f32.mxu0 0.0
        %3081 = vmatmul.mubr.f32.gmra.mrb[0].mxu0 %v3008
        %v3082 = vpop.f32.mrb[0].mxu0
        %v3083 = vadd.f32 0.0, %v3082
        %v3084 = vpop.f32.mrb[0].mxu0
        %v3085 = vadd.f32 0.0, %v3084
        %3086 = vdwg.mxu0
        %v3087 = vadd.f32 %v2981, %v3077
        %v3088 = vadd.f32 %v2982, %v3079
        %v3089 = vadd.f32 %v2983, %v3083
        %v3090 = vadd.f32 %v2984, %v3085
        %v3091 = vadd.f32 %v3087, %v3088
        %3092 = vadd.xlane.f32.xlu0 %v3091
        %v3093 = vpop.xlane.xlu0 %3092
        %v3094 = vadd.f32 %v3089, %v3090
        %3095 = vadd.xlane.f32.xlu0 %v3094
        %v3096 = vpop.xlane.xlu0 %3095
        %v3097 = vmul.f32 %v3087, %v3087
        %v3098 = vmul.f32 %v3088, %v3088
        %v3099 = vmul.f32 %v3089, %v3089
        %v3100 = vmul.f32 %v3090, %v3090
        %v3101 = vadd.f32 %v3097, %v3098
        %3102 = vadd.xlane.f32.xlu0 %v3101
        %v3103 = vpop.xlane.xlu0 %3102
        %v3104 = vadd.f32 %v3099, %v3100
        %3105 = vadd.xlane.f32.xlu0 %v3104
        %v3106 = vpop.xlane.xlu0 %3105
        %v3107 = vmul.f32 %v3093, 0.00390625
        %v3108 = vmul.f32 %v3096, 0.00390625
        %v3109 = vmul.f32 %v3103, 0.00390625
        %v3110 = vmul.f32 %v3106, 0.00390625
        %v3111 = vmul.f32 %v3107, %v3107
        %v3112 = vmul.f32 %v3108, %v3108
        %v3113 = vsub.f32 %v3109, %v3111
        %v3114 = vsub.f32 %v3110, %v3112
        %v3115 = vsub.f32 %v3087, %v3107
        %v3116 = vsub.f32 %v3088, %v3107
        %v3117 = vsub.f32 %v3089, %v3108
        %v3118 = vsub.f32 %v3090, %v3108
        %v3119 = vadd.f32 %v3113, 1e-05
        %v3120 = vadd.f32 %v3114, 1e-05
        %v3121 = vrsqrt.pop %v3119
        %v3122 = vrsqrt.pop %v3120
        %v3123 = vmul.f32 %v3115, %v3121
        %v3124 = vmul.f32 %v3116, %v3121
        %v3125 = vmul.f32 %v3117, %v3122
        %v3126 = vmul.f32 %v3118, %v3122
        %v3127 = vmax.f32 %v3123, 0.0
        %v3128 = vmax.f32 %v3124, 0.0
        %v3129 = vmax.f32 %v3125, 0.0
        %v3130 = vmax.f32 %v3126, 0.0
        %3131 = vrot.lane.b32.xlu0 %v3127, 17
        %v3132 = vpop.permute.xlu0 %3131
        %3133 = vrot.lane.b32.xlu0 %v3129, 17
        %v3134 = vpop.permute.xlu0 %3133
        %3135 = vrot.lane.b32.xlu0 %v3128, 17
        %v3136 = vpop.permute.xlu0 %3135
        %3137 = vrot.lane.b32.xlu0 %v3130, 17
        %v3138 = vpop.permute.xlu0 %3137
        %v3139 = vsel %vm281, %v3132, %v3136
        %v3140 = vsel %vm281, %v3134, %v3138
        %v3141 = vsel %vm281, %v3136, %v3132
        %v3142 = vsel %vm281, %v3138, %v3134
        %v3143 = vmul.f32 %v3141, %v255
        %v3144 = vmul.f32 %v3139, %v256
        %v3145 = vmul.f32 %v3142, %v255
        %v3146 = vmul.f32 %v3140, %v256
        %s3147 = scalar_lea.vmem [#allocation2], 288
        %v3148 = vld [vmem:[%s3147] sm:$0xff]
        %v3149 = vld [vmem:[%s3147 + $0x8] sm:$0xff]
        %3150 = vrot.lane.b32.xlu0 %v3127, 16
        %v3151 = vpop.permute.xlu0 %3150
        %3152 = vrot.lane.b32.xlu0 %v3129, 16
        %v3153 = vpop.permute.xlu0 %3152
        %3154 = vrot.lane.b32.xlu0 %v3128, 16
        %v3155 = vpop.permute.xlu0 %3154
        %3156 = vrot.lane.b32.xlu0 %v3130, 16
        %v3157 = vpop.permute.xlu0 %3156
        %v3158 = vsel %vm292, %v3151, %v3155
        %v3159 = vsel %vm292, %v3153, %v3157
        %v3160 = vsel %vm292, %v3155, %v3151
        %v3161 = vsel %vm292, %v3157, %v3153
        %v3162 = vmul.f32 %v3160, %v257
        %v3163 = vmul.f32 %v3158, %v258
        %v3164 = vmul.f32 %v3161, %v257
        %v3165 = vmul.f32 %v3159, %v258
        %s3166 = scalar_lea.vmem [#allocation2], 304
        %v3167 = vld [vmem:[%s3166] sm:$0xff]
        %v3168 = vld [vmem:[%s3166 + $0x8] sm:$0xff]
        %v3170 = vsel %vm1228, %v3167, 0
        %v3173 = vsel %vm1228, %v3168, 0
        %3175 = vmatprep.subr.mxu0 %v3163
        %3176 = vmatpush1.msra.mxu0 %v3162
        %3177 = vmatprep.subr.mxu0 %v3165
        %3178 = vmatpush1.msra.mxu0 %v3164
        %3179 = vmatprep.subr.mxu0 0.0
        %3180 = vmatpush1.msra.mxu0 0.0
        %3181 = vmatprep.subr.mxu0 0.0
        %3182 = vmatpush1.msra.mxu0 0.0
        %3183 = vmatprep.subr.mxu0 0.0
        %3184 = vmatpush1.msra.mxu0 0.0
        %3185 = vmatprep.subr.mxu0 0.0
        %3186 = vmatpush1.msra.mxu0 0.0
        %3187 = vmatprep.subr.mxu0 0.0
        %3188 = vmatpush1.msra.mxu0 0.0
        %3189 = vmatprep.subr.mxu0 0.0
        %3190 = vmatpush1.msra.mxu0 0.0
        %3191 = vmatprep.subr.mxu0 0.0
        %3192 = vmatpush1.msra.mxu0 0.0
        %3193 = vmatprep.subr.mxu0 0.0
        %3194 = vmatpush1.msra.mxu0 0.0
        %3195 = vmatprep.subr.mxu0 0.0
        %3196 = vmatpush1.msra.mxu0 0.0
        %3197 = vmatprep.subr.mxu0 0.0
        %3198 = vmatpush1.msra.mxu0 0.0
        %3199 = vmatprep.subr.mxu0 0.0
        %3200 = vmatpush1.msra.mxu0 0.0
        %3201 = vmatprep.subr.mxu0 0.0
        %3202 = vmatpush1.msra.mxu0 0.0
        %3203 = vmatprep.subr.mxu0 0.0
        %3204 = vmatpush1.msra.mxu0 0.0
        %3205 = vmatprep.subr.mxu0 0.0
        %3206 = vmatpush1.msra.mxu0 0.0
        %3207 = vmatprep.subr.mxu0 0.0
        %3208 = vmatpush1.msra.mxu0 0.0
        %3209 = vmatprep.subr.mxu0 0.0
        %3210 = vmatpush1.msra.mxu0 0.0
        %3211 = vmatprep.subr.mxu0 0.0
        %3212 = vmatpush1.msra.mxu0 0.0
        %3213 = vmatprep.subr.mxu0 0.0
        %3214 = vmatpush1.msra.mxu0 0.0
        %3215 = vmatprep.subr.mxu0 0.0
        %3216 = vmatpush1.msra.mxu0 0.0
        %3217 = vmatprep.subr.mxu0 0.0
        %3218 = vmatpush1.msra.mxu0 0.0
        %3219 = vmatprep.subr.mxu0 0.0
        %3220 = vmatpush1.msra.mxu0 0.0
        %3221 = vmatprep.subr.mxu0 0.0
        %3222 = vmatpush1.msra.mxu0 0.0
        %3223 = vmatprep.subr.mxu0 0.0
        %3224 = vmatpush1.msra.mxu0 0.0
        %3225 = vmatprep.subr.mxu0 0.0
        %3226 = vmatpush1.msra.mxu0 0.0
        %3227 = vmatprep.subr.mxu0 0.0
        %3228 = vmatpush1.msra.mxu0 0.0
        %3229 = vmatprep.subr.mxu0 0.0
        %3230 = vmatpush1.msra.mxu0 0.0
        %3231 = vmatprep.subr.mxu0 0.0
        %3232 = vmatpush1.msra.mxu0 0.0
        %3233 = vmatprep.subr.mxu0 0.0
        %3234 = vmatpush1.msra.mxu0 0.0
        %3235 = vmatprep.subr.mxu0 0.0
        %3236 = vmatpush1.msra.mxu0 0.0
        %3237 = vmatprep.subr.mxu0 0.0
        %3238 = vmatpush1.msra.mxu0 0.0
        %3239 = vmatprep.mubr.f32.mxu0 0.0
        %3240 = vmatmul.mubr.f32.gmra.mrb[0].mxu0 %v3170
        %v3241 = vpop.f32.mrb[0].mxu0
        %v3242 = vadd.f32 0.0, %v3241
        %v3243 = vpop.f32.mrb[0].mxu0
        %v3244 = vadd.f32 0.0, %v3243
        %3245 = vmatprep.mubr.f32.mxu0 0.0
        %3246 = vmatmul.mubr.f32.gmra.mrb[0].mxu0 %v3173
        %v3247 = vpop.f32.mrb[0].mxu0
        %v3248 = vadd.f32 0.0, %v3247
        %v3249 = vpop.f32.mrb[0].mxu0
        %v3250 = vadd.f32 0.0, %v3249
        %3251 = vdwg.mxu0
        %v3253 = vsel %vm1228, %v3148, 0
        %v3256 = vsel %vm1228, %v3149, 0
        %3258 = vmatprep.subr.mxu0 %v3144
        %3259 = vmatpush1.msra.mxu0 %v3143
        %3260 = vmatprep.subr.mxu0 %v3146
        %3261 = vmatpush1.msra.mxu0 %v3145
        %3262 = vmatprep.subr.mxu0 0.0
        %3263 = vmatpush1.msra.mxu0 0.0
        %3264 = vmatprep.subr.mxu0 0.0
        %3265 = vmatpush1.msra.mxu0 0.0
        %3266 = vmatprep.subr.mxu0 0.0
        %3267 = vmatpush1.msra.mxu0 0.0
        %3268 = vmatprep.subr.mxu0 0.0
        %3269 = vmatpush1.msra.mxu0 0.0
        %3270 = vmatprep.subr.mxu0 0.0
        %3271 = vmatpush1.msra.mxu0 0.0
        %3272 = vmatprep.subr.mxu0 0.0
        %3273 = vmatpush1.msra.mxu0 0.0
        %3274 = vmatprep.subr.mxu0 0.0
        %3275 = vmatpush1.msra.mxu0 0.0
        %3276 = vmatprep.subr.mxu0 0.0
        %3277 = vmatpush1.msra.mxu0 0.0
        %3278 = vmatprep.subr.mxu0 0.0
        %3279 = vmatpush1.msra.mxu0 0.0
        %3280 = vmatprep.subr.mxu0 0.0
        %3281 = vmatpush1.msra.mxu0 0.0
        %3282 = vmatprep.subr.mxu0 0.0
        %3283 = vmatpush1.msra.mxu0 0.0
        %3284 = vmatprep.subr.mxu0 0.0
        %3285 = vmatpush1.msra.mxu0 0.0
        %3286 = vmatprep.subr.mxu0 0.0
        %3287 = vmatpush1.msra.mxu0 0.0
        %3288 = vmatprep.subr.mxu0 0.0
        %3289 = vmatpush1.msra.mxu0 0.0
        %3290 = vmatprep.subr.mxu0 0.0
        %3291 = vmatpush1.msra.mxu0 0.0
        %3292 = vmatprep.subr.mxu0 0.0
        %3293 = vmatpush1.msra.mxu0 0.0
        %3294 = vmatprep.subr.mxu0 0.0
        %3295 = vmatpush1.msra.mxu0 0.0
        %3296 = vmatprep.subr.mxu0 0.0
        %3297 = vmatpush1.msra.mxu0 0.0
        %3298 = vmatprep.subr.mxu0 0.0
        %3299 = vmatpush1.msra.mxu0 0.0
        %3300 = vmatprep.subr.mxu0 0.0
        %3301 = vmatpush1.msra.mxu0 0.0
        %3302 = vmatprep.subr.mxu0 0.0
        %3303 = vmatpush1.msra.mxu0 0.0
        %3304 = vmatprep.subr.mxu0 0.0
        %3305 = vmatpush1.msra.mxu0 0.0
        %3306 = vmatprep.subr.mxu0 0.0
        %3307 = vmatpush1.msra.mxu0 0.0
        %3308 = vmatprep.subr.mxu0 0.0
        %3309 = vmatpush1.msra.mxu0 0.0
        %3310 = vmatprep.subr.mxu0 0.0
        %3311 = vmatpush1.msra.mxu0 0.0
        %3312 = vmatprep.subr.mxu0 0.0
        %3313 = vmatpush1.msra.mxu0 0.0
        %3314 = vmatprep.subr.mxu0 0.0
        %3315 = vmatpush1.msra.mxu0 0.0
        %3316 = vmatprep.subr.mxu0 0.0
        %3317 = vmatpush1.msra.mxu0 0.0
        %3318 = vmatprep.subr.mxu0 0.0
        %3319 = vmatpush1.msra.mxu0 0.0
        %3320 = vmatprep.subr.mxu0 0.0
        %3321 = vmatpush1.msra.mxu0 0.0
        %3322 = vmatprep.mubr.f32.mxu0 0.0
        %3323 = vmatmul.mubr.f32.gmra.mrb[0].mxu0 %v3253
        %v3324 = vpop.f32.mrb[0].mxu0
        %v3325 = vadd.f32 %v3242, %v3324
        %v3326 = vpop.f32.mrb[0].mxu0
        %v3327 = vadd.f32 %v3244, %v3326
        %3328 = vmatprep.mubr.f32.mxu0 0.0
        %3329 = vmatmul.mubr.f32.gmra.mrb[0].mxu0 %v3256
        %v3330 = vpop.f32.mrb[0].mxu0
        %v3331 = vadd.f32 %v3248, %v3330
        %v3332 = vpop.f32.mrb[0].mxu0
        %v3333 = vadd.f32 %v3250, %v3332
        %3334 = vdwg.mxu0
        %3335 = vrot.lane.b32.xlu0 %v3127, 15
        %v3336 = vpop.permute.xlu0 %3335
        %3337 = vrot.lane.b32.xlu0 %v3129, 15
        %v3338 = vpop.permute.xlu0 %3337
        %3339 = vrot.lane.b32.xlu0 %v3128, 15
        %v3340 = vpop.permute.xlu0 %3339
        %3341 = vrot.lane.b32.xlu0 %v3130, 15
        %v3342 = vpop.permute.xlu0 %3341
        %v3343 = vsel %vm471, %v3336, %v3340
        %v3344 = vsel %vm471, %v3338, %v3342
        %v3345 = vsel %vm471, %v3340, %v3336
        %v3346 = vsel %vm471, %v3342, %v3338
        %v3347 = vmul.f32 %v3345, %v261
        %v3348 = vmul.f32 %v3343, %v262
        %v3349 = vmul.f32 %v3346, %v261
        %v3350 = vmul.f32 %v3344, %v262
        %s3351 = scalar_lea.vmem [#allocation2], 320
        %v3352 = vld [vmem:[%s3351] sm:$0xff]
        %v3353 = vld [vmem:[%s3351 + $0x8] sm:$0xff]
        %v3355 = vsel %vm1228, %v3352, 0
        %v3358 = vsel %vm1228, %v3353, 0
        %3360 = vmatprep.subr.mxu0 %v3348
        %3361 = vmatpush1.msra.mxu0 %v3347
        %3362 = vmatprep.subr.mxu0 %v3350
        %3363 = vmatpush1.msra.mxu0 %v3349
        %3364 = vmatprep.subr.mxu0 0.0
        %3365 = vmatpush1.msra.mxu0 0.0
        %3366 = vmatprep.subr.mxu0 0.0
        %3367 = vmatpush1.msra.mxu0 0.0
        %3368 = vmatprep.subr.mxu0 0.0
        %3369 = vmatpush1.msra.mxu0 0.0
        %3370 = vmatprep.subr.mxu0 0.0
        %3371 = vmatpush1.msra.mxu0 0.0
        %3372 = vmatprep.subr.mxu0 0.0
        %3373 = vmatpush1.msra.mxu0 0.0
        %3374 = vmatprep.subr.mxu0 0.0
        %3375 = vmatpush1.msra.mxu0 0.0
        %3376 = vmatprep.subr.mxu0 0.0
        %3377 = vmatpush1.msra.mxu0 0.0
        %3378 = vmatprep.subr.mxu0 0.0
        %3379 = vmatpush1.msra.mxu0 0.0
        %3380 = vmatprep.subr.mxu0 0.0
        %3381 = vmatpush1.msra.mxu0 0.0
        %3382 = vmatprep.subr.mxu0 0.0
        %3383 = vmatpush1.msra.mxu0 0.0
        %3384 = vmatprep.subr.mxu0 0.0
        %3385 = vmatpush1.msra.mxu0 0.0
        %3386 = vmatprep.subr.mxu0 0.0
        %3387 = vmatpush1.msra.mxu0 0.0
        %3388 = vmatprep.subr.mxu0 0.0
        %3389 = vmatpush1.msra.mxu0 0.0
        %3390 = vmatprep.subr.mxu0 0.0
        %3391 = vmatpush1.msra.mxu0 0.0
        %3392 = vmatprep.subr.mxu0 0.0
        %3393 = vmatpush1.msra.mxu0 0.0
        %3394 = vmatprep.subr.mxu0 0.0
        %3395 = vmatpush1.msra.mxu0 0.0
        %3396 = vmatprep.subr.mxu0 0.0
        %3397 = vmatpush1.msra.mxu0 0.0
        %3398 = vmatprep.subr.mxu0 0.0
        %3399 = vmatpush1.msra.mxu0 0.0
        %3400 = vmatprep.subr.mxu0 0.0
        %3401 = vmatpush1.msra.mxu0 0.0
        %3402 = vmatprep.subr.mxu0 0.0
        %3403 = vmatpush1.msra.mxu0 0.0
        %3404 = vmatprep.subr.mxu0 0.0
        %3405 = vmatpush1.msra.mxu0 0.0
        %3406 = vmatprep.subr.mxu0 0.0
        %3407 = vmatpush1.msra.mxu0 0.0
        %3408 = vmatprep.subr.mxu0 0.0
        %3409 = vmatpush1.msra.mxu0 0.0
        %3410 = vmatprep.subr.mxu0 0.0
        %3411 = vmatpush1.msra.mxu0 0.0
        %3412 = vmatprep.subr.mxu0 0.0
        %3413 = vmatpush1.msra.mxu0 0.0
        %3414 = vmatprep.subr.mxu0 0.0
        %3415 = vmatpush1.msra.mxu0 0.0
        %3416 = vmatprep.subr.mxu0 0.0
        %3417 = vmatpush1.msra.mxu0 0.0
        %3418 = vmatprep.subr.mxu0 0.0
        %3419 = vmatpush1.msra.mxu0 0.0
        %3420 = vmatprep.subr.mxu0 0.0
        %3421 = vmatpush1.msra.mxu0 0.0
        %3422 = vmatprep.subr.mxu0 0.0
        %3423 = vmatpush1.msra.mxu0 0.0
        %3424 = vmatprep.mubr.f32.mxu0 0.0
        %3425 = vmatmul.mubr.f32.gmra.mrb[0].mxu0 %v3355
        %v3426 = vpop.f32.mrb[0].mxu0
        %v3427 = vadd.f32 0.0, %v3426
        %v3428 = vpop.f32.mrb[0].mxu0
        %v3429 = vadd.f32 0.0, %v3428
        %3430 = vmatprep.mubr.f32.mxu0 0.0
        %3431 = vmatmul.mubr.f32.gmra.mrb[0].mxu0 %v3358
        %v3432 = vpop.f32.mrb[0].mxu0
        %v3433 = vadd.f32 0.0, %v3432
        %v3434 = vpop.f32.mrb[0].mxu0
        %v3435 = vadd.f32 0.0, %v3434
        %3436 = vdwg.mxu0
        %v3437 = vadd.f32 %v3325, %v3427
        %v3438 = vadd.f32 %v3327, %v3429
        %v3439 = vadd.f32 %v3331, %v3433
        %v3440 = vadd.f32 %v3333, %v3435
        %3441 = vrot.lane.b32.xlu0 %v3127, 1
        %v3442 = vpop.permute.xlu0 %3441
        %3443 = vrot.lane.b32.xlu0 %v3129, 1
        %v3444 = vpop.permute.xlu0 %3443
        %3445 = vrot.lane.b32.xlu0 %v3128, 1
        %v3446 = vpop.permute.xlu0 %3445
        %3447 = vrot.lane.b32.xlu0 %v3130, 1
        %v3448 = vpop.permute.xlu0 %3447
        %v3449 = vsel %vm570, %v3442, %v3446
        %v3450 = vsel %vm570, %v3444, %v3448
        %v3451 = vsel %vm570, %v3446, %v3442
        %v3452 = vsel %vm570, %v3448, %v3444
        %v3453 = vmul.f32 %v3451, %v263
        %v3454 = vmul.f32 %v3449, %v264
        %v3455 = vmul.f32 %v3452, %v263
        %v3456 = vmul.f32 %v3450, %v264
        %s3457 = scalar_lea.vmem [#allocation2], 336
        %v3458 = vld [vmem:[%s3457] sm:$0xff]
        %v3459 = vld [vmem:[%s3457 + $0x8] sm:$0xff]
        %v3461 = vsel %vm1228, %v3458, 0
        %v3464 = vsel %vm1228, %v3459, 0
        %3466 = vmatprep.subr.mxu0 %v3454
        %3467 = vmatpush1.msra.mxu0 %v3453
        %3468 = vmatprep.subr.mxu0 %v3456
        %3469 = vmatpush1.msra.mxu0 %v3455
        %3470 = vmatprep.subr.mxu0 0.0
        %3471 = vmatpush1.msra.mxu0 0.0
        %3472 = vmatprep.subr.mxu0 0.0
        %3473 = vmatpush1.msra.mxu0 0.0
        %3474 = vmatprep.subr.mxu0 0.0
        %3475 = vmatpush1.msra.mxu0 0.0
        %3476 = vmatprep.subr.mxu0 0.0
        %3477 = vmatpush1.msra.mxu0 0.0
        %3478 = vmatprep.subr.mxu0 0.0
        %3479 = vmatpush1.msra.mxu0 0.0
        %3480 = vmatprep.subr.mxu0 0.0
        %3481 = vmatpush1.msra.mxu0 0.0
        %3482 = vmatprep.subr.mxu0 0.0
        %3483 = vmatpush1.msra.mxu0 0.0
        %3484 = vmatprep.subr.mxu0 0.0
        %3485 = vmatpush1.msra.mxu0 0.0
        %3486 = vmatprep.subr.mxu0 0.0
        %3487 = vmatpush1.msra.mxu0 0.0
        %3488 = vmatprep.subr.mxu0 0.0
        %3489 = vmatpush1.msra.mxu0 0.0
        %3490 = vmatprep.subr.mxu0 0.0
        %3491 = vmatpush1.msra.mxu0 0.0
        %3492 = vmatprep.subr.mxu0 0.0
        %3493 = vmatpush1.msra.mxu0 0.0
        %3494 = vmatprep.subr.mxu0 0.0
        %3495 = vmatpush1.msra.mxu0 0.0
        %3496 = vmatprep.subr.mxu0 0.0
        %3497 = vmatpush1.msra.mxu0 0.0
        %3498 = vmatprep.subr.mxu0 0.0
        %3499 = vmatpush1.msra.mxu0 0.0
        %3500 = vmatprep.subr.mxu0 0.0
        %3501 = vmatpush1.msra.mxu0 0.0
        %3502 = vmatprep.subr.mxu0 0.0
        %3503 = vmatpush1.msra.mxu0 0.0
        %3504 = vmatprep.subr.mxu0 0.0
        %3505 = vmatpush1.msra.mxu0 0.0
        %3506 = vmatprep.subr.mxu0 0.0
        %3507 = vmatpush1.msra.mxu0 0.0
        %3508 = vmatprep.subr.mxu0 0.0
        %3509 = vmatpush1.msra.mxu0 0.0
        %3510 = vmatprep.subr.mxu0 0.0
        %3511 = vmatpush1.msra.mxu0 0.0
        %3512 = vmatprep.subr.mxu0 0.0
        %3513 = vmatpush1.msra.mxu0 0.0
        %3514 = vmatprep.subr.mxu0 0.0
        %3515 = vmatpush1.msra.mxu0 0.0
        %3516 = vmatprep.subr.mxu0 0.0
        %3517 = vmatpush1.msra.mxu0 0.0
        %3518 = vmatprep.subr.mxu0 0.0
        %3519 = vmatpush1.msra.mxu0 0.0
        %3520 = vmatprep.subr.mxu0 0.0
        %3521 = vmatpush1.msra.mxu0 0.0
        %3522 = vmatprep.subr.mxu0 0.0
        %3523 = vmatpush1.msra.mxu0 0.0
        %3524 = vmatprep.subr.mxu0 0.0
        %3525 = vmatpush1.msra.mxu0 0.0
        %3526 = vmatprep.subr.mxu0 0.0
        %3527 = vmatpush1.msra.mxu0 0.0
        %3528 = vmatprep.subr.mxu0 0.0
        %3529 = vmatpush1.msra.mxu0 0.0
        %3530 = vmatprep.mubr.f32.mxu0 0.0
        %3531 = vmatmul.mubr.f32.gmra.mrb[0].mxu0 %v3461
        %v3532 = vpop.f32.mrb[0].mxu0
        %v3533 = vadd.f32 0.0, %v3532
        %v3534 = vpop.f32.mrb[0].mxu0
        %v3535 = vadd.f32 0.0, %v3534
        %3536 = vmatprep.mubr.f32.mxu0 0.0
        %3537 = vmatmul.mubr.f32.gmra.mrb[0].mxu0 %v3464
        %v3538 = vpop.f32.mrb[0].mxu0
        %v3539 = vadd.f32 0.0, %v3538
        %v3540 = vpop.f32.mrb[0].mxu0
        %v3541 = vadd.f32 0.0, %v3540
        %3542 = vdwg.mxu0
        %v3543 = vadd.f32 %v3437, %v3533
        %v3544 = vadd.f32 %v3438, %v3535
        %v3545 = vadd.f32 %v3439, %v3539
        %v3546 = vadd.f32 %v3440, %v3541
        %s3547 = scalar_lea.vmem [#allocation2], 352
        %v3548 = vld [vmem:[%s3547] sm:$0xff]
        %v3549 = vld [vmem:[%s3547 + $0x8] sm:$0xff]
        %v3551 = vsel %vm1228, %v3548, 0
        %v3554 = vsel %vm1228, %v3549, 0
        %3556 = vmatprep.subr.mxu0 %v3128
        %3557 = vmatpush1.msra.mxu0 %v3127
        %3558 = vmatprep.subr.mxu0 %v3130
        %3559 = vmatpush1.msra.mxu0 %v3129
        %3560 = vmatprep.subr.mxu0 0.0
        %3561 = vmatpush1.msra.mxu0 0.0
        %3562 = vmatprep.subr.mxu0 0.0
        %3563 = vmatpush1.msra.mxu0 0.0
        %3564 = vmatprep.subr.mxu0 0.0
        %3565 = vmatpush1.msra.mxu0 0.0
        %3566 = vmatprep.subr.mxu0 0.0
        %3567 = vmatpush1.msra.mxu0 0.0
        %3568 = vmatprep.subr.mxu0 0.0
        %3569 = vmatpush1.msra.mxu0 0.0
        %3570 = vmatprep.subr.mxu0 0.0
        %3571 = vmatpush1.msra.mxu0 0.0
        %3572 = vmatprep.subr.mxu0 0.0
        %3573 = vmatpush1.msra.mxu0 0.0
        %3574 = vmatprep.subr.mxu0 0.0
        %3575 = vmatpush1.msra.mxu0 0.0
        %3576 = vmatprep.subr.mxu0 0.0
        %3577 = vmatpush1.msra.mxu0 0.0
        %3578 = vmatprep.subr.mxu0 0.0
        %3579 = vmatpush1.msra.mxu0 0.0
        %3580 = vmatprep.subr.mxu0 0.0
        %3581 = vmatpush1.msra.mxu0 0.0
        %3582 = vmatprep.subr.mxu0 0.0
        %3583 = vmatpush1.msra.mxu0 0.0
        %3584 = vmatprep.subr.mxu0 0.0
        %3585 = vmatpush1.msra.mxu0 0.0
        %3586 = vmatprep.subr.mxu0 0.0
        %3587 = vmatpush1.msra.mxu0 0.0
        %3588 = vmatprep.subr.mxu0 0.0
        %3589 = vmatpush1.msra.mxu0 0.0
        %3590 = vmatprep.subr.mxu0 0.0
        %3591 = vmatpush1.msra.mxu0 0.0
        %3592 = vmatprep.subr.mxu0 0.0
        %3593 = vmatpush1.msra.mxu0 0.0
        %3594 = vmatprep.subr.mxu0 0.0
        %3595 = vmatpush1.msra.mxu0 0.0
        %3596 = vmatprep.subr.mxu0 0.0
        %3597 = vmatpush1.msra.mxu0 0.0
        %3598 = vmatprep.subr.mxu0 0.0
        %3599 = vmatpush1.msra.mxu0 0.0
        %3600 = vmatprep.subr.mxu0 0.0
        %3601 = vmatpush1.msra.mxu0 0.0
        %3602 = vmatprep.subr.mxu0 0.0
        %3603 = vmatpush1.msra.mxu0 0.0
        %3604 = vmatprep.subr.mxu0 0.0
        %3605 = vmatpush1.msra.mxu0 0.0
        %3606 = vmatprep.subr.mxu0 0.0
        %3607 = vmatpush1.msra.mxu0 0.0
        %3608 = vmatprep.subr.mxu0 0.0
        %3609 = vmatpush1.msra.mxu0 0.0
        %3610 = vmatprep.subr.mxu0 0.0
        %3611 = vmatpush1.msra.mxu0 0.0
        %3612 = vmatprep.subr.mxu0 0.0
        %3613 = vmatpush1.msra.mxu0 0.0
        %3614 = vmatprep.subr.mxu0 0.0
        %3615 = vmatpush1.msra.mxu0 0.0
        %3616 = vmatprep.subr.mxu0 0.0
        %3617 = vmatpush1.msra.mxu0 0.0
        %3618 = vmatprep.subr.mxu0 0.0
        %3619 = vmatpush1.msra.mxu0 0.0
        %3620 = vmatprep.mubr.f32.mxu0 0.0
        %3621 = vmatmul.mubr.f32.gmra.mrb[0].mxu0 %v3551
        %v3622 = vpop.f32.mrb[0].mxu0
        %v3623 = vadd.f32 0.0, %v3622
        %v3624 = vpop.f32.mrb[0].mxu0
        %v3625 = vadd.f32 0.0, %v3624
        %3626 = vmatprep.mubr.f32.mxu0 0.0
        %3627 = vmatmul.mubr.f32.gmra.mrb[0].mxu0 %v3554
        %v3628 = vpop.f32.mrb[0].mxu0
        %v3629 = vadd.f32 0.0, %v3628
        %v3630 = vpop.f32.mrb[0].mxu0
        %v3631 = vadd.f32 0.0, %v3630
        %3632 = vdwg.mxu0
        %v3633 = vadd.f32 %v3543, %v3623
        %v3634 = vadd.f32 %v3544, %v3625
        %v3635 = vadd.f32 %v3545, %v3629
        %v3636 = vadd.f32 %v3546, %v3631
        %3637 = vrot.lane.b32.xlu0 %v3127, 127
        %v3638 = vpop.permute.xlu0 %3637
        %3639 = vrot.lane.b32.xlu0 %v3129, 127
        %v3640 = vpop.permute.xlu0 %3639
        %3641 = vrot.lane.b32.xlu0 %v3128, 127
        %v3642 = vpop.permute.xlu0 %3641
        %3643 = vrot.lane.b32.xlu0 %v3130, 127
        %v3644 = vpop.permute.xlu0 %3643
        %v3645 = vsel %vm759, %v3638, %v3642
        %v3646 = vsel %vm759, %v3640, %v3644
        %v3647 = vsel %vm759, %v3642, %v3638
        %v3648 = vsel %vm759, %v3644, %v3640
        %v3649 = vmul.f32 %v3645, %v265
        %v3650 = vmul.f32 %v3647, %v266
        %v3651 = vmul.f32 %v3646, %v265
        %v3652 = vmul.f32 %v3648, %v266
        %s3653 = scalar_lea.vmem [#allocation2], 368
        %v3654 = vld [vmem:[%s3653] sm:$0xff]
        %v3655 = vld [vmem:[%s3653 + $0x8] sm:$0xff]
        %v3657 = vsel %vm1228, %v3654, 0
        %v3660 = vsel %vm1228, %v3655, 0
        %3662 = vmatprep.subr.mxu0 %v3650
        %3663 = vmatpush1.msra.mxu0 %v3649
        %3664 = vmatprep.subr.mxu0 %v3652
        %3665 = vmatpush1.msra.mxu0 %v3651
        %3666 = vmatprep.subr.mxu0 0.0
        %3667 = vmatpush1.msra.mxu0 0.0
        %3668 = vmatprep.subr.mxu0 0.0
        %3669 = vmatpush1.msra.mxu0 0.0
        %3670 = vmatprep.subr.mxu0 0.0
        %3671 = vmatpush1.msra.mxu0 0.0
        %3672 = vmatprep.subr.mxu0 0.0
        %3673 = vmatpush1.msra.mxu0 0.0
        %3674 = vmatprep.subr.mxu0 0.0
        %3675 = vmatpush1.msra.mxu0 0.0
        %3676 = vmatprep.subr.mxu0 0.0
        %3677 = vmatpush1.msra.mxu0 0.0
        %3678 = vmatprep.subr.mxu0 0.0
        %3679 = vmatpush1.msra.mxu0 0.0
        %3680 = vmatprep.subr.mxu0 0.0
        %3681 = vmatpush1.msra.mxu0 0.0
        %3682 = vmatprep.subr.mxu0 0.0
        %3683 = vmatpush1.msra.mxu0 0.0
        %3684 = vmatprep.subr.mxu0 0.0
        %3685 = vmatpush1.msra.mxu0 0.0
        %3686 = vmatprep.subr.mxu0 0.0
        %3687 = vmatpush1.msra.mxu0 0.0
        %3688 = vmatprep.subr.mxu0 0.0
        %3689 = vmatpush1.msra.mxu0 0.0
        %3690 = vmatprep.subr.mxu0 0.0
        %3691 = vmatpush1.msra.mxu0 0.0
        %3692 = vmatprep.subr.mxu0 0.0
        %3693 = vmatpush1.msra.mxu0 0.0
        %3694 = vmatprep.subr.mxu0 0.0
        %3695 = vmatpush1.msra.mxu0 0.0
        %3696 = vmatprep.subr.mxu0 0.0
        %3697 = vmatpush1.msra.mxu0 0.0
        %3698 = vmatprep.subr.mxu0 0.0
        %3699 = vmatpush1.msra.mxu0 0.0
        %3700 = vmatprep.subr.mxu0 0.0
        %3701 = vmatpush1.msra.mxu0 0.0
        %3702 = vmatprep.subr.mxu0 0.0
        %3703 = vmatpush1.msra.mxu0 0.0
        %3704 = vmatprep.subr.mxu0 0.0
        %3705 = vmatpush1.msra.mxu0 0.0
        %3706 = vmatprep.subr.mxu0 0.0
        %3707 = vmatpush1.msra.mxu0 0.0
        %3708 = vmatprep.subr.mxu0 0.0
        %3709 = vmatpush1.msra.mxu0 0.0
        %3710 = vmatprep.subr.mxu0 0.0
        %3711 = vmatpush1.msra.mxu0 0.0
        %3712 = vmatprep.subr.mxu0 0.0
        %3713 = vmatpush1.msra.mxu0 0.0
        %3714 = vmatprep.subr.mxu0 0.0
        %3715 = vmatpush1.msra.mxu0 0.0
        %3716 = vmatprep.subr.mxu0 0.0
        %3717 = vmatpush1.msra.mxu0 0.0
        %3718 = vmatprep.subr.mxu0 0.0
        %3719 = vmatpush1.msra.mxu0 0.0
        %3720 = vmatprep.subr.mxu0 0.0
        %3721 = vmatpush1.msra.mxu0 0.0
        %3722 = vmatprep.subr.mxu0 0.0
        %3723 = vmatpush1.msra.mxu0 0.0
        %3724 = vmatprep.subr.mxu0 0.0
        %3725 = vmatpush1.msra.mxu0 0.0
        %3726 = vmatprep.mubr.f32.mxu0 0.0
        %3727 = vmatmul.mubr.f32.gmra.mrb[0].mxu0 %v3657
        %v3728 = vpop.f32.mrb[0].mxu0
        %v3729 = vadd.f32 0.0, %v3728
        %v3730 = vpop.f32.mrb[0].mxu0
        %v3731 = vadd.f32 0.0, %v3730
        %3732 = vmatprep.mubr.f32.mxu0 0.0
        %3733 = vmatmul.mubr.f32.gmra.mrb[0].mxu0 %v3660
        %v3734 = vpop.f32.mrb[0].mxu0
        %v3735 = vadd.f32 0.0, %v3734
        %v3736 = vpop.f32.mrb[0].mxu0
        %v3737 = vadd.f32 0.0, %v3736
        %3738 = vdwg.mxu0
        %v3739 = vadd.f32 %v3633, %v3729
        %v3740 = vadd.f32 %v3634, %v3731
        %v3741 = vadd.f32 %v3635, %v3735
        %v3742 = vadd.f32 %v3636, %v3737
        %3743 = vrot.lane.b32.xlu0 %v3127, 113
        %v3744 = vpop.permute.xlu0 %3743
        %3745 = vrot.lane.b32.xlu0 %v3129, 113
        %v3746 = vpop.permute.xlu0 %3745
        %3747 = vrot.lane.b32.xlu0 %v3128, 113
        %v3748 = vpop.permute.xlu0 %3747
        %3749 = vrot.lane.b32.xlu0 %v3130, 113
        %v3750 = vpop.permute.xlu0 %3749
        %v3751 = vsel %vm858, %v3744, %v3748
        %v3752 = vsel %vm858, %v3746, %v3750
        %v3753 = vsel %vm858, %v3748, %v3744
        %v3754 = vsel %vm858, %v3750, %v3746
        %v3755 = vmul.f32 %v3751, %v269
        %v3756 = vmul.f32 %v3753, %v270
        %v3757 = vmul.f32 %v3752, %v269
        %v3758 = vmul.f32 %v3754, %v270
        %s3759 = scalar_lea.vmem [#allocation2], 384
        %v3760 = vld [vmem:[%s3759] sm:$0xff]
        %v3761 = vld [vmem:[%s3759 + $0x8] sm:$0xff]
        %v3763 = vsel %vm1228, %v3760, 0
        %v3766 = vsel %vm1228, %v3761, 0
        %3768 = vmatprep.subr.mxu0 %v3756
        %3769 = vmatpush1.msra.mxu0 %v3755
        %3770 = vmatprep.subr.mxu0 %v3758
        %3771 = vmatpush1.msra.mxu0 %v3757
        %3772 = vmatprep.subr.mxu0 0.0
        %3773 = vmatpush1.msra.mxu0 0.0
        %3774 = vmatprep.subr.mxu0 0.0
        %3775 = vmatpush1.msra.mxu0 0.0
        %3776 = vmatprep.subr.mxu0 0.0
        %3777 = vmatpush1.msra.mxu0 0.0
        %3778 = vmatprep.subr.mxu0 0.0
        %3779 = vmatpush1.msra.mxu0 0.0
        %3780 = vmatprep.subr.mxu0 0.0
        %3781 = vmatpush1.msra.mxu0 0.0
        %3782 = vmatprep.subr.mxu0 0.0
        %3783 = vmatpush1.msra.mxu0 0.0
        %3784 = vmatprep.subr.mxu0 0.0
        %3785 = vmatpush1.msra.mxu0 0.0
        %3786 = vmatprep.subr.mxu0 0.0
        %3787 = vmatpush1.msra.mxu0 0.0
        %3788 = vmatprep.subr.mxu0 0.0
        %3789 = vmatpush1.msra.mxu0 0.0
        %3790 = vmatprep.subr.mxu0 0.0
        %3791 = vmatpush1.msra.mxu0 0.0
        %3792 = vmatprep.subr.mxu0 0.0
        %3793 = vmatpush1.msra.mxu0 0.0
        %3794 = vmatprep.subr.mxu0 0.0
        %3795 = vmatpush1.msra.mxu0 0.0
        %3796 = vmatprep.subr.mxu0 0.0
        %3797 = vmatpush1.msra.mxu0 0.0
        %3798 = vmatprep.subr.mxu0 0.0
        %3799 = vmatpush1.msra.mxu0 0.0
        %3800 = vmatprep.subr.mxu0 0.0
        %3801 = vmatpush1.msra.mxu0 0.0
        %3802 = vmatprep.subr.mxu0 0.0
        %3803 = vmatpush1.msra.mxu0 0.0
        %3804 = vmatprep.subr.mxu0 0.0
        %3805 = vmatpush1.msra.mxu0 0.0
        %3806 = vmatprep.subr.mxu0 0.0
        %3807 = vmatpush1.msra.mxu0 0.0
        %3808 = vmatprep.subr.mxu0 0.0
        %3809 = vmatpush1.msra.mxu0 0.0
        %3810 = vmatprep.subr.mxu0 0.0
        %3811 = vmatpush1.msra.mxu0 0.0
        %3812 = vmatprep.subr.mxu0 0.0
        %3813 = vmatpush1.msra.mxu0 0.0
        %3814 = vmatprep.subr.mxu0 0.0
        %3815 = vmatpush1.msra.mxu0 0.0
        %3816 = vmatprep.subr.mxu0 0.0
        %3817 = vmatpush1.msra.mxu0 0.0
        %3818 = vmatprep.subr.mxu0 0.0
        %3819 = vmatpush1.msra.mxu0 0.0
        %3820 = vmatprep.subr.mxu0 0.0
        %3821 = vmatpush1.msra.mxu0 0.0
        %3822 = vmatprep.subr.mxu0 0.0
        %3823 = vmatpush1.msra.mxu0 0.0
        %3824 = vmatprep.subr.mxu0 0.0
        %3825 = vmatpush1.msra.mxu0 0.0
        %3826 = vmatprep.subr.mxu0 0.0
        %3827 = vmatpush1.msra.mxu0 0.0
        %3828 = vmatprep.subr.mxu0 0.0
        %3829 = vmatpush1.msra.mxu0 0.0
        %3830 = vmatprep.subr.mxu0 0.0
        %3831 = vmatpush1.msra.mxu0 0.0
        %3832 = vmatprep.mubr.f32.mxu0 0.0
        %3833 = vmatmul.mubr.f32.gmra.mrb[0].mxu0 %v3763
        %v3834 = vpop.f32.mrb[0].mxu0
        %v3835 = vadd.f32 0.0, %v3834
        %v3836 = vpop.f32.mrb[0].mxu0
        %v3837 = vadd.f32 0.0, %v3836
        %3838 = vmatprep.mubr.f32.mxu0 0.0
        %3839 = vmatmul.mubr.f32.gmra.mrb[0].mxu0 %v3766
        %v3840 = vpop.f32.mrb[0].mxu0
        %v3841 = vadd.f32 0.0, %v3840
        %v3842 = vpop.f32.mrb[0].mxu0
        %v3843 = vadd.f32 0.0, %v3842
        %3844 = vdwg.mxu0
        %v3845 = vadd.f32 %v3739, %v3835
        %v3846 = vadd.f32 %v3740, %v3837
        %v3847 = vadd.f32 %v3741, %v3841
        %v3848 = vadd.f32 %v3742, %v3843
        %3849 = vrot.lane.b32.xlu0 %v3127, 112
        %v3850 = vpop.permute.xlu0 %3849
        %3851 = vrot.lane.b32.xlu0 %v3129, 112
        %v3852 = vpop.permute.xlu0 %3851
        %3853 = vrot.lane.b32.xlu0 %v3128, 112
        %v3854 = vpop.permute.xlu0 %3853
        %3855 = vrot.lane.b32.xlu0 %v3130, 112
        %v3856 = vpop.permute.xlu0 %3855
        %v3857 = vsel %vm957, %v3850, %v3854
        %v3858 = vsel %vm957, %v3852, %v3856
        %v3859 = vsel %vm957, %v3854, %v3850
        %v3860 = vsel %vm957, %v3856, %v3852
        %v3861 = vmul.f32 %v3857, %v271
        %v3862 = vmul.f32 %v3859, %v272
        %v3863 = vmul.f32 %v3858, %v271
        %v3864 = vmul.f32 %v3860, %v272
        %s3865 = scalar_lea.vmem [#allocation2], 400
        %v3866 = vld [vmem:[%s3865] sm:$0xff]
        %v3867 = vld [vmem:[%s3865 + $0x8] sm:$0xff]
        %v3869 = vsel %vm1228, %v3866, 0
        %v3872 = vsel %vm1228, %v3867, 0
        %3874 = vmatprep.subr.mxu0 %v3862
        %3875 = vmatpush1.msra.mxu0 %v3861
        %3876 = vmatprep.subr.mxu0 %v3864
        %3877 = vmatpush1.msra.mxu0 %v3863
        %3878 = vmatprep.subr.mxu0 0.0
        %3879 = vmatpush1.msra.mxu0 0.0
        %3880 = vmatprep.subr.mxu0 0.0
        %3881 = vmatpush1.msra.mxu0 0.0
        %3882 = vmatprep.subr.mxu0 0.0
        %3883 = vmatpush1.msra.mxu0 0.0
        %3884 = vmatprep.subr.mxu0 0.0
        %3885 = vmatpush1.msra.mxu0 0.0
        %3886 = vmatprep.subr.mxu0 0.0
        %3887 = vmatpush1.msra.mxu0 0.0
        %3888 = vmatprep.subr.mxu0 0.0
        %3889 = vmatpush1.msra.mxu0 0.0
        %3890 = vmatprep.subr.mxu0 0.0
        %3891 = vmatpush1.msra.mxu0 0.0
        %3892 = vmatprep.subr.mxu0 0.0
        %3893 = vmatpush1.msra.mxu0 0.0
        %3894 = vmatprep.subr.mxu0 0.0
        %3895 = vmatpush1.msra.mxu0 0.0
        %3896 = vmatprep.subr.mxu0 0.0
        %3897 = vmatpush1.msra.mxu0 0.0
        %3898 = vmatprep.subr.mxu0 0.0
        %3899 = vmatpush1.msra.mxu0 0.0
        %3900 = vmatprep.subr.mxu0 0.0
        %3901 = vmatpush1.msra.mxu0 0.0
        %3902 = vmatprep.subr.mxu0 0.0
        %3903 = vmatpush1.msra.mxu0 0.0
        %3904 = vmatprep.subr.mxu0 0.0
        %3905 = vmatpush1.msra.mxu0 0.0
        %3906 = vmatprep.subr.mxu0 0.0
        %3907 = vmatpush1.msra.mxu0 0.0
        %3908 = vmatprep.subr.mxu0 0.0
        %3909 = vmatpush1.msra.mxu0 0.0
        %3910 = vmatprep.subr.mxu0 0.0
        %3911 = vmatpush1.msra.mxu0 0.0
        %3912 = vmatprep.subr.mxu0 0.0
        %3913 = vmatpush1.msra.mxu0 0.0
        %3914 = vmatprep.subr.mxu0 0.0
        %3915 = vmatpush1.msra.mxu0 0.0
        %3916 = vmatprep.subr.mxu0 0.0
        %3917 = vmatpush1.msra.mxu0 0.0
        %3918 = vmatprep.subr.mxu0 0.0
        %3919 = vmatpush1.msra.mxu0 0.0
        %3920 = vmatprep.subr.mxu0 0.0
        %3921 = vmatpush1.msra.mxu0 0.0
        %3922 = vmatprep.subr.mxu0 0.0
        %3923 = vmatpush1.msra.mxu0 0.0
        %3924 = vmatprep.subr.mxu0 0.0
        %3925 = vmatpush1.msra.mxu0 0.0
        %3926 = vmatprep.subr.mxu0 0.0
        %3927 = vmatpush1.msra.mxu0 0.0
        %3928 = vmatprep.subr.mxu0 0.0
        %3929 = vmatpush1.msra.mxu0 0.0
        %3930 = vmatprep.subr.mxu0 0.0
        %3931 = vmatpush1.msra.mxu0 0.0
        %3932 = vmatprep.subr.mxu0 0.0
        %3933 = vmatpush1.msra.mxu0 0.0
        %3934 = vmatprep.subr.mxu0 0.0
        %3935 = vmatpush1.msra.mxu0 0.0
        %3936 = vmatprep.subr.mxu0 0.0
        %3937 = vmatpush1.msra.mxu0 0.0
        %3938 = vmatprep.mubr.f32.mxu0 0.0
        %3939 = vmatmul.mubr.f32.gmra.mrb[0].mxu0 %v3869
        %v3940 = vpop.f32.mrb[0].mxu0
        %v3941 = vadd.f32 0.0, %v3940
        %v3942 = vpop.f32.mrb[0].mxu0
        %v3943 = vadd.f32 0.0, %v3942
        %3944 = vmatprep.mubr.f32.mxu0 0.0
        %3945 = vmatmul.mubr.f32.gmra.mrb[0].mxu0 %v3872
        %v3946 = vpop.f32.mrb[0].mxu0
        %v3947 = vadd.f32 0.0, %v3946
        %v3948 = vpop.f32.mrb[0].mxu0
        %v3949 = vadd.f32 0.0, %v3948
        %3950 = vdwg.mxu0
        %v3951 = vadd.f32 %v3845, %v3941
        %v3952 = vadd.f32 %v3846, %v3943
        %v3953 = vadd.f32 %v3847, %v3947
        %v3954 = vadd.f32 %v3848, %v3949
        %3955 = vrot.lane.b32.xlu0 %v3127, 111
        %v3956 = vpop.permute.xlu0 %3955
        %3957 = vrot.lane.b32.xlu0 %v3129, 111
        %v3958 = vpop.permute.xlu0 %3957
        %3959 = vrot.lane.b32.xlu0 %v3128, 111
        %v3960 = vpop.permute.xlu0 %3959
        %3961 = vrot.lane.b32.xlu0 %v3130, 111
        %v3962 = vpop.permute.xlu0 %3961
        %v3963 = vsel %vm1056, %v3956, %v3960
        %v3964 = vsel %vm1056, %v3958, %v3962
        %v3965 = vsel %vm1056, %v3960, %v3956
        %v3966 = vsel %vm1056, %v3962, %v3958
        %v3967 = vmul.f32 %v3963, %v275
        %v3968 = vmul.f32 %v3965, %v276
        %v3969 = vmul.f32 %v3964, %v275
        %v3970 = vmul.f32 %v3966, %v276
        %s3971 = scalar_lea.vmem [#allocation2], 416
        %v3972 = vld [vmem:[%s3971] sm:$0xff]
        %v3973 = vld [vmem:[%s3971 + $0x8] sm:$0xff]
        %v3975 = vsel %vm1228, %v3972, 0
        %v3978 = vsel %vm1228, %v3973, 0
        %3980 = vmatprep.subr.mxu0 %v3968
        %3981 = vmatpush1.msra.mxu0 %v3967
        %3982 = vmatprep.subr.mxu0 %v3970
        %3983 = vmatpush1.msra.mxu0 %v3969
        %3984 = vmatprep.subr.mxu0 0.0
        %3985 = vmatpush1.msra.mxu0 0.0
        %3986 = vmatprep.subr.mxu0 0.0
        %3987 = vmatpush1.msra.mxu0 0.0
        %3988 = vmatprep.subr.mxu0 0.0
        %3989 = vmatpush1.msra.mxu0 0.0
        %3990 = vmatprep.subr.mxu0 0.0
        %3991 = vmatpush1.msra.mxu0 0.0
        %3992 = vmatprep.subr.mxu0 0.0
        %3993 = vmatpush1.msra.mxu0 0.0
        %3994 = vmatprep.subr.mxu0 0.0
        %3995 = vmatpush1.msra.mxu0 0.0
        %3996 = vmatprep.subr.mxu0 0.0
        %3997 = vmatpush1.msra.mxu0 0.0
        %3998 = vmatprep.subr.mxu0 0.0
        %3999 = vmatpush1.msra.mxu0 0.0
        %4000 = vmatprep.subr.mxu0 0.0
        %4001 = vmatpush1.msra.mxu0 0.0
        %4002 = vmatprep.subr.mxu0 0.0
        %4003 = vmatpush1.msra.mxu0 0.0
        %4004 = vmatprep.subr.mxu0 0.0
        %4005 = vmatpush1.msra.mxu0 0.0
        %4006 = vmatprep.subr.mxu0 0.0
        %4007 = vmatpush1.msra.mxu0 0.0
        %4008 = vmatprep.subr.mxu0 0.0
        %4009 = vmatpush1.msra.mxu0 0.0
        %4010 = vmatprep.subr.mxu0 0.0
        %4011 = vmatpush1.msra.mxu0 0.0
        %4012 = vmatprep.subr.mxu0 0.0
        %4013 = vmatpush1.msra.mxu0 0.0
        %4014 = vmatprep.subr.mxu0 0.0
        %4015 = vmatpush1.msra.mxu0 0.0
        %4016 = vmatprep.subr.mxu0 0.0
        %4017 = vmatpush1.msra.mxu0 0.0
        %4018 = vmatprep.subr.mxu0 0.0
        %4019 = vmatpush1.msra.mxu0 0.0
        %4020 = vmatprep.subr.mxu0 0.0
        %4021 = vmatpush1.msra.mxu0 0.0
        %4022 = vmatprep.subr.mxu0 0.0
        %4023 = vmatpush1.msra.mxu0 0.0
        %4024 = vmatprep.subr.mxu0 0.0
        %4025 = vmatpush1.msra.mxu0 0.0
        %4026 = vmatprep.subr.mxu0 0.0
        %4027 = vmatpush1.msra.mxu0 0.0
        %4028 = vmatprep.subr.mxu0 0.0
        %4029 = vmatpush1.msra.mxu0 0.0
        %4030 = vmatprep.subr.mxu0 0.0
        %4031 = vmatpush1.msra.mxu0 0.0
        %4032 = vmatprep.subr.mxu0 0.0
        %4033 = vmatpush1.msra.mxu0 0.0
        %4034 = vmatprep.subr.mxu0 0.0
        %4035 = vmatpush1.msra.mxu0 0.0
        %4036 = vmatprep.subr.mxu0 0.0
        %4037 = vmatpush1.msra.mxu0 0.0
        %4038 = vmatprep.subr.mxu0 0.0
        %4039 = vmatpush1.msra.mxu0 0.0
        %4040 = vmatprep.subr.mxu0 0.0
        %4041 = vmatpush1.msra.mxu0 0.0
        %4042 = vmatprep.subr.mxu0 0.0
        %4043 = vmatpush1.msra.mxu0 0.0
        %4044 = vmatprep.mubr.f32.mxu0 0.0
        %4045 = vmatmul.mubr.f32.gmra.mrb[0].mxu0 %v3975
        %v4046 = vpop.f32.mrb[0].mxu0
        %v4047 = vadd.f32 0.0, %v4046
        %v4048 = vpop.f32.mrb[0].mxu0
        %v4049 = vadd.f32 0.0, %v4048
        %4050 = vmatprep.mubr.f32.mxu0 0.0
        %4051 = vmatmul.mubr.f32.gmra.mrb[0].mxu0 %v3978
        %v4052 = vpop.f32.mrb[0].mxu0
        %v4053 = vadd.f32 0.0, %v4052
        %v4054 = vpop.f32.mrb[0].mxu0
        %v4055 = vadd.f32 0.0, %v4054
        %4056 = vdwg.mxu0
        %v4057 = vadd.f32 %v3951, %v4047
        %v4058 = vadd.f32 %v3952, %v4049
        %v4059 = vadd.f32 %v3953, %v4053
        %v4060 = vadd.f32 %v3954, %v4055
        %v4061 = vadd.f32 %v4057, %v4058
        %4062 = vadd.xlane.f32.xlu0 %v4061
        %v4063 = vpop.xlane.xlu0 %4062
        %v4064 = vadd.f32 %v4059, %v4060
        %4065 = vadd.xlane.f32.xlu0 %v4064
        %v4066 = vpop.xlane.xlu0 %4065
        %v4067 = vmul.f32 %v4057, %v4057
        %v4068 = vmul.f32 %v4058, %v4058
        %v4069 = vmul.f32 %v4059, %v4059
        %v4070 = vmul.f32 %v4060, %v4060
        %v4071 = vadd.f32 %v4067, %v4068
        %4072 = vadd.xlane.f32.xlu0 %v4071
        %v4073 = vpop.xlane.xlu0 %4072
        %v4074 = vadd.f32 %v4069, %v4070
        %4075 = vadd.xlane.f32.xlu0 %v4074
        %v4076 = vpop.xlane.xlu0 %4075
        %v4077 = vmul.f32 %v4063, 0.00390625
        %v4078 = vmul.f32 %v4066, 0.00390625
        %v4079 = vmul.f32 %v4073, 0.00390625
        %v4080 = vmul.f32 %v4076, 0.00390625
        %v4081 = vmul.f32 %v4077, %v4077
        %v4082 = vmul.f32 %v4078, %v4078
        %v4083 = vsub.f32 %v4079, %v4081
        %v4084 = vsub.f32 %v4080, %v4082
        %v4085 = vsub.f32 %v4057, %v4077
        %v4086 = vsub.f32 %v4058, %v4077
        %v4087 = vsub.f32 %v4059, %v4078
        %v4088 = vsub.f32 %v4060, %v4078
        %v4089 = vadd.f32 %v4083, 1e-05
        %v4090 = vadd.f32 %v4084, 1e-05
        %v4091 = vrsqrt.pop %v4089
        %v4092 = vrsqrt.pop %v4090
        %v4093 = vmul.f32 %v4085, %v4091
        %v4094 = vmul.f32 %v4086, %v4091
        %v4095 = vmul.f32 %v4087, %v4092
        %v4096 = vmul.f32 %v4088, %v4092
        %v4097 = vadd.f32 %v4093, %v2157
        %v4098 = vadd.f32 %v4094, %v2158
        %v4099 = vadd.f32 %v4095, %v2159
        %v4100 = vadd.f32 %v4096, %v2160
        %v4101 = vmax.f32 %v4097, 0.0
        %v4102 = vmax.f32 %v4098, 0.0
        %v4103 = vmax.f32 %v4099, 0.0
        %v4104 = vmax.f32 %v4100, 0.0
        %v4105 = vld [vmem:[%s3] sm:$0xf]
        %v4106 = vld [vmem:[%s4] sm:$0xf]
        %4108 = vset.pattern.permute.xlu0 0
        %4109 = vperm.xlu0 %4108, %v4106
        %v4110 = vpop.permute.xlu0 %4109
        %v4113 = vsel %vm1228, %v4105, 0
        %4115 = vmatprep.subr.mxu0 %v4102
        %4116 = vmatpush1.msra.mxu0 %v4101
        %4117 = vmatprep.subr.mxu0 %v4104
        %4118 = vmatpush1.msra.mxu0 %v4103
        %4119 = vmatprep.subr.mxu0 0.0
        %4120 = vmatpush1.msra.mxu0 0.0
        %4121 = vmatprep.subr.mxu0 0.0
        %4122 = vmatpush1.msra.mxu0 0.0
        %4123 = vmatprep.subr.mxu0 0.0
        %4124 = vmatpush1.msra.mxu0 0.0
        %4125 = vmatprep.subr.mxu0 0.0
        %4126 = vmatpush1.msra.mxu0 0.0
        %4127 = vmatprep.subr.mxu0 0.0
        %4128 = vmatpush1.msra.mxu0 0.0
        %4129 = vmatprep.subr.mxu0 0.0
        %4130 = vmatpush1.msra.mxu0 0.0
        %4131 = vmatprep.subr.mxu0 0.0
        %4132 = vmatpush1.msra.mxu0 0.0
        %4133 = vmatprep.subr.mxu0 0.0
        %4134 = vmatpush1.msra.mxu0 0.0
        %4135 = vmatprep.subr.mxu0 0.0
        %4136 = vmatpush1.msra.mxu0 0.0
        %4137 = vmatprep.subr.mxu0 0.0
        %4138 = vmatpush1.msra.mxu0 0.0
        %4139 = vmatprep.subr.mxu0 0.0
        %4140 = vmatpush1.msra.mxu0 0.0
        %4141 = vmatprep.subr.mxu0 0.0
        %4142 = vmatpush1.msra.mxu0 0.0
        %4143 = vmatprep.subr.mxu0 0.0
        %4144 = vmatpush1.msra.mxu0 0.0
        %4145 = vmatprep.subr.mxu0 0.0
        %4146 = vmatpush1.msra.mxu0 0.0
        %4147 = vmatprep.subr.mxu0 0.0
        %4148 = vmatpush1.msra.mxu0 0.0
        %4149 = vmatprep.subr.mxu0 0.0
        %4150 = vmatpush1.msra.mxu0 0.0
        %4151 = vmatprep.subr.mxu0 0.0
        %4152 = vmatpush1.msra.mxu0 0.0
        %4153 = vmatprep.subr.mxu0 0.0
        %4154 = vmatpush1.msra.mxu0 0.0
        %4155 = vmatprep.subr.mxu0 0.0
        %4156 = vmatpush1.msra.mxu0 0.0
        %4157 = vmatprep.subr.mxu0 0.0
        %4158 = vmatpush1.msra.mxu0 0.0
        %4159 = vmatprep.subr.mxu0 0.0
        %4160 = vmatpush1.msra.mxu0 0.0
        %4161 = vmatprep.subr.mxu0 0.0
        %4162 = vmatpush1.msra.mxu0 0.0
        %4163 = vmatprep.subr.mxu0 0.0
        %4164 = vmatpush1.msra.mxu0 0.0
        %4165 = vmatprep.subr.mxu0 0.0
        %4166 = vmatpush1.msra.mxu0 0.0
        %4167 = vmatprep.subr.mxu0 0.0
        %4168 = vmatpush1.msra.mxu0 0.0
        %4169 = vmatprep.subr.mxu0 0.0
        %4170 = vmatpush1.msra.mxu0 0.0
        %4171 = vmatprep.subr.mxu0 0.0
        %4172 = vmatpush1.msra.mxu0 0.0
        %4173 = vmatprep.subr.mxu0 0.0
        %4174 = vmatpush1.msra.mxu0 0.0
        %4175 = vmatprep.subr.mxu0 0.0
        %4176 = vmatpush1.msra.mxu0 0.0
        %4177 = vmatprep.subr.mxu0 0.0
        %4178 = vmatpush1.msra.mxu0 0.0
        %4179 = vmatprep.mubr.f32.mxu0 0.0
        %4180 = vmatmul.mubr.f32.gmra.mrb[0].mxu0 %v4113
        %v4181 = vpop.f32.mrb[0].mxu0
        %v4182 = vadd.f32 %v4110, %v4181
        %v4183 = vpop.f32.mrb[0].mxu0
        %v4184 = vadd.f32 %v4110, %v4183
        %4185 = vdwg.mxu0
        %v4188 = vcombine.low %v4182, %v4184
        %4190 = vst [vmem:[%s232] sm:$0xff] %v4188
        %s4191 = sand.u32 %s138, 1
        %s4192 = scalar_lea.sflag [#allocation4], %s4191
        %s4193 = sand.u32 %s138, 1
        %s4194 = smul.addr %s4193, 8
        %s4195 = scalar_lea.vmem [#allocation5], %s4194
        // Predicated region
        $region45: #{tpu_custom_call.1} parent=39 // pred_check
          %p4196 = pneg %p148
        $region46: #{tpu_custom_call.1} parent=39 // pred_check_branch
          %4198 = sbr.rel (%p4196) target = $region48
        $region47: #{tpu_custom_call.1} parent=39 // pred_region
          %s4200 = ssub.s32 128, 128
          %4201 = vsyncadd %s4192, %s4200
          %s4202 = smul.addr %s20, 2
          %s4203 = smul.addr %s4202, 64
          %s4204 = scalar_lea.hbm %s5, %s4203
          %s4206 = sshll.u32 %s4195, 4
          %s4207 = int_to_ptr.vmem [resolvable:$true] %s4206
          %4209 = dma.vmem_to_hbm [thread:$0]  %s4207, 128, %s4204, %s4192
        $region48: #{tpu_custom_call.1} parent=39 // pred_fallthru
          _
      $region40: #{tpu_custom_call.1} parent=5 // pred_fallthru
        _
      %p4210 = scmp.le.s32.totalorder 2, %s15
      // Predicated region
      $region49: #{tpu_custom_call.1} parent=5 // pred_check
        %p4211 = pneg %p4210
      $region50: #{tpu_custom_call.1} parent=5 // pred_check_branch
        %4213 = sbr.rel (%p4211) target = $region52
      $region51: #{tpu_custom_call.1} parent=5 // pred_region
        %s4214 = ssub.s32 %s15, 2
        // Predicated region
        $region53: #{tpu_custom_call.1} parent=51 // pred_check
          %p4215 = pneg %p154
        $region54: #{tpu_custom_call.1} parent=51 // pred_check_branch
          %4217 = sbr.rel (%p4215) target = $region56
        $region55: #{tpu_custom_call.1} parent=51 // pred_region
          %s4218 = sand.u32 %s139, 1
          %s4219 = scalar_lea.sflag [#allocation4], %s4218
          %s4220 = sand.u32 %s139, 1
          %s4221 = smul.addr %s4220, 8
          %s4222 = scalar_lea.vmem [#allocation5], %s4221
          %4223 = dma.done %s4219, 128
        $region56: #{tpu_custom_call.1} parent=51 // pred_fallthru
          _
      $region52: #{tpu_custom_call.1} parent=5 // pred_fallthru
        _
    $region6: #{tpu_custom_call.1} parent=1 // loop_footer
      %s19 = sadd.s32 1, %s15
    $region7: #{tpu_custom_call.1} parent=1 // loop_footer_branch
      %14 = sbr.rel target = $region3
    $region8: #{tpu_custom_call.1} parent=1 // loop_exit
      _
    %4224 = vsyncpa [#allocation3], 1
    %s4225 = scalar_lea.sflag [#allocation3], 1
    %4226 = vsyncpa %s4225, 1
    %4227 = vsyncpa [#allocation4], 1
    %s4228 = scalar_lea.sflag [#allocation4], 1
    %4229 = vsyncpa %s4228, 1

</llo_original>
